<compile_context>
chip_gen: v7x
topology: tpu7x:2x2x1
jax: 0.10.0
libtpu: 0.0.40
codegen_flags: <defaults>
</compile_context>

<pallas_src>
import functools

import jax
import jax.numpy as jnp
from jax import lax
from jax.experimental import pallas as pl
from jax.experimental.pallas import tpu as pltpu


def _supports_bf16_eup():
    """bf16 transcendentals exist on v6e/v7x; v5e and older are f32-only."""
    try:
        kind = jax.devices()[0].device_kind.lower()
    except Exception:
        return True
    return not any(t in kind for t in ("v2", "v3", "v4", "v5"))


# ---------------------------------------------------------------------------
# Kernel 1: fused Q/K/V projection, plainly tiled over rows of x (B*N, E).
# ---------------------------------------------------------------------------
def qkv_proj_kernel(x_ref, w_ref, b_ref, q_ref, k_ref, v_ref, *, emb_dim, scale):
    """x_ref (TM,E) bf16; w_ref (E,3E) bf16; b_ref (1,3E) f32;
    q/k/v_ref (TM,E) bf16 outputs. Q is pre-scaled by 1/sqrt(head_dim)."""
    qkv = jnp.dot(x_ref[...], w_ref[...], preferred_element_type=jnp.float32)
    qkv = qkv + b_ref[...]
    q_ref[...] = (qkv[:, :emb_dim] * scale).astype(q_ref.dtype)
    k_ref[...] = qkv[:, emb_dim:2 * emb_dim].astype(k_ref.dtype)
    v_ref[...] = qkv[:, 2 * emb_dim:].astype(v_ref.dtype)


# ---------------------------------------------------------------------------
# Kernel 2: attention + fused fc_out. Grid = (B, N // TQ, H), heads innermost
# ("arbitrary") so the output tile accumulates sum_h attn_h @ Wo_h.
# ---------------------------------------------------------------------------
def attn_kernel(q_ref, k_ref, v_ref, wo_ref, bo_ref, o_ref, acc_ref, *,
                use_bf16_exp):
    h = pl.program_id(2)

    @pl.when(h == 0)
    def _():
        acc_ref[...] = jnp.zeros_like(acc_ref)

    q = q_ref[0]                      # (TQ, D) bf16, pre-scaled by 1/sqrt(D)
    k = k_ref[0]                      # (N,  D) bf16
    v = v_ref[0]                      # (N,  D) bf16

    # q @ k^T without materializing a transpose: contract the last dims.
    s = lax.dot_general(q, k, dimension_numbers=(((1,), (1,)), ((), ())),
                        preferred_element_type=jnp.float32)        # (TQ, N) f32

    # Numerically stable softmax; normalization deferred to the PV result.
    m = jnp.max(s, axis=-1, keepdims=True)
    z = s - m
    if use_bf16_exp:
        p = jnp.exp(z.astype(jnp.bfloat16))        # bf16 EUP path (v6e / v7x)
    else:
        p = jnp.exp(z)                             # f32 EUP path (v5e)
    row_sum = jnp.sum(p, axis=-1, keepdims=True, dtype=jnp.float32)

    oh = jnp.dot(p.astype(jnp.bfloat16), v,
                 preferred_element_type=jnp.float32)               # (TQ, D) f32
    # Deferred normalization: TQ*D multiplies instead of TQ*N.
    oh = oh * pl.reciprocal(row_sum, approx=True)

    # Fused output projection: accumulate this head's slice of fc_out.
    acc_ref[...] += jnp.dot(oh.astype(jnp.bfloat16), wo_ref[...],
                            preferred_element_type=jnp.float32)    # (TQ, E) f32

    @pl.when(h == pl.num_programs(2) - 1)
    def _():
        o_ref[0] = (acc_ref[...] + bo_ref[...]).astype(o_ref.dtype)


def multi_head_attention(x, params, num_heads, *, tq=128, tm=256):
    """x: (B, N, E) float32. params: dict of torch-style Linear params."""
    B, N, E = x.shape
    D = E // num_heads
    assert num_heads * D == E, "emb_dim must be divisible by num_heads"
    assert D % 128 == 0, "head_dim must be a multiple of 128 for lane-dense blocks"
    tq = min(tq, N)
    assert N % tq == 0, "n_patches must be divisible by the query tile"
    M = B * N
    tm = min(tm, M)
    assert M % tm == 0

    f32, bf16 = jnp.float32, jnp.bfloat16

    # Glue: torch nn.Linear stores W as (out, in); transpose to (in, out) and
    # fuse Q/K/V into one (E, 3E) bf16 weight + (1, 3E) f32 bias.
    wqkv = jnp.concatenate(
        [params["wq"].T, params["wk"].T, params["wv"].T], axis=1).astype(bf16)
    bqkv = jnp.concatenate(
        [params["bq"], params["bk"], params["bv"]]).reshape(1, 3 * E).astype(f32)
    wo = params["wo"].T.astype(bf16)
    bo = params["bo"].reshape(1, E).astype(f32)

    x2d = x.reshape(M, E).astype(bf16)       # bf16 activations: half the DMA bytes
    scale = 1.0 / (D ** 0.5)

    # ---- Pass 1: fused QKV projection (Q pre-scaled). ----
    const2 = lambda i: (0, 0)
    proj_vmem = (2 * tm * E * 2              # x tiles (double-buffered, bf16)
                 + E * 3 * E * 2             # wqkv (single buffer, bf16)
                 + 3 * E * 4                 # bqkv
                 + 3 * 2 * tm * E * 2)       # q/k/v output tiles (bf16)
    q, k, v = pl.pallas_call(
        functools.partial(qkv_proj_kernel, emb_dim=E, scale=scale),
        out_shape=(jax.ShapeDtypeStruct((M, E), bf16),) * 3,
        grid_spec=pltpu.PrefetchScalarGridSpec(
            num_scalar_prefetch=0,
            grid=(M // tm,),
            in_specs=[
                pl.BlockSpec((tm, E), lambda i: (i, 0)),
                pl.BlockSpec((E, 3 * E), const2, pipeline_mode=pl.Buffered(1)),
                pl.BlockSpec((1, 3 * E), const2, pipeline_mode=pl.Buffered(1)),
            ],
            out_specs=tuple(pl.BlockSpec((tm, E), lambda i: (i, 0))
                            for _ in range(3)),
        ),
        compiler_params=pltpu.CompilerParams(
            dimension_semantics=("parallel",),
            vmem_limit_bytes=proj_vmem + (16 << 20)),
    )(x2d, wqkv, bqkv)

    q = q.reshape(B, N, E)
    k = k.reshape(B, N, E)
    v = v.reshape(B, N, E)

    # ---- Pass 2: attention + fused output projection. ----
    attn_vmem = (2 * tq * D * 2              # q tiles
                 + 2 * 2 * N * D * 2         # k, v tiles
                 + 2 * D * E * 2             # per-head Wo slab
                 + E * 4                     # bo (single buffer)
                 + 2 * tq * E * 4            # output tiles (f32)
                 + tq * E * 4)               # f32 accumulator scratch
    out = pl.pallas_call(
        functools.partial(attn_kernel, use_bf16_exp=_supports_bf16_eup()),
        out_shape=jax.ShapeDtypeStruct((B, N, E), x.dtype),
        grid_spec=pltpu.PrefetchScalarGridSpec(
            num_scalar_prefetch=0,
            grid=(B, N // tq, num_heads),
            in_specs=[
                pl.BlockSpec((1, tq, D), lambda b, qi, h: (b, qi, h)),   # Q tile (head h)
                pl.BlockSpec((1, N, D), lambda b, qi, h: (b, 0, h)),     # K (head h)
                pl.BlockSpec((1, N, D), lambda b, qi, h: (b, 0, h)),     # V (head h)
                pl.BlockSpec((D, E), lambda b, qi, h: (h, 0)),           # Wo rows for head h
                pl.BlockSpec((1, E), lambda b, qi, h: (0, 0),
                             pipeline_mode=pl.Buffered(1)),              # bo
            ],
            out_specs=pl.BlockSpec((1, tq, E), lambda b, qi, h: (b, qi, 0)),
            scratch_shapes=[pltpu.VMEM((tq, E), jnp.float32)],
        ),
        compiler_params=pltpu.CompilerParams(
            dimension_semantics=("parallel", "parallel", "arbitrary"),
            vmem_limit_bytes=attn_vmem + (16 << 20)),
    )(q, k, v, wo, bo)
    return out


def reference_mha(x, params, num_heads):
    """Pure-JAX f32 reference mirroring the PyTorch forward exactly."""
    B, N, E = x.shape
    D = E // num_heads
    q = (x @ params["wq"].T + params["bq"]).reshape(B, N, num_heads, D)
    k = (x @ params["wk"].T + params["bk"]).reshape(B, N, num_heads, D)
    v = (x @ params["wv"].T + params["bv"]).reshape(B, N, num_heads, D)
    qk = jnp.einsum("bqhd,bkhd->bhqk", q, k) / (D ** 0.5)
    attn = jax.nn.softmax(qk, axis=-1)
    out = jnp.einsum("bhqk,bkhd->bqhd", attn, v).reshape(B, N, E)
    return out @ params["wo"].T + params["bo"]


if __name__ == "__main__":
    # Small, TPU-friendly shapes consistent with the module: num_heads=4 as in
    # the spec; E a multiple of 512 so head_dim (=128) keeps every per-head
    # block lane-dense; N=256 gives two query tiles per batch element.
    B, N, E, H = 2, 256, 512, 4

    key = jax.random.PRNGKey(0)
    keys = jax.random.split(key, 9)

    def init_linear(kw, kb, fan_in, fan_out):
        # Mimics torch.nn.Linear's uniform(-1/sqrt(in), 1/sqrt(in)) init.
        bound = 1.0 / (fan_in ** 0.5)
        w = jax.random.uniform(kw, (fan_out, fan_in), jnp.float32, -bound, bound)
        b = jax.random.uniform(kb, (fan_out,), jnp.float32, -bound, bound)
        return w, b

    wq, bq = init_linear(keys[0], keys[1], E, E)
    wk, bk = init_linear(keys[2], keys[3], E, E)
    wv, bv = init_linear(keys[4], keys[5], E, E)
    wo, bo = init_linear(keys[6], keys[7], E, E)
    params = dict(wq=wq, bq=bq, wk=wk, bk=bk, wv=wv, bv=bv, wo=wo, bo=bo)

    x = jax.random.normal(keys[8], (B, N, E), jnp.float32)

    out = multi_head_attention(x, params, H)
    out = jax.block_until_ready(out)

    ref = reference_mha(x, params, H)
    assert out.shape == (B, N, E)
    # bf16 MXU operands / bf16 exp (f32 accumulation) vs f32 reference: relaxed tol.
    max_err = float(jnp.max(jnp.abs(out - ref)))
    assert jnp.allclose(out, ref, atol=3e-2, rtol=3e-2), (
        f"mismatch vs reference (max abs err {max_err})")

    print("KERNEL_OK")
</pallas_src>

<mosaic_0001>
module attributes {stable_mosaic.version = 11 : i64} {
  func.func @qkv_proj_kernel(%arg0: i32, %arg1: memref<256x512xbf16, #tpu.memory_space<vmem>>, %arg2: memref<512x1536xbf16, #tpu.memory_space<vmem>>, %arg3: memref<1x1536xf32, #tpu.memory_space<vmem>>, %arg4: memref<256x512xbf16, #tpu.memory_space<vmem>>, %arg5: memref<256x512xbf16, #tpu.memory_space<vmem>>, %arg6: memref<256x512xbf16, #tpu.memory_space<vmem>>) attributes {dimension_semantics = [#tpu.dimension_semantics<parallel>], iteration_bounds = array<i64: 2>, scalar_prefetch = 0 : i64, scratch_operands = 0 : i64, tpu.core_type = #tpu.core_type<tc>, window_params = [{transform_indices = @transform_0, window_bounds = array<i64: 256, 512>}, {pipeline_mode = #tpu.pipeline_mode<synchronous>, transform_indices = @transform_1, window_bounds = array<i64: 512, 1536>}, {pipeline_mode = #tpu.pipeline_mode<synchronous>, transform_indices = @transform_2, window_bounds = array<i64: 1, 1536>}, {transform_indices = @transform_3, window_bounds = array<i64: 256, 512>}, {transform_indices = @transform_4, window_bounds = array<i64: 256, 512>}, {transform_indices = @transform_5, window_bounds = array<i64: 256, 512>}]} {
    %c0 = arith.constant 0 : index
    %c0_0 = arith.constant 0 : index
    %0 = vector.load %arg1[%c0, %c0_0] : memref<256x512xbf16, #tpu.memory_space<vmem>>, vector<256x512xbf16>
    %c0_1 = arith.constant 0 : index
    %c0_2 = arith.constant 0 : index
    %1 = vector.load %arg2[%c0_1, %c0_2] : memref<512x1536xbf16, #tpu.memory_space<vmem>>, vector<512x1536xbf16>
    %cst = arith.constant dense<0.000000e+00> : vector<256x1536xf32>
    %2 = tpu.matmul %0, %1, %cst {dimension_numbers = #tpu.dot_dimension_numbers<[1], [0], [0], [1], [0, 0, 1, 1], [], []>} : vector<256x512xbf16>, vector<512x1536xbf16>, vector<256x1536xf32> -> vector<256x1536xf32>
    %c0_3 = arith.constant 0 : index
    %c0_4 = arith.constant 0 : index
    %3 = vector.load %arg3[%c0_3, %c0_4] : memref<1x1536xf32, #tpu.memory_space<vmem>>, vector<1x1536xf32>
    %4 = vector.broadcast %3 : vector<1x1536xf32> to vector<256x1536xf32>
    %5 = arith.addf %2, %4 : vector<256x1536xf32>
    %6 = vector.extract_strided_slice %5 {offsets = [0, 0], sizes = [256, 512], strides = [1, 1]} : vector<256x1536xf32> to vector<256x512xf32>
    %cst_5 = arith.constant 0.0883883461 : f32
    %7 = vector.broadcast %cst_5 : f32 to vector<256x512xf32>
    %8 = arith.mulf %6, %7 : vector<256x512xf32>
    %9 = arith.truncf %8 : vector<256x512xf32> to vector<256x512xbf16>
    %c0_6 = arith.constant 0 : index
    %c0_7 = arith.constant 0 : index
    %10 = vector.load %arg4[%c0_6, %c0_7] : memref<256x512xbf16, #tpu.memory_space<vmem>>, vector<256x512xbf16>
    tpu.vector_store %arg4[%c0_6, %c0_7], %9 {strides = array<i32>} : memref<256x512xbf16, #tpu.memory_space<vmem>>, vector<256x512xbf16>,
    %11 = vector.extract_strided_slice %5 {offsets = [0, 512], sizes = [256, 512], strides = [1, 1]} : vector<256x1536xf32> to vector<256x512xf32>
    %12 = arith.truncf %11 : vector<256x512xf32> to vector<256x512xbf16>
    %c0_8 = arith.constant 0 : index
    %c0_9 = arith.constant 0 : index
    %13 = vector.load %arg5[%c0_8, %c0_9] : memref<256x512xbf16, #tpu.memory_space<vmem>>, vector<256x512xbf16>
    tpu.vector_store %arg5[%c0_8, %c0_9], %12 {strides = array<i32>} : memref<256x512xbf16, #tpu.memory_space<vmem>>, vector<256x512xbf16>,
    %14 = vector.extract_strided_slice %5 {offsets = [0, 1024], sizes = [256, 512], strides = [1, 1]} : vector<256x1536xf32> to vector<256x512xf32>
    %15 = arith.truncf %14 : vector<256x512xf32> to vector<256x512xbf16>
    %c0_10 = arith.constant 0 : index
    %c0_11 = arith.constant 0 : index
    %16 = vector.load %arg6[%c0_10, %c0_11] : memref<256x512xbf16, #tpu.memory_space<vmem>>, vector<256x512xbf16>
    tpu.vector_store %arg6[%c0_10, %c0_11], %15 {strides = array<i32>} : memref<256x512xbf16, #tpu.memory_space<vmem>>, vector<256x512xbf16>,
    return
  }
  func.func @transform_0(%arg0: i32) -> (i32, i32) {
    %c0_i32 = arith.constant 0 : i32
    %c0_i32_0 = arith.constant 0 : i32
    return %arg0, %c0_i32 : i32, i32
  }
  func.func @transform_1(%arg0: i32) -> (i32, i32) {
    %c0_i32 = arith.constant 0 : i32
    %c0_i32_0 = arith.constant 0 : i32
    %c0_i32_1 = arith.constant 0 : i32
    return %c0_i32, %c0_i32_0 : i32, i32
  }
  func.func @transform_2(%arg0: i32) -> (i32, i32) {
    %c0_i32 = arith.constant 0 : i32
    %c0_i32_0 = arith.constant 0 : i32
    %c0_i32_1 = arith.constant 0 : i32
    return %c0_i32, %c0_i32_0 : i32, i32
  }
  func.func @transform_3(%arg0: i32) -> (i32, i32) {
    %c0_i32 = arith.constant 0 : i32
    %c0_i32_0 = arith.constant 0 : i32
    return %arg0, %c0_i32 : i32, i32
  }
  func.func @transform_4(%arg0: i32) -> (i32, i32) {
    %c0_i32 = arith.constant 0 : i32
    %c0_i32_0 = arith.constant 0 : i32
    return %arg0, %c0_i32 : i32, i32
  }
  func.func @transform_5(%arg0: i32) -> (i32, i32) {
    %c0_i32 = arith.constant 0 : i32
    %c0_i32_0 = arith.constant 0 : i32
    return %arg0, %c0_i32 : i32, i32
  }
}

</mosaic_0001>

<llo_original>
// kernel: tpu_custom_call.1
$region0: #{tpu_custom_call.1}
  #allocation0 [shape = 'u32[]', space=smem, size = 0x4, offset = 0x4, fixed_abs, tag = 'smem constant byte address 0x4 - core index']
  #allocation1 [shape = 'u32[144,128]{1,0:T(1,128)}', space=vmem, size = 0x12000, scoped, tag = 'internal scratch']
  %s0 = inlined_call_operand.hbm [shape: bf16[512,512], index: 0, kind: input, shape index: {}]
  %s1 = inlined_call_operand.hbm [shape: bf16[512,1536], index: 1, kind: input, shape index: {}]
  %s2 = inlined_call_operand.hbm [shape: f32[1,1536], index: 2, kind: input, shape index: {}]
  %s3 = inlined_call_operand.hbm [shape: bf16[512,512], index: 3, kind: output, shape index: {0}]
  %s4 = inlined_call_operand.hbm [shape: bf16[512,512], index: 4, kind: output, shape index: {1}]
  %s5 = inlined_call_operand.hbm [shape: bf16[512,512], index: 5, kind: output, shape index: {2}]
  %6 = xla_tuple %s3, %s4, %s5
  %s7 = sld [smem:[#allocation0]]
  $region73: #{tpu_custom_call.1} parent=0
    _
  %s9 = ssub.s32 1, %s7
  %s10 = scalar_select 0, %s9, %s7
  $region1: #{tpu_custom_call.1} parent=0
    #allocation2 [shape = 'u8[524288]{0}', space=vmem, size = 0x80000, scoped, tag = 'input window, operand 0']
    #allocation3 [shape = 's32[2]{0}', space=sflag, size = 0x8, scoped, tag = 'scoped memory for tpu_custom_call.1']
    #allocation4 [shape = 's32[2]{0}', space=sflag, size = 0x8, scoped, tag = 'scoped memory for tpu_custom_call.1']
    #allocation5 [shape = 'u8[1572864]{0}', space=vmem, size = 0x180000, scoped, tag = 'input window, operand 1, single buffered']
    #allocation6 [shape = 's32[1]{0}', space=sflag, size = 0x4, scoped, tag = 'scoped memory for tpu_custom_call.1']
    #allocation7 [shape = 'u8[6144]{0}', space=vmem, size = 0x1800, scoped, tag = 'input window, operand 2, single buffered']
    #allocation8 [shape = 'u8[524288]{0}', space=vmem, size = 0x80000, scoped, tag = 'output window, operand 0']
    #allocation9 [shape = 'u8[524288]{0}', space=vmem, size = 0x80000, scoped, tag = 'output window, operand 1']
    #allocation10 [shape = 's32[2]{0}', space=sflag, size = 0x8, scoped, tag = 'scoped memory for tpu_custom_call.1']
    #allocation11 [shape = 'u8[524288]{0}', space=vmem, size = 0x80000, scoped, tag = 'output window, operand 2']
    %11 = vsyncpa [#allocation3], 0
    %s12 = scalar_lea.sflag [#allocation3], 1
    %13 = vsyncpa %s12, 0
    %14 = vsyncpa [#allocation6], 0
    %15 = vsyncpa [#allocation4], 0
    %s16 = scalar_lea.sflag [#allocation4], 1
    %17 = vsyncpa %s16, 0
    %18 = vsyncpa [#allocation10], 0
    %s19 = scalar_lea.sflag [#allocation10], 1
    %20 = vsyncpa %s19, 0
    loop: start=0, step=1, limit=4
    $region2: #{tpu_custom_call.1} parent=1 // loop_pre_header
      _
    $region3: #{tpu_custom_call.1} parent=1 // loop_header
      %s22 = sphi 0, %s26
      %p23 = scmp.ge.s32.totalorder %s22, 4
      %s32 = sphi 0, %s34
      %s35 = sphi 0, %s32
      %s36 = sphi 0, %s35
      %s52 = sphi 0, %s36
      %s56 = sphi 0, %s56
      %s58 = sphi 0, %s56
      %s59 = sphi 0, %s58
      %s73 = sphi 0, %s59
      %s77 = sphi 0, %s77
      %s79 = sphi 0, %s77
      %s80 = sphi 0, %s79
      %s94 = sphi 0, %s80
      %s100 = sphi 0, %s102
      %s103 = sphi 0, %s100
      %s104 = sphi 0, %s103
      %s120 = sphi 0, %s104
      %s126 = sphi 0, %s128
      %s129 = sphi 0, %s126
      %s130 = sphi 0, %s129
      %s146 = sphi 0, %s130
      %s152 = sphi 0, %s154
      %s155 = sphi 0, %s152
      %s156 = sphi 0, %s155
      %s172 = sphi 0, %s156
    $region4: #{tpu_custom_call.1} parent=1 // loop_header_branch
      %25 = sbr.rel (%p23) target = $region8
    $region5: #{tpu_custom_call.1} parent=1 // loop_body
      %s27 = ssub.s32 %s22, 1
      %s28 = ssub.s32 %s22, 2
      %s29 = sadd.s32 %s22, 1
      %s30 = ssub.s32 %s22, %s29
      %p31 = scmp.eq.s32.totalorder %s30, 0
      %s33 = sadd.s32 %s32, 1
      %s34 = scalar_select %p31, %s32, %s33
      %p37 = pneg %p31
      %p38 = scmp.eq.s32.totalorder %s22, 1
      %p39 = por %p37, %p38
      %p40 = scmp.ne.s32.totalorder %s32, %s35
      %p41 = scmp.eq.s32.totalorder %s22, 0
      %p42 = por %p40, %p41
      %p43 = scmp.ne.s32.totalorder %s32, %s35
      %p44 = scmp.eq.s32.totalorder %s27, 1
      %p45 = por %p43, %p44
      %p46 = scmp.ne.s32.totalorder %s35, %s36
      %p47 = scmp.eq.s32.totalorder %s27, 0
      %p48 = por %p46, %p47
      %p49 = scmp.ne.s32.totalorder %s35, %s36
      %p50 = scmp.eq.s32.totalorder %s28, 1
      %p51 = por %p49, %p50
      %p53 = scmp.ne.s32.totalorder %s36, %s52
      %p54 = scmp.eq.s32.totalorder %s28, 0
      %p55 = por %p53, %p54
      %s57 = sadd.s32 %s56, 1
      %p60 = scmp.eq.s32.totalorder %s22, 1
      %p61 = scmp.ne.s32.totalorder %s56, %s58
      %p62 = scmp.eq.s32.totalorder %s22, 0
      %p63 = por %p61, %p62
      %p64 = scmp.ne.s32.totalorder %s56, %s58
      %p65 = scmp.eq.s32.totalorder %s27, 1
      %p66 = por %p64, %p65
      %p67 = scmp.ne.s32.totalorder %s58, %s59
      %p68 = scmp.eq.s32.totalorder %s27, 0
      %p69 = por %p67, %p68
      %p70 = scmp.ne.s32.totalorder %s58, %s59
      %p71 = scmp.eq.s32.totalorder %s28, 1
      %p72 = por %p70, %p71
      %p74 = scmp.ne.s32.totalorder %s59, %s73
      %p75 = scmp.eq.s32.totalorder %s28, 0
      %p76 = por %p74, %p75
      %s78 = sadd.s32 %s77, 1
      %p81 = scmp.eq.s32.totalorder %s22, 1
      %p82 = scmp.ne.s32.totalorder %s77, %s79
      %p83 = scmp.eq.s32.totalorder %s22, 0
      %p84 = por %p82, %p83
      %p85 = scmp.ne.s32.totalorder %s77, %s79
      %p86 = scmp.eq.s32.totalorder %s27, 1
      %p87 = por %p85, %p86
      %p88 = scmp.ne.s32.totalorder %s79, %s80
      %p89 = scmp.eq.s32.totalorder %s27, 0
      %p90 = por %p88, %p89
      %p91 = scmp.ne.s32.totalorder %s79, %s80
      %p92 = scmp.eq.s32.totalorder %s28, 1
      %p93 = por %p91, %p92
      %p95 = scmp.ne.s32.totalorder %s80, %s94
      %p96 = scmp.eq.s32.totalorder %s28, 0
      %p97 = por %p95, %p96
      %s98 = ssub.s32 %s22, %s29
      %p99 = scmp.eq.s32.totalorder %s98, 0
      %s101 = sadd.s32 %s100, 1
      %s102 = scalar_select %p99, %s100, %s101
      %p105 = pneg %p99
      %p106 = scmp.eq.s32.totalorder %s22, 1
      %p107 = por %p105, %p106
      %p108 = scmp.ne.s32.totalorder %s100, %s103
      %p109 = scmp.eq.s32.totalorder %s22, 0
      %p110 = por %p108, %p109
      %p111 = scmp.ne.s32.totalorder %s100, %s103
      %p112 = scmp.eq.s32.totalorder %s27, 1
      %p113 = por %p111, %p112
      %p114 = scmp.ne.s32.totalorder %s103, %s104
      %p115 = scmp.eq.s32.totalorder %s27, 0
      %p116 = por %p114, %p115
      %p117 = scmp.ne.s32.totalorder %s103, %s104
      %p118 = scmp.eq.s32.totalorder %s28, 1
      %p119 = por %p117, %p118
      %p121 = scmp.ne.s32.totalorder %s104, %s120
      %p122 = scmp.eq.s32.totalorder %s28, 0
      %p123 = por %p121, %p122
      %s124 = ssub.s32 %s22, %s29
      %p125 = scmp.eq.s32.totalorder %s124, 0
      %s127 = sadd.s32 %s126, 1
      %s128 = scalar_select %p125, %s126, %s127
      %p131 = pneg %p125
      %p132 = scmp.eq.s32.totalorder %s22, 1
      %p133 = por %p131, %p132
      %p134 = scmp.ne.s32.totalorder %s126, %s129
      %p135 = scmp.eq.s32.totalorder %s22, 0
      %p136 = por %p134, %p135
      %p137 = scmp.ne.s32.totalorder %s126, %s129
      %p138 = scmp.eq.s32.totalorder %s27, 1
      %p139 = por %p137, %p138
      %p140 = scmp.ne.s32.totalorder %s129, %s130
      %p141 = scmp.eq.s32.totalorder %s27, 0
      %p142 = por %p140, %p141
      %p143 = scmp.ne.s32.totalorder %s129, %s130
      %p144 = scmp.eq.s32.totalorder %s28, 1
      %p145 = por %p143, %p144
      %p147 = scmp.ne.s32.totalorder %s130, %s146
      %p148 = scmp.eq.s32.totalorder %s28, 0
      %p149 = por %p147, %p148
      %s150 = ssub.s32 %s22, %s29
      %p151 = scmp.eq.s32.totalorder %s150, 0
      %s153 = sadd.s32 %s152, 1
      %s154 = scalar_select %p151, %s152, %s153
      %p157 = pneg %p151
      %p158 = scmp.eq.s32.totalorder %s22, 1
      %p159 = por %p157, %p158
      %p160 = scmp.ne.s32.totalorder %s152, %s155
      %p161 = scmp.eq.s32.totalorder %s22, 0
      %p162 = por %p160, %p161
      %p163 = scmp.ne.s32.totalorder %s152, %s155
      %p164 = scmp.eq.s32.totalorder %s27, 1
      %p165 = por %p163, %p164
      %p166 = scmp.ne.s32.totalorder %s155, %s156
      %p167 = scmp.eq.s32.totalorder %s27, 0
      %p168 = por %p166, %p167
      %p169 = scmp.ne.s32.totalorder %s155, %s156
      %p170 = scmp.eq.s32.totalorder %s28, 1
      %p171 = por %p169, %p170
      %p173 = scmp.ne.s32.totalorder %s156, %s172
      %p174 = scmp.eq.s32.totalorder %s28, 0
      %p175 = por %p173, %p174
      %p176 = scmp.le.s32.totalorder 1, %s22
      %p177 = scmp.lt.s32.totalorder %s22, 3
      %p178 = pnand %p176, %p177
      %p179 = pneg %p178
      // Predicated region
      $region9: #{tpu_custom_call.1} parent=5 // pred_check
        _
      $region10: #{tpu_custom_call.1} parent=5 // pred_check_branch
        %181 = sbr.rel (%p178) target = $region12
      $region11: #{tpu_custom_call.1} parent=5 // pred_region
        %s182 = ssub.s32 %s22, 1
        // Predicated region
        $region13: #{tpu_custom_call.1} parent=11 // pred_check
          %p183 = pneg %p69
        $region14: #{tpu_custom_call.1} parent=11 // pred_check_branch
          %185 = sbr.rel (%p183) target = $region16
        $region15: #{tpu_custom_call.1} parent=11 // pred_region
          %s187 = ssub.s32 49152, 49152
          %188 = vsyncadd [#allocation6], %s187
          %s189 = sshll.u32 [#allocation5], 4
          %s190 = int_to_ptr.vmem [resolvable:$true] %s189
          %195 = dma.hbm_to_vmem [thread:$0]  %s1, 49152, %s190, [#allocation6], 768, 768, 48
        $region16: #{tpu_custom_call.1} parent=11 // pred_fallthru
          _
        // Predicated region
        $region17: #{tpu_custom_call.1} parent=11 // pred_check
          %p196 = pneg %p90
        $region18: #{tpu_custom_call.1} parent=11 // pred_check_branch
          %198 = sbr.rel (%p196) target = $region20
        $region19: #{tpu_custom_call.1} parent=11 // pred_region
          %s200 = ssub.s32 192, 192
          %201 = vsyncadd [#allocation6], %s200
          %s203 = sshll.u32 [#allocation7], 4
          %s204 = int_to_ptr.vmem [resolvable:$true] %s203
          %206 = dma.hbm_to_vmem [thread:$0]  %s2, 192, %s204, [#allocation6]
        $region20: #{tpu_custom_call.1} parent=11 // pred_fallthru
          _
      $region12: #{tpu_custom_call.1} parent=5 // pred_fallthru
        _
      %p207 = scmp.lt.s32.totalorder %s22, 2
      // Predicated region
      $region21: #{tpu_custom_call.1} parent=5 // pred_check
        %p208 = pneg %p207
      $region22: #{tpu_custom_call.1} parent=5 // pred_check_branch
        %210 = sbr.rel (%p208) target = $region24
      $region23: #{tpu_custom_call.1} parent=5 // pred_region
        // Predicated region
        $region25: #{tpu_custom_call.1} parent=23 // pred_check
          %p211 = pneg %p42
        $region26: #{tpu_custom_call.1} parent=23 // pred_check_branch
          %213 = sbr.rel (%p211) target = $region28
        $region27: #{tpu_custom_call.1} parent=23 // pred_region
          %s214 = sand.u32 %s32, 1
          %s215 = scalar_lea.sflag [#allocation3], %s214
          %s216 = sand.u32 %s32, 1
          %s217 = smul.addr %s216, 512
          %s218 = scalar_lea.vmem [#allocation2], %s217
          %s219 = smul.u32 32, %s22
          %s221 = ssub.s32 8192, 8192
          %222 = vsyncadd %s215, %s221
          %s223 = smul.addr %s219, 4
          %s224 = smul.addr %s223, 64
          %s225 = scalar_lea.hbm %s0, %s224
          %s226 = sshll.u32 %s218, 4
          %s227 = int_to_ptr.vmem [resolvable:$true] %s226
          %232 = dma.hbm_to_vmem [thread:$0]  %s225, 8192, %s227, %s215, 256, 256, 16
        $region28: #{tpu_custom_call.1} parent=23 // pred_fallthru
          _
      $region24: #{tpu_custom_call.1} parent=5 // pred_fallthru
        _
      %p233 = scmp.le.s32.totalorder 1, %s22
      %p234 = scmp.lt.s32.totalorder %s22, 3
      %p235 = pnand %p233, %p234
      %p236 = pneg %p235
      // Predicated region
      $region29: #{tpu_custom_call.1} parent=5 // pred_check
        _
      $region30: #{tpu_custom_call.1} parent=5 // pred_check_branch
        %238 = sbr.rel (%p235) target = $region32
      $region31: #{tpu_custom_call.1} parent=5 // pred_region
        %s239 = ssub.s32 %s22, 1
        %s240 = sand.u32 %s35, 1
        %s241 = scalar_lea.sflag [#allocation3], %s240
        %s242 = sand.u32 %s35, 1
        %s243 = smul.addr %s242, 512
        %s244 = scalar_lea.vmem [#allocation2], %s243
        // Predicated region
        $region33: #{tpu_custom_call.1} parent=31 // pred_check
          %p245 = pneg %p48
        $region34: #{tpu_custom_call.1} parent=31 // pred_check_branch
          %247 = sbr.rel (%p245) target = $region36
        $region35: #{tpu_custom_call.1} parent=31 // pred_region
          %248 = dma.done %s241, 8192
        $region36: #{tpu_custom_call.1} parent=31 // pred_fallthru
          _
        // Predicated region
        $region37: #{tpu_custom_call.1} parent=31 // pred_check
          %p249 = pneg %p69
        $region38: #{tpu_custom_call.1} parent=31 // pred_check_branch
          %251 = sbr.rel (%p249) target = $region40
        $region39: #{tpu_custom_call.1} parent=31 // pred_region
          %252 = dma.done [#allocation6], 49152
        $region40: #{tpu_custom_call.1} parent=31 // pred_fallthru
          _
        // Predicated region
        $region41: #{tpu_custom_call.1} parent=31 // pred_check
          %p253 = pneg %p90
        $region42: #{tpu_custom_call.1} parent=31 // pred_check_branch
          %255 = sbr.rel (%p253) target = $region44
        $region43: #{tpu_custom_call.1} parent=31 // pred_region
          %256 = dma.done [#allocation6], 192
        $region44: #{tpu_custom_call.1} parent=31 // pred_fallthru
          _
        %s257 = sand.u32 %s35, 1
        %s258 = scalar_lea.sflag [#allocation3], %s257
        %s259 = sand.u32 %s35, 1
        %s260 = smul.addr %s259, 512
        %s261 = scalar_lea.vmem [#allocation2], %s260
        %p262 = pneg %p48
        %p263 = pneg %p45
        %p264 = pneg %p69
        %p265 = pneg %p66
        %p266 = pneg %p90
        %p267 = pneg %p87
        %p268 = pneg %p116
        %p269 = pneg %p113
        %s270 = sand.u32 %s103, 1
        %s271 = scalar_lea.sflag [#allocation4], %s270
        %s272 = sand.u32 %s103, 1
        %s273 = smul.addr %s272, 512
        %s274 = scalar_lea.vmem [#allocation8], %s273
        %p275 = pneg %p142
        %p276 = pneg %p139
        %s277 = sand.u32 %s27, 1
        %s278 = scalar_lea.sflag [#allocation10], %s277
        %s279 = sand.u32 %s129, 1
        %s280 = smul.addr %s279, 512
        %s281 = scalar_lea.vmem [#allocation9], %s280
        %p282 = pneg %p168
        %p283 = pneg %p165
        %s284 = sand.u32 %s27, 1
        %s285 = scalar_lea.sflag [#allocation10], %s284
        %s286 = sand.u32 %s155, 1
        %s287 = smul.addr %s286, 512
        %s288 = scalar_lea.vmem [#allocation11], %s287
        %s289 = smul.u32 32, %s27
        %s290 = smul.u32 32, %s27
        %s291 = smul.u32 32, %s27
        %s292 = smul.u32 32, %s27
        %v293 = vld [vmem:[%s244] sm:$0xff]
        %v294 = vld [vmem:[%s244 + $0x8] sm:$0xff]
        %v295 = vld [vmem:[%s244 + $0x10] sm:$0xff]
        %v296 = vld [vmem:[%s244 + $0x18] sm:$0xff]
        %v297 = vld [vmem:[%s244 + $0x20] sm:$0xff]
        %v298 = vld [vmem:[%s244 + $0x28] sm:$0xff]
        %v299 = vld [vmem:[%s244 + $0x30] sm:$0xff]
        %v300 = vld [vmem:[%s244 + $0x38] sm:$0xff]
        %v301 = vld [vmem:[%s244 + $0x40] sm:$0xff]
        %v302 = vld [vmem:[%s244 + $0x48] sm:$0xff]
        %v303 = vld [vmem:[%s244 + $0x50] sm:$0xff]
        %v304 = vld [vmem:[%s244 + $0x58] sm:$0xff]
        %v305 = vld [vmem:[%s244 + $0x60] sm:$0xff]
        %v306 = vld [vmem:[%s244 + $0x68] sm:$0xff]
        %v307 = vld [vmem:[%s244 + $0x70] sm:$0xff]
        %v308 = vld [vmem:[%s244 + $0x78] sm:$0xff]
        %v309 = vld [vmem:[%s244 + $0x80] sm:$0xff]
        %v310 = vld [vmem:[%s244 + $0x88] sm:$0xff]
        %v311 = vld [vmem:[%s244 + $0x90] sm:$0xff]
        %v312 = vld [vmem:[%s244 + $0x98] sm:$0xff]
        %v313 = vld [vmem:[%s244 + $0xa0] sm:$0xff]
        %v314 = vld [vmem:[%s244 + $0xa8] sm:$0xff]
        %v315 = vld [vmem:[%s244 + $0xb0] sm:$0xff]
        %v316 = vld [vmem:[%s244 + $0xb8] sm:$0xff]
        %v317 = vld [vmem:[%s244 + $0xc0] sm:$0xff]
        %v318 = vld [vmem:[%s244 + $0xc8] sm:$0xff]
        %v319 = vld [vmem:[%s244 + $0xd0] sm:$0xff]
        %v320 = vld [vmem:[%s244 + $0xd8] sm:$0xff]
        %v321 = vld [vmem:[%s244 + $0xe0] sm:$0xff]
        %v322 = vld [vmem:[%s244 + $0xe8] sm:$0xff]
        %v323 = vld [vmem:[%s244 + $0xf0] sm:$0xff]
        %v324 = vld [vmem:[%s244 + $0xf8] sm:$0xff]
        %v325 = vld [vmem:[%s244 + $0x100] sm:$0xff]
        %v326 = vld [vmem:[%s244 + $0x108] sm:$0xff]
        %v327 = vld [vmem:[%s244 + $0x110] sm:$0xff]
        %v328 = vld [vmem:[%s244 + $0x118] sm:$0xff]
        %v329 = vld [vmem:[%s244 + $0x120] sm:$0xff]
        %v330 = vld [vmem:[%s244 + $0x128] sm:$0xff]
        %v331 = vld [vmem:[%s244 + $0x130] sm:$0xff]
        %v332 = vld [vmem:[%s244 + $0x138] sm:$0xff]
        %v333 = vld [vmem:[%s244 + $0x140] sm:$0xff]
        %v334 = vld [vmem:[%s244 + $0x148] sm:$0xff]
        %v335 = vld [vmem:[%s244 + $0x150] sm:$0xff]
        %v336 = vld [vmem:[%s244 + $0x158] sm:$0xff]
        %v337 = vld [vmem:[%s244 + $0x160] sm:$0xff]
        %v338 = vld [vmem:[%s244 + $0x168] sm:$0xff]
        %v339 = vld [vmem:[%s244 + $0x170] sm:$0xff]
        %v340 = vld [vmem:[%s244 + $0x178] sm:$0xff]
        %v341 = vld [vmem:[%s244 + $0x180] sm:$0xff]
        %v342 = vld [vmem:[%s244 + $0x188] sm:$0xff]
        %v343 = vld [vmem:[%s244 + $0x190] sm:$0xff]
        %v344 = vld [vmem:[%s244 + $0x198] sm:$0xff]
        %v345 = vld [vmem:[%s244 + $0x1a0] sm:$0xff]
        %v346 = vld [vmem:[%s244 + $0x1a8] sm:$0xff]
        %v347 = vld [vmem:[%s244 + $0x1b0] sm:$0xff]
        %v348 = vld [vmem:[%s244 + $0x1b8] sm:$0xff]
        %v349 = vld [vmem:[%s244 + $0x1c0] sm:$0xff]
        %v350 = vld [vmem:[%s244 + $0x1c8] sm:$0xff]
        %v351 = vld [vmem:[%s244 + $0x1d0] sm:$0xff]
        %v352 = vld [vmem:[%s244 + $0x1d8] sm:$0xff]
        %v353 = vld [vmem:[%s244 + $0x1e0] sm:$0xff]
        %v354 = vld [vmem:[%s244 + $0x1e8] sm:$0xff]
        %v355 = vld [vmem:[%s244 + $0x1f0] sm:$0xff]
        %v356 = vld [vmem:[%s244 + $0x1f8] sm:$0xff]
        %v357 = vld [vmem:[#allocation5] sm:$0xff]
        %v358 = vld [vmem:[#allocation5 + $0x8] sm:$0xff]
        %v359 = vld [vmem:[#allocation5 + $0x10] sm:$0xff]
        %v360 = vld [vmem:[#allocation5 + $0x18] sm:$0xff]
        %v361 = vld [vmem:[#allocation5 + $0x20] sm:$0xff]
        %v362 = vld [vmem:[#allocation5 + $0x28] sm:$0xff]
        %v363 = vld [vmem:[#allocation5 + $0x30] sm:$0xff]
        %v364 = vld [vmem:[#allocation5 + $0x38] sm:$0xff]
        %v365 = vld [vmem:[#allocation5 + $0x40] sm:$0xff]
        %v366 = vld [vmem:[#allocation5 + $0x48] sm:$0xff]
        %v367 = vld [vmem:[#allocation5 + $0x50] sm:$0xff]
        %v368 = vld [vmem:[#allocation5 + $0x58] sm:$0xff]
        %v369 = vld [vmem:[#allocation5 + $0x60] sm:$0xff]
        %v370 = vld [vmem:[#allocation5 + $0x68] sm:$0xff]
        %v371 = vld [vmem:[#allocation5 + $0x70] sm:$0xff]
        %v372 = vld [vmem:[#allocation5 + $0x78] sm:$0xff]
        %v373 = vld [vmem:[#allocation5 + $0x80] sm:$0xff]
        %v374 = vld [vmem:[#allocation5 + $0x88] sm:$0xff]
        %v375 = vld [vmem:[#allocation5 + $0x90] sm:$0xff]
        %v376 = vld [vmem:[#allocation5 + $0x98] sm:$0xff]
        %v377 = vld [vmem:[#allocation5 + $0xa0] sm:$0xff]
        %v378 = vld [vmem:[#allocation5 + $0xa8] sm:$0xff]
        %v379 = vld [vmem:[#allocation5 + $0xb0] sm:$0xff]
        %v380 = vld [vmem:[#allocation5 + $0xb8] sm:$0xff]
        %v381 = vld [vmem:[#allocation5 + $0xc0] sm:$0xff]
        %v382 = vld [vmem:[#allocation5 + $0xc8] sm:$0xff]
        %v383 = vld [vmem:[#allocation5 + $0xd0] sm:$0xff]
        %v384 = vld [vmem:[#allocation5 + $0xd8] sm:$0xff]
        %v385 = vld [vmem:[#allocation5 + $0xe0] sm:$0xff]
        %v386 = vld [vmem:[#allocation5 + $0xe8] sm:$0xff]
        %v387 = vld [vmem:[#allocation5 + $0xf0] sm:$0xff]
        %v388 = vld [vmem:[#allocation5 + $0xf8] sm:$0xff]
        %v389 = vld [vmem:[#allocation5 + $0x100] sm:$0xff]
        %v390 = vld [vmem:[#allocation5 + $0x108] sm:$0xff]
        %v391 = vld [vmem:[#allocation5 + $0x110] sm:$0xff]
        %v392 = vld [vmem:[#allocation5 + $0x118] sm:$0xff]
        %v393 = vld [vmem:[#allocation5 + $0x120] sm:$0xff]
        %v394 = vld [vmem:[#allocation5 + $0x128] sm:$0xff]
        %v395 = vld [vmem:[#allocation5 + $0x130] sm:$0xff]
        %v396 = vld [vmem:[#allocation5 + $0x138] sm:$0xff]
        %v397 = vld [vmem:[#allocation5 + $0x140] sm:$0xff]
        %v398 = vld [vmem:[#allocation5 + $0x148] sm:$0xff]
        %v399 = vld [vmem:[#allocation5 + $0x150] sm:$0xff]
        %v400 = vld [vmem:[#allocation5 + $0x158] sm:$0xff]
        %v401 = vld [vmem:[#allocation5 + $0x160] sm:$0xff]
        %v402 = vld [vmem:[#allocation5 + $0x168] sm:$0xff]
        %v403 = vld [vmem:[#allocation5 + $0x170] sm:$0xff]
        %v404 = vld [vmem:[#allocation5 + $0x178] sm:$0xff]
        %v405 = vld [vmem:[#allocation5 + $0x180] sm:$0xff]
        %v406 = vld [vmem:[#allocation5 + $0x188] sm:$0xff]
        %v407 = vld [vmem:[#allocation5 + $0x190] sm:$0xff]
        %v408 = vld [vmem:[#allocation5 + $0x198] sm:$0xff]
        %v409 = vld [vmem:[#allocation5 + $0x1a0] sm:$0xff]
        %v410 = vld [vmem:[#allocation5 + $0x1a8] sm:$0xff]
        %v411 = vld [vmem:[#allocation5 + $0x1b0] sm:$0xff]
        %v412 = vld [vmem:[#allocation5 + $0x1b8] sm:$0xff]
        %v413 = vld [vmem:[#allocation5 + $0x1c0] sm:$0xff]
        %v414 = vld [vmem:[#allocation5 + $0x1c8] sm:$0xff]
        %v415 = vld [vmem:[#allocation5 + $0x1d0] sm:$0xff]
        %v416 = vld [vmem:[#allocation5 + $0x1d8] sm:$0xff]
        %v417 = vld [vmem:[#allocation5 + $0x1e0] sm:$0xff]
        %v418 = vld [vmem:[#allocation5 + $0x1e8] sm:$0xff]
        %v419 = vld [vmem:[#allocation5 + $0x1f0] sm:$0xff]
        %v420 = vld [vmem:[#allocation5 + $0x1f8] sm:$0xff]
        %v421 = vld [vmem:[#allocation5 + $0x200] sm:$0xff]
        %v422 = vld [vmem:[#allocation5 + $0x208] sm:$0xff]
        %v423 = vld [vmem:[#allocation5 + $0x210] sm:$0xff]
        %v424 = vld [vmem:[#allocation5 + $0x218] sm:$0xff]
        %v425 = vld [vmem:[#allocation5 + $0x220] sm:$0xff]
        %v426 = vld [vmem:[#allocation5 + $0x228] sm:$0xff]
        %v427 = vld [vmem:[#allocation5 + $0x230] sm:$0xff]
        %v428 = vld [vmem:[#allocation5 + $0x238] sm:$0xff]
        %v429 = vld [vmem:[#allocation5 + $0x240] sm:$0xff]
        %v430 = vld [vmem:[#allocation5 + $0x248] sm:$0xff]
        %v431 = vld [vmem:[#allocation5 + $0x250] sm:$0xff]
        %v432 = vld [vmem:[#allocation5 + $0x258] sm:$0xff]
        %v433 = vld [vmem:[#allocation5 + $0x260] sm:$0xff]
        %v434 = vld [vmem:[#allocation5 + $0x268] sm:$0xff]
        %v435 = vld [vmem:[#allocation5 + $0x270] sm:$0xff]
        %v436 = vld [vmem:[#allocation5 + $0x278] sm:$0xff]
        %v437 = vld [vmem:[#allocation5 + $0x280] sm:$0xff]
        %v438 = vld [vmem:[#allocation5 + $0x288] sm:$0xff]
        %v439 = vld [vmem:[#allocation5 + $0x290] sm:$0xff]
        %v440 = vld [vmem:[#allocation5 + $0x298] sm:$0xff]
        %v441 = vld [vmem:[#allocation5 + $0x2a0] sm:$0xff]
        %v442 = vld [vmem:[#allocation5 + $0x2a8] sm:$0xff]
        %v443 = vld [vmem:[#allocation5 + $0x2b0] sm:$0xff]
        %v444 = vld [vmem:[#allocation5 + $0x2b8] sm:$0xff]
        %v445 = vld [vmem:[#allocation5 + $0x2c0] sm:$0xff]
        %v446 = vld [vmem:[#allocation5 + $0x2c8] sm:$0xff]
        %v447 = vld [vmem:[#allocation5 + $0x2d0] sm:$0xff]
        %v448 = vld [vmem:[#allocation5 + $0x2d8] sm:$0xff]
        %v449 = vld [vmem:[#allocation5 + $0x2e0] sm:$0xff]
        %v450 = vld [vmem:[#allocation5 + $0x2e8] sm:$0xff]
        %v451 = vld [vmem:[#allocation5 + $0x2f0] sm:$0xff]
        %v452 = vld [vmem:[#allocation5 + $0x2f8] sm:$0xff]
        %v453 = vld [vmem:[#allocation5 + $0x300] sm:$0xff]
        %v454 = vld [vmem:[#allocation5 + $0x308] sm:$0xff]
        %v455 = vld [vmem:[#allocation5 + $0x310] sm:$0xff]
        %v456 = vld [vmem:[#allocation5 + $0x318] sm:$0xff]
        %v457 = vld [vmem:[#allocation5 + $0x320] sm:$0xff]
        %v458 = vld [vmem:[#allocation5 + $0x328] sm:$0xff]
        %v459 = vld [vmem:[#allocation5 + $0x330] sm:$0xff]
        %v460 = vld [vmem:[#allocation5 + $0x338] sm:$0xff]
        %v461 = vld [vmem:[#allocation5 + $0x340] sm:$0xff]
        %v462 = vld [vmem:[#allocation5 + $0x348] sm:$0xff]
        %v463 = vld [vmem:[#allocation5 + $0x350] sm:$0xff]
        %v464 = vld [vmem:[#allocation5 + $0x358] sm:$0xff]
        %v465 = vld [vmem:[#allocation5 + $0x360] sm:$0xff]
        %v466 = vld [vmem:[#allocation5 + $0x368] sm:$0xff]
        %v467 = vld [vmem:[#allocation5 + $0x370] sm:$0xff]
        %v468 = vld [vmem:[#allocation5 + $0x378] sm:$0xff]
        %v469 = vld [vmem:[#allocation5 + $0x380] sm:$0xff]
        %v470 = vld [vmem:[#allocation5 + $0x388] sm:$0xff]
        %v471 = vld [vmem:[#allocation5 + $0x390] sm:$0xff]
        %v472 = vld [vmem:[#allocation5 + $0x398] sm:$0xff]
        %v473 = vld [vmem:[#allocation5 + $0x3a0] sm:$0xff]
        %v474 = vld [vmem:[#allocation5 + $0x3a8] sm:$0xff]
        %v475 = vld [vmem:[#allocation5 + $0x3b0] sm:$0xff]
        %v476 = vld [vmem:[#allocation5 + $0x3b8] sm:$0xff]
        %v477 = vld [vmem:[#allocation5 + $0x3c0] sm:$0xff]
        %v478 = vld [vmem:[#allocation5 + $0x3c8] sm:$0xff]
        %v479 = vld [vmem:[#allocation5 + $0x3d0] sm:$0xff]
        %v480 = vld [vmem:[#allocation5 + $0x3d8] sm:$0xff]
        %v481 = vld [vmem:[#allocation5 + $0x3e0] sm:$0xff]
        %v482 = vld [vmem:[#allocation5 + $0x3e8] sm:$0xff]
        %v483 = vld [vmem:[#allocation5 + $0x3f0] sm:$0xff]
        %v484 = vld [vmem:[#allocation5 + $0x3f8] sm:$0xff]
        %v485 = vld [vmem:[#allocation5 + $0x400] sm:$0xff]
        %v486 = vld [vmem:[#allocation5 + $0x408] sm:$0xff]
        %v487 = vld [vmem:[#allocation5 + $0x410] sm:$0xff]
        %v488 = vld [vmem:[#allocation5 + $0x418] sm:$0xff]
        %v489 = vld [vmem:[#allocation5 + $0x420] sm:$0xff]
        %v490 = vld [vmem:[#allocation5 + $0x428] sm:$0xff]
        %v491 = vld [vmem:[#allocation5 + $0x430] sm:$0xff]
        %v492 = vld [vmem:[#allocation5 + $0x438] sm:$0xff]
        %v493 = vld [vmem:[#allocation5 + $0x440] sm:$0xff]
        %v494 = vld [vmem:[#allocation5 + $0x448] sm:$0xff]
        %v495 = vld [vmem:[#allocation5 + $0x450] sm:$0xff]
        %v496 = vld [vmem:[#allocation5 + $0x458] sm:$0xff]
        %v497 = vld [vmem:[#allocation5 + $0x460] sm:$0xff]
        %v498 = vld [vmem:[#allocation5 + $0x468] sm:$0xff]
        %v499 = vld [vmem:[#allocation5 + $0x470] sm:$0xff]
        %v500 = vld [vmem:[#allocation5 + $0x478] sm:$0xff]
        %v501 = vld [vmem:[#allocation5 + $0x480] sm:$0xff]
        %v502 = vld [vmem:[#allocation5 + $0x488] sm:$0xff]
        %v503 = vld [vmem:[#allocation5 + $0x490] sm:$0xff]
        %v504 = vld [vmem:[#allocation5 + $0x498] sm:$0xff]
        %v505 = vld [vmem:[#allocation5 + $0x4a0] sm:$0xff]
        %v506 = vld [vmem:[#allocation5 + $0x4a8] sm:$0xff]
        %v507 = vld [vmem:[#allocation5 + $0x4b0] sm:$0xff]
        %v508 = vld [vmem:[#allocation5 + $0x4b8] sm:$0xff]
        %v509 = vld [vmem:[#allocation5 + $0x4c0] sm:$0xff]
        %v510 = vld [vmem:[#allocation5 + $0x4c8] sm:$0xff]
        %v511 = vld [vmem:[#allocation5 + $0x4d0] sm:$0xff]
        %v512 = vld [vmem:[#allocation5 + $0x4d8] sm:$0xff]
        %v513 = vld [vmem:[#allocation5 + $0x4e0] sm:$0xff]
        %v514 = vld [vmem:[#allocation5 + $0x4e8] sm:$0xff]
        %v515 = vld [vmem:[#allocation5 + $0x4f0] sm:$0xff]
        %v516 = vld [vmem:[#allocation5 + $0x4f8] sm:$0xff]
        %v517 = vld [vmem:[#allocation5 + $0x500] sm:$0xff]
        %v518 = vld [vmem:[#allocation5 + $0x508] sm:$0xff]
        %v519 = vld [vmem:[#allocation5 + $0x510] sm:$0xff]
        %v520 = vld [vmem:[#allocation5 + $0x518] sm:$0xff]
        %v521 = vld [vmem:[#allocation5 + $0x520] sm:$0xff]
        %v522 = vld [vmem:[#allocation5 + $0x528] sm:$0xff]
        %v523 = vld [vmem:[#allocation5 + $0x530] sm:$0xff]
        %v524 = vld [vmem:[#allocation5 + $0x538] sm:$0xff]
        %v525 = vld [vmem:[#allocation5 + $0x540] sm:$0xff]
        %v526 = vld [vmem:[#allocation5 + $0x548] sm:$0xff]
        %v527 = vld [vmem:[#allocation5 + $0x550] sm:$0xff]
        %v528 = vld [vmem:[#allocation5 + $0x558] sm:$0xff]
        %v529 = vld [vmem:[#allocation5 + $0x560] sm:$0xff]
        %v530 = vld [vmem:[#allocation5 + $0x568] sm:$0xff]
        %v531 = vld [vmem:[#allocation5 + $0x570] sm:$0xff]
        %v532 = vld [vmem:[#allocation5 + $0x578] sm:$0xff]
        %v533 = vld [vmem:[#allocation5 + $0x580] sm:$0xff]
        %v534 = vld [vmem:[#allocation5 + $0x588] sm:$0xff]
        %v535 = vld [vmem:[#allocation5 + $0x590] sm:$0xff]
        %v536 = vld [vmem:[#allocation5 + $0x598] sm:$0xff]
        %v537 = vld [vmem:[#allocation5 + $0x5a0] sm:$0xff]
        %v538 = vld [vmem:[#allocation5 + $0x5a8] sm:$0xff]
        %v539 = vld [vmem:[#allocation5 + $0x5b0] sm:$0xff]
        %v540 = vld [vmem:[#allocation5 + $0x5b8] sm:$0xff]
        %v541 = vld [vmem:[#allocation5 + $0x5c0] sm:$0xff]
        %v542 = vld [vmem:[#allocation5 + $0x5c8] sm:$0xff]
        %v543 = vld [vmem:[#allocation5 + $0x5d0] sm:$0xff]
        %v544 = vld [vmem:[#allocation5 + $0x5d8] sm:$0xff]
        %v545 = vld [vmem:[#allocation5 + $0x5e0] sm:$0xff]
        %v546 = vld [vmem:[#allocation5 + $0x5e8] sm:$0xff]
        %v547 = vld [vmem:[#allocation5 + $0x5f0] sm:$0xff]
        %v548 = vld [vmem:[#allocation5 + $0x5f8] sm:$0xff]
        %v549 = vld [vmem:[#allocation5 + $0x600] sm:$0xff]
        %v550 = vld [vmem:[#allocation5 + $0x608] sm:$0xff]
        %v551 = vld [vmem:[#allocation5 + $0x610] sm:$0xff]
        %v552 = vld [vmem:[#allocation5 + $0x618] sm:$0xff]
        %v553 = vld [vmem:[#allocation5 + $0x620] sm:$0xff]
        %v554 = vld [vmem:[#allocation5 + $0x628] sm:$0xff]
        %v555 = vld [vmem:[#allocation5 + $0x630] sm:$0xff]
        %v556 = vld [vmem:[#allocation5 + $0x638] sm:$0xff]
        %v557 = vld [vmem:[#allocation5 + $0x640] sm:$0xff]
        %v558 = vld [vmem:[#allocation5 + $0x648] sm:$0xff]
        %v559 = vld [vmem:[#allocation5 + $0x650] sm:$0xff]
        %v560 = vld [vmem:[#allocation5 + $0x658] sm:$0xff]
        %v561 = vld [vmem:[#allocation5 + $0x660] sm:$0xff]
        %v562 = vld [vmem:[#allocation5 + $0x668] sm:$0xff]
        %v563 = vld [vmem:[#allocation5 + $0x670] sm:$0xff]
        %v564 = vld [vmem:[#allocation5 + $0x678] sm:$0xff]
        %v565 = vld [vmem:[#allocation5 + $0x680] sm:$0xff]
        %v566 = vld [vmem:[#allocation5 + $0x688] sm:$0xff]
        %v567 = vld [vmem:[#allocation5 + $0x690] sm:$0xff]
        %v568 = vld [vmem:[#allocation5 + $0x698] sm:$0xff]
        %v569 = vld [vmem:[#allocation5 + $0x6a0] sm:$0xff]
        %v570 = vld [vmem:[#allocation5 + $0x6a8] sm:$0xff]
        %v571 = vld [vmem:[#allocation5 + $0x6b0] sm:$0xff]
        %v572 = vld [vmem:[#allocation5 + $0x6b8] sm:$0xff]
        %v573 = vld [vmem:[#allocation5 + $0x6c0] sm:$0xff]
        %v574 = vld [vmem:[#allocation5 + $0x6c8] sm:$0xff]
        %v575 = vld [vmem:[#allocation5 + $0x6d0] sm:$0xff]
        %v576 = vld [vmem:[#allocation5 + $0x6d8] sm:$0xff]
        %v577 = vld [vmem:[#allocation5 + $0x6e0] sm:$0xff]
        %v578 = vld [vmem:[#allocation5 + $0x6e8] sm:$0xff]
        %v579 = vld [vmem:[#allocation5 + $0x6f0] sm:$0xff]
        %v580 = vld [vmem:[#allocation5 + $0x6f8] sm:$0xff]
        %v581 = vld [vmem:[#allocation5 + $0x700] sm:$0xff]
        %v582 = vld [vmem:[#allocation5 + $0x708] sm:$0xff]
        %v583 = vld [vmem:[#allocation5 + $0x710] sm:$0xff]
        %v584 = vld [vmem:[#allocation5 + $0x718] sm:$0xff]
        %v585 = vld [vmem:[#allocation5 + $0x720] sm:$0xff]
        %v586 = vld [vmem:[#allocation5 + $0x728] sm:$0xff]
        %v587 = vld [vmem:[#allocation5 + $0x730] sm:$0xff]
        %v588 = vld [vmem:[#allocation5 + $0x738] sm:$0xff]
        %v589 = vld [vmem:[#allocation5 + $0x740] sm:$0xff]
        %v590 = vld [vmem:[#allocation5 + $0x748] sm:$0xff]
        %v591 = vld [vmem:[#allocation5 + $0x750] sm:$0xff]
        %v592 = vld [vmem:[#allocation5 + $0x758] sm:$0xff]
        %v593 = vld [vmem:[#allocation5 + $0x760] sm:$0xff]
        %v594 = vld [vmem:[#allocation5 + $0x768] sm:$0xff]
        %v595 = vld [vmem:[#allocation5 + $0x770] sm:$0xff]
        %v596 = vld [vmem:[#allocation5 + $0x778] sm:$0xff]
        %v597 = vld [vmem:[#allocation5 + $0x780] sm:$0xff]
        %v598 = vld [vmem:[#allocation5 + $0x788] sm:$0xff]
        %v599 = vld [vmem:[#allocation5 + $0x790] sm:$0xff]
        %v600 = vld [vmem:[#allocation5 + $0x798] sm:$0xff]
        %v601 = vld [vmem:[#allocation5 + $0x7a0] sm:$0xff]
        %v602 = vld [vmem:[#allocation5 + $0x7a8] sm:$0xff]
        %v603 = vld [vmem:[#allocation5 + $0x7b0] sm:$0xff]
        %v604 = vld [vmem:[#allocation5 + $0x7b8] sm:$0xff]
        %v605 = vld [vmem:[#allocation5 + $0x7c0] sm:$0xff]
        %v606 = vld [vmem:[#allocation5 + $0x7c8] sm:$0xff]
        %v607 = vld [vmem:[#allocation5 + $0x7d0] sm:$0xff]
        %v608 = vld [vmem:[#allocation5 + $0x7d8] sm:$0xff]
        %v609 = vld [vmem:[#allocation5 + $0x7e0] sm:$0xff]
        %v610 = vld [vmem:[#allocation5 + $0x7e8] sm:$0xff]
        %v611 = vld [vmem:[#allocation5 + $0x7f0] sm:$0xff]
        %v612 = vld [vmem:[#allocation5 + $0x7f8] sm:$0xff]
        %v613 = vld [vmem:[#allocation5 + $0x800] sm:$0xff]
        %v614 = vld [vmem:[#allocation5 + $0x808] sm:$0xff]
        %v615 = vld [vmem:[#allocation5 + $0x810] sm:$0xff]
        %v616 = vld [vmem:[#allocation5 + $0x818] sm:$0xff]
        %v617 = vld [vmem:[#allocation5 + $0x820] sm:$0xff]
        %v618 = vld [vmem:[#allocation5 + $0x828] sm:$0xff]
        %v619 = vld [vmem:[#allocation5 + $0x830] sm:$0xff]
        %v620 = vld [vmem:[#allocation5 + $0x838] sm:$0xff]
        %v621 = vld [vmem:[#allocation5 + $0x840] sm:$0xff]
        %v622 = vld [vmem:[#allocation5 + $0x848] sm:$0xff]
        %v623 = vld [vmem:[#allocation5 + $0x850] sm:$0xff]
        %v624 = vld [vmem:[#allocation5 + $0x858] sm:$0xff]
        %v625 = vld [vmem:[#allocation5 + $0x860] sm:$0xff]
        %v626 = vld [vmem:[#allocation5 + $0x868] sm:$0xff]
        %v627 = vld [vmem:[#allocation5 + $0x870] sm:$0xff]
        %v628 = vld [vmem:[#allocation5 + $0x878] sm:$0xff]
        %v629 = vld [vmem:[#allocation5 + $0x880] sm:$0xff]
        %v630 = vld [vmem:[#allocation5 + $0x888] sm:$0xff]
        %v631 = vld [vmem:[#allocation5 + $0x890] sm:$0xff]
        %v632 = vld [vmem:[#allocation5 + $0x898] sm:$0xff]
        %v633 = vld [vmem:[#allocation5 + $0x8a0] sm:$0xff]
        %v634 = vld [vmem:[#allocation5 + $0x8a8] sm:$0xff]
        %v635 = vld [vmem:[#allocation5 + $0x8b0] sm:$0xff]
        %v636 = vld [vmem:[#allocation5 + $0x8b8] sm:$0xff]
        %v637 = vld [vmem:[#allocation5 + $0x8c0] sm:$0xff]
        %v638 = vld [vmem:[#allocation5 + $0x8c8] sm:$0xff]
        %v639 = vld [vmem:[#allocation5 + $0x8d0] sm:$0xff]
        %v640 = vld [vmem:[#allocation5 + $0x8d8] sm:$0xff]
        %v641 = vld [vmem:[#allocation5 + $0x8e0] sm:$0xff]
        %v642 = vld [vmem:[#allocation5 + $0x8e8] sm:$0xff]
        %v643 = vld [vmem:[#allocation5 + $0x8f0] sm:$0xff]
        %v644 = vld [vmem:[#allocation5 + $0x8f8] sm:$0xff]
        %v645 = vld [vmem:[#allocation5 + $0x900] sm:$0xff]
        %v646 = vld [vmem:[#allocation5 + $0x908] sm:$0xff]
        %v647 = vld [vmem:[#allocation5 + $0x910] sm:$0xff]
        %v648 = vld [vmem:[#allocation5 + $0x918] sm:$0xff]
        %v649 = vld [vmem:[#allocation5 + $0x920] sm:$0xff]
        %v650 = vld [vmem:[#allocation5 + $0x928] sm:$0xff]
        %v651 = vld [vmem:[#allocation5 + $0x930] sm:$0xff]
        %v652 = vld [vmem:[#allocation5 + $0x938] sm:$0xff]
        %v653 = vld [vmem:[#allocation5 + $0x940] sm:$0xff]
        %v654 = vld [vmem:[#allocation5 + $0x948] sm:$0xff]
        %v655 = vld [vmem:[#allocation5 + $0x950] sm:$0xff]
        %v656 = vld [vmem:[#allocation5 + $0x958] sm:$0xff]
        %v657 = vld [vmem:[#allocation5 + $0x960] sm:$0xff]
        %v658 = vld [vmem:[#allocation5 + $0x968] sm:$0xff]
        %v659 = vld [vmem:[#allocation5 + $0x970] sm:$0xff]
        %v660 = vld [vmem:[#allocation5 + $0x978] sm:$0xff]
        %v661 = vld [vmem:[#allocation5 + $0x980] sm:$0xff]
        %v662 = vld [vmem:[#allocation5 + $0x988] sm:$0xff]
        %v663 = vld [vmem:[#allocation5 + $0x990] sm:$0xff]
        %v664 = vld [vmem:[#allocation5 + $0x998] sm:$0xff]
        %v665 = vld [vmem:[#allocation5 + $0x9a0] sm:$0xff]
        %v666 = vld [vmem:[#allocation5 + $0x9a8] sm:$0xff]
        %v667 = vld [vmem:[#allocation5 + $0x9b0] sm:$0xff]
        %v668 = vld [vmem:[#allocation5 + $0x9b8] sm:$0xff]
        %v669 = vld [vmem:[#allocation5 + $0x9c0] sm:$0xff]
        %v670 = vld [vmem:[#allocation5 + $0x9c8] sm:$0xff]
        %v671 = vld [vmem:[#allocation5 + $0x9d0] sm:$0xff]
        %v672 = vld [vmem:[#allocation5 + $0x9d8] sm:$0xff]
        %v673 = vld [vmem:[#allocation5 + $0x9e0] sm:$0xff]
        %v674 = vld [vmem:[#allocation5 + $0x9e8] sm:$0xff]
        %v675 = vld [vmem:[#allocation5 + $0x9f0] sm:$0xff]
        %v676 = vld [vmem:[#allocation5 + $0x9f8] sm:$0xff]
        %v677 = vld [vmem:[#allocation5 + $0xa00] sm:$0xff]
        %v678 = vld [vmem:[#allocation5 + $0xa08] sm:$0xff]
        %v679 = vld [vmem:[#allocation5 + $0xa10] sm:$0xff]
        %v680 = vld [vmem:[#allocation5 + $0xa18] sm:$0xff]
        %v681 = vld [vmem:[#allocation5 + $0xa20] sm:$0xff]
        %v682 = vld [vmem:[#allocation5 + $0xa28] sm:$0xff]
        %v683 = vld [vmem:[#allocation5 + $0xa30] sm:$0xff]
        %v684 = vld [vmem:[#allocation5 + $0xa38] sm:$0xff]
        %v685 = vld [vmem:[#allocation5 + $0xa40] sm:$0xff]
        %v686 = vld [vmem:[#allocation5 + $0xa48] sm:$0xff]
        %v687 = vld [vmem:[#allocation5 + $0xa50] sm:$0xff]
        %v688 = vld [vmem:[#allocation5 + $0xa58] sm:$0xff]
        %v689 = vld [vmem:[#allocation5 + $0xa60] sm:$0xff]
        %v690 = vld [vmem:[#allocation5 + $0xa68] sm:$0xff]
        %v691 = vld [vmem:[#allocation5 + $0xa70] sm:$0xff]
        %v692 = vld [vmem:[#allocation5 + $0xa78] sm:$0xff]
        %v693 = vld [vmem:[#allocation5 + $0xa80] sm:$0xff]
        %v694 = vld [vmem:[#allocation5 + $0xa88] sm:$0xff]
        %v695 = vld [vmem:[#allocation5 + $0xa90] sm:$0xff]
        %v696 = vld [vmem:[#allocation5 + $0xa98] sm:$0xff]
        %v697 = vld [vmem:[#allocation5 + $0xaa0] sm:$0xff]
        %v698 = vld [vmem:[#allocation5 + $0xaa8] sm:$0xff]
        %v699 = vld [vmem:[#allocation5 + $0xab0] sm:$0xff]
        %v700 = vld [vmem:[#allocation5 + $0xab8] sm:$0xff]
        %v701 = vld [vmem:[#allocation5 + $0xac0] sm:$0xff]
        %v702 = vld [vmem:[#allocation5 + $0xac8] sm:$0xff]
        %v703 = vld [vmem:[#allocation5 + $0xad0] sm:$0xff]
        %v704 = vld [vmem:[#allocation5 + $0xad8] sm:$0xff]
        %v705 = vld [vmem:[#allocation5 + $0xae0] sm:$0xff]
        %v706 = vld [vmem:[#allocation5 + $0xae8] sm:$0xff]
        %v707 = vld [vmem:[#allocation5 + $0xaf0] sm:$0xff]
        %v708 = vld [vmem:[#allocation5 + $0xaf8] sm:$0xff]
        %v709 = vld [vmem:[#allocation5 + $0xb00] sm:$0xff]
        %v710 = vld [vmem:[#allocation5 + $0xb08] sm:$0xff]
        %v711 = vld [vmem:[#allocation5 + $0xb10] sm:$0xff]
        %v712 = vld [vmem:[#allocation5 + $0xb18] sm:$0xff]
        %v713 = vld [vmem:[#allocation5 + $0xb20] sm:$0xff]
        %v714 = vld [vmem:[#allocation5 + $0xb28] sm:$0xff]
        %v715 = vld [vmem:[#allocation5 + $0xb30] sm:$0xff]
        %v716 = vld [vmem:[#allocation5 + $0xb38] sm:$0xff]
        %v717 = vld [vmem:[#allocation5 + $0xb40] sm:$0xff]
        %v718 = vld [vmem:[#allocation5 + $0xb48] sm:$0xff]
        %v719 = vld [vmem:[#allocation5 + $0xb50] sm:$0xff]
        %v720 = vld [vmem:[#allocation5 + $0xb58] sm:$0xff]
        %v721 = vld [vmem:[#allocation5 + $0xb60] sm:$0xff]
        %v722 = vld [vmem:[#allocation5 + $0xb68] sm:$0xff]
        %v723 = vld [vmem:[#allocation5 + $0xb70] sm:$0xff]
        %v724 = vld [vmem:[#allocation5 + $0xb78] sm:$0xff]
        %v725 = vld [vmem:[#allocation5 + $0xb80] sm:$0xff]
        %v726 = vld [vmem:[#allocation5 + $0xb88] sm:$0xff]
        %v727 = vld [vmem:[#allocation5 + $0xb90] sm:$0xff]
        %v728 = vld [vmem:[#allocation5 + $0xb98] sm:$0xff]
        %v729 = vld [vmem:[#allocation5 + $0xba0] sm:$0xff]
        %v730 = vld [vmem:[#allocation5 + $0xba8] sm:$0xff]
        %v731 = vld [vmem:[#allocation5 + $0xbb0] sm:$0xff]
        %v732 = vld [vmem:[#allocation5 + $0xbb8] sm:$0xff]
        %v733 = vld [vmem:[#allocation5 + $0xbc0] sm:$0xff]
        %v734 = vld [vmem:[#allocation5 + $0xbc8] sm:$0xff]
        %v735 = vld [vmem:[#allocation5 + $0xbd0] sm:$0xff]
        %v736 = vld [vmem:[#allocation5 + $0xbd8] sm:$0xff]
        %v737 = vld [vmem:[#allocation5 + $0xbe0] sm:$0xff]
        %v738 = vld [vmem:[#allocation5 + $0xbe8] sm:$0xff]
        %v739 = vld [vmem:[#allocation5 + $0xbf0] sm:$0xff]
        %v740 = vld [vmem:[#allocation5 + $0xbf8] sm:$0xff]
        %v741 = vld [vmem:[#allocation7] sm:$0xff]
        %v742 = vld [vmem:[#allocation7 + $0x8] sm:$0xf]
        %v745 = vlaneseq
        %v746 = vshrl.u32 %v745, 7
        %v747 = vsub.s32 0, %v746
        %v748 = vrot.slane %v741, %v747
        %v749 = vlaneseq
        %v750 = vshrl.u32 %v749, 7
        %v751 = vsub.s32 1, %v750
        %v752 = vrot.slane %v741, %v751
        %v753 = vlaneseq
        %v754 = vshrl.u32 %v753, 7
        %v755 = vsub.s32 2, %v754
        %v756 = vrot.slane %v741, %v755
        %v757 = vlaneseq
        %v758 = vshrl.u32 %v757, 7
        %v759 = vsub.s32 3, %v758
        %v760 = vrot.slane %v741, %v759
        %v761 = vlaneseq
        %v762 = vshrl.u32 %v761, 7
        %v763 = vsub.s32 4, %v762
        %v764 = vrot.slane %v741, %v763
        %v765 = vlaneseq
        %v766 = vshrl.u32 %v765, 7
        %v767 = vsub.s32 5, %v766
        %v768 = vrot.slane %v741, %v767
        %v769 = vlaneseq
        %v770 = vshrl.u32 %v769, 7
        %v771 = vsub.s32 6, %v770
        %v772 = vrot.slane %v741, %v771
        %v773 = vlaneseq
        %v774 = vshrl.u32 %v773, 7
        %v775 = vsub.s32 7, %v774
        %v776 = vrot.slane %v741, %v775
        %v777 = vlaneseq
        %v778 = vshrl.u32 %v777, 7
        %v779 = vsub.s32 0, %v778
        %v780 = vrot.slane %v742, %v779
        %v781 = vlaneseq
        %v782 = vshrl.u32 %v781, 7
        %v783 = vsub.s32 1, %v782
        %v784 = vrot.slane %v742, %v783
        %v785 = vlaneseq
        %v786 = vshrl.u32 %v785, 7
        %v787 = vsub.s32 2, %v786
        %v788 = vrot.slane %v742, %v787
        %v789 = vlaneseq
        %v790 = vshrl.u32 %v789, 7
        %v791 = vsub.s32 3, %v790
        %v792 = vrot.slane %v742, %v791
        %v869 = vunpack.c.l.b16 %v293
        %v870 = vunpack.c.h.b16 %v293
        %v871 = vunpack.c.l.b16 %v294
        %v872 = vunpack.c.h.b16 %v294
        %v873 = vunpack.c.l.b16 %v295
        %v874 = vunpack.c.h.b16 %v295
        %v875 = vunpack.c.l.b16 %v296
        %v876 = vunpack.c.h.b16 %v296
        %v877 = vunpack.c.l.b16 %v297
        %v878 = vunpack.c.h.b16 %v297
        %v879 = vunpack.c.l.b16 %v298
        %v880 = vunpack.c.h.b16 %v298
        %v881 = vunpack.c.l.b16 %v299
        %v882 = vunpack.c.h.b16 %v299
        %v883 = vunpack.c.l.b16 %v300
        %v884 = vunpack.c.h.b16 %v300
        %v885 = vunpack.c.l.b16 %v301
        %v886 = vunpack.c.h.b16 %v301
        %v887 = vunpack.c.l.b16 %v302
        %v888 = vunpack.c.h.b16 %v302
        %v889 = vunpack.c.l.b16 %v303
        %v890 = vunpack.c.h.b16 %v303
        %v891 = vunpack.c.l.b16 %v304
        %v892 = vunpack.c.h.b16 %v304
        %v893 = vunpack.c.l.b16 %v305
        %v894 = vunpack.c.h.b16 %v305
        %v895 = vunpack.c.l.b16 %v306
        %v896 = vunpack.c.h.b16 %v306
        %v897 = vunpack.c.l.b16 %v307
        %v898 = vunpack.c.h.b16 %v307
        %v899 = vunpack.c.l.b16 %v308
        %v900 = vunpack.c.h.b16 %v308
        %v901 = vunpack.c.l.b16 %v309
        %v902 = vunpack.c.h.b16 %v309
        %v903 = vunpack.c.l.b16 %v310
        %v904 = vunpack.c.h.b16 %v310
        %v905 = vunpack.c.l.b16 %v311
        %v906 = vunpack.c.h.b16 %v311
        %v907 = vunpack.c.l.b16 %v312
        %v908 = vunpack.c.h.b16 %v312
        %v909 = vunpack.c.l.b16 %v313
        %v910 = vunpack.c.h.b16 %v313
        %v911 = vunpack.c.l.b16 %v314
        %v912 = vunpack.c.h.b16 %v314
        %v913 = vunpack.c.l.b16 %v315
        %v914 = vunpack.c.h.b16 %v315
        %v915 = vunpack.c.l.b16 %v316
        %v916 = vunpack.c.h.b16 %v316
        %v917 = vunpack.c.l.b16 %v317
        %v918 = vunpack.c.h.b16 %v317
        %v919 = vunpack.c.l.b16 %v318
        %v920 = vunpack.c.h.b16 %v318
        %v921 = vunpack.c.l.b16 %v319
        %v922 = vunpack.c.h.b16 %v319
        %v923 = vunpack.c.l.b16 %v320
        %v924 = vunpack.c.h.b16 %v320
        %v925 = vunpack.c.l.b16 %v321
        %v926 = vunpack.c.h.b16 %v321
        %v927 = vunpack.c.l.b16 %v322
        %v928 = vunpack.c.h.b16 %v322
        %v929 = vunpack.c.l.b16 %v323
        %v930 = vunpack.c.h.b16 %v323
        %v931 = vunpack.c.l.b16 %v324
        %v932 = vunpack.c.h.b16 %v324
        %v933 = vunpack.c.l.b16 %v325
        %v934 = vunpack.c.h.b16 %v325
        %v935 = vunpack.c.l.b16 %v326
        %v936 = vunpack.c.h.b16 %v326
        %v937 = vunpack.c.l.b16 %v327
        %v938 = vunpack.c.h.b16 %v327
        %v939 = vunpack.c.l.b16 %v328
        %v940 = vunpack.c.h.b16 %v328
        %v941 = vunpack.c.l.b16 %v329
        %v942 = vunpack.c.h.b16 %v329
        %v943 = vunpack.c.l.b16 %v330
        %v944 = vunpack.c.h.b16 %v330
        %v945 = vunpack.c.l.b16 %v331
        %v946 = vunpack.c.h.b16 %v331
        %v947 = vunpack.c.l.b16 %v332
        %v948 = vunpack.c.h.b16 %v332
        %v949 = vunpack.c.l.b16 %v333
        %v950 = vunpack.c.h.b16 %v333
        %v951 = vunpack.c.l.b16 %v334
        %v952 = vunpack.c.h.b16 %v334
        %v953 = vunpack.c.l.b16 %v335
        %v954 = vunpack.c.h.b16 %v335
        %v955 = vunpack.c.l.b16 %v336
        %v956 = vunpack.c.h.b16 %v336
        %v957 = vunpack.c.l.b16 %v337
        %v958 = vunpack.c.h.b16 %v337
        %v959 = vunpack.c.l.b16 %v338
        %v960 = vunpack.c.h.b16 %v338
        %v961 = vunpack.c.l.b16 %v339
        %v962 = vunpack.c.h.b16 %v339
        %v963 = vunpack.c.l.b16 %v340
        %v964 = vunpack.c.h.b16 %v340
        %v965 = vunpack.c.l.b16 %v341
        %v966 = vunpack.c.h.b16 %v341
        %v967 = vunpack.c.l.b16 %v342
        %v968 = vunpack.c.h.b16 %v342
        %v969 = vunpack.c.l.b16 %v343
        %v970 = vunpack.c.h.b16 %v343
        %v971 = vunpack.c.l.b16 %v344
        %v972 = vunpack.c.h.b16 %v344
        %v973 = vunpack.c.l.b16 %v345
        %v974 = vunpack.c.h.b16 %v345
        %v975 = vunpack.c.l.b16 %v346
        %v976 = vunpack.c.h.b16 %v346
        %v977 = vunpack.c.l.b16 %v347
        %v978 = vunpack.c.h.b16 %v347
        %v979 = vunpack.c.l.b16 %v348
        %v980 = vunpack.c.h.b16 %v348
        %v981 = vunpack.c.l.b16 %v349
        %v982 = vunpack.c.h.b16 %v349
        %v983 = vunpack.c.l.b16 %v350
        %v984 = vunpack.c.h.b16 %v350
        %v985 = vunpack.c.l.b16 %v351
        %v986 = vunpack.c.h.b16 %v351
        %v987 = vunpack.c.l.b16 %v352
        %v988 = vunpack.c.h.b16 %v352
        %v989 = vunpack.c.l.b16 %v353
        %v990 = vunpack.c.h.b16 %v353
        %v991 = vunpack.c.l.b16 %v354
        %v992 = vunpack.c.h.b16 %v354
        %v993 = vunpack.c.l.b16 %v355
        %v994 = vunpack.c.h.b16 %v355
        %v995 = vunpack.c.l.b16 %v356
        %v996 = vunpack.c.h.b16 %v356
        %v997 = vpack.c.b16 %v873, %v869
        %v998 = vpack.c.b16 %v874, %v870
        %v999 = vpack.c.b16 %v875, %v871
        %v1000 = vpack.c.b16 %v876, %v872
        %v1001 = vpack.c.b16 %v881, %v877
        %v1002 = vpack.c.b16 %v882, %v878
        %v1003 = vpack.c.b16 %v883, %v879
        %v1004 = vpack.c.b16 %v884, %v880
        %v1005 = vpack.c.b16 %v889, %v885
        %v1006 = vpack.c.b16 %v890, %v886
        %v1007 = vpack.c.b16 %v891, %v887
        %v1008 = vpack.c.b16 %v892, %v888
        %v1009 = vpack.c.b16 %v897, %v893
        %v1010 = vpack.c.b16 %v898, %v894
        %v1011 = vpack.c.b16 %v899, %v895
        %v1012 = vpack.c.b16 %v900, %v896
        %v1013 = vpack.c.b16 %v905, %v901
        %v1014 = vpack.c.b16 %v906, %v902
        %v1015 = vpack.c.b16 %v907, %v903
        %v1016 = vpack.c.b16 %v908, %v904
        %v1017 = vpack.c.b16 %v913, %v909
        %v1018 = vpack.c.b16 %v914, %v910
        %v1019 = vpack.c.b16 %v915, %v911
        %v1020 = vpack.c.b16 %v916, %v912
        %v1021 = vpack.c.b16 %v921, %v917
        %v1022 = vpack.c.b16 %v922, %v918
        %v1023 = vpack.c.b16 %v923, %v919
        %v1024 = vpack.c.b16 %v924, %v920
        %v1025 = vpack.c.b16 %v929, %v925
        %v1026 = vpack.c.b16 %v930, %v926
        %v1027 = vpack.c.b16 %v931, %v927
        %v1028 = vpack.c.b16 %v932, %v928
        %v1029 = vpack.c.b16 %v937, %v933
        %v1030 = vpack.c.b16 %v938, %v934
        %v1031 = vpack.c.b16 %v939, %v935
        %v1032 = vpack.c.b16 %v940, %v936
        %v1033 = vpack.c.b16 %v945, %v941
        %v1034 = vpack.c.b16 %v946, %v942
        %v1035 = vpack.c.b16 %v947, %v943
        %v1036 = vpack.c.b16 %v948, %v944
        %v1037 = vpack.c.b16 %v953, %v949
        %v1038 = vpack.c.b16 %v954, %v950
        %v1039 = vpack.c.b16 %v955, %v951
        %v1040 = vpack.c.b16 %v956, %v952
        %v1041 = vpack.c.b16 %v961, %v957
        %v1042 = vpack.c.b16 %v962, %v958
        %v1043 = vpack.c.b16 %v963, %v959
        %v1044 = vpack.c.b16 %v964, %v960
        %v1045 = vpack.c.b16 %v969, %v965
        %v1046 = vpack.c.b16 %v970, %v966
        %v1047 = vpack.c.b16 %v971, %v967
        %v1048 = vpack.c.b16 %v972, %v968
        %v1049 = vpack.c.b16 %v977, %v973
        %v1050 = vpack.c.b16 %v978, %v974
        %v1051 = vpack.c.b16 %v979, %v975
        %v1052 = vpack.c.b16 %v980, %v976
        %v1053 = vpack.c.b16 %v985, %v981
        %v1054 = vpack.c.b16 %v986, %v982
        %v1055 = vpack.c.b16 %v987, %v983
        %v1056 = vpack.c.b16 %v988, %v984
        %v1057 = vpack.c.b16 %v993, %v989
        %v1058 = vpack.c.b16 %v994, %v990
        %v1059 = vpack.c.b16 %v995, %v991
        %v1060 = vpack.c.b16 %v996, %v992
        %v1509 = vunpack.c.l.b16 %v357
        %v1510 = vunpack.c.h.b16 %v357
        %v1511 = vunpack.c.l.b16 %v358
        %v1512 = vunpack.c.h.b16 %v358
        %v1513 = vunpack.c.l.b16 %v359
        %v1514 = vunpack.c.h.b16 %v359
        %v1515 = vunpack.c.l.b16 %v360
        %v1516 = vunpack.c.h.b16 %v360
        %v1517 = vunpack.c.l.b16 %v361
        %v1518 = vunpack.c.h.b16 %v361
        %v1519 = vunpack.c.l.b16 %v362
        %v1520 = vunpack.c.h.b16 %v362
        %v1521 = vunpack.c.l.b16 %v363
        %v1522 = vunpack.c.h.b16 %v363
        %v1523 = vunpack.c.l.b16 %v364
        %v1524 = vunpack.c.h.b16 %v364
        %v1525 = vunpack.c.l.b16 %v365
        %v1526 = vunpack.c.h.b16 %v365
        %v1527 = vunpack.c.l.b16 %v366
        %v1528 = vunpack.c.h.b16 %v366
        %v1529 = vunpack.c.l.b16 %v367
        %v1530 = vunpack.c.h.b16 %v367
        %v1531 = vunpack.c.l.b16 %v368
        %v1532 = vunpack.c.h.b16 %v368
        %v1533 = vunpack.c.l.b16 %v369
        %v1534 = vunpack.c.h.b16 %v369
        %v1535 = vunpack.c.l.b16 %v370
        %v1536 = vunpack.c.h.b16 %v370
        %v1537 = vunpack.c.l.b16 %v371
        %v1538 = vunpack.c.h.b16 %v371
        %v1539 = vunpack.c.l.b16 %v372
        %v1540 = vunpack.c.h.b16 %v372
        %v1541 = vunpack.c.l.b16 %v373
        %v1542 = vunpack.c.h.b16 %v373
        %v1543 = vunpack.c.l.b16 %v374
        %v1544 = vunpack.c.h.b16 %v374
        %v1545 = vunpack.c.l.b16 %v375
        %v1546 = vunpack.c.h.b16 %v375
        %v1547 = vunpack.c.l.b16 %v376
        %v1548 = vunpack.c.h.b16 %v376
        %v1549 = vunpack.c.l.b16 %v377
        %v1550 = vunpack.c.h.b16 %v377
        %v1551 = vunpack.c.l.b16 %v378
        %v1552 = vunpack.c.h.b16 %v378
        %v1553 = vunpack.c.l.b16 %v379
        %v1554 = vunpack.c.h.b16 %v379
        %v1555 = vunpack.c.l.b16 %v380
        %v1556 = vunpack.c.h.b16 %v380
        %v1557 = vunpack.c.l.b16 %v381
        %v1558 = vunpack.c.h.b16 %v381
        %v1559 = vunpack.c.l.b16 %v382
        %v1560 = vunpack.c.h.b16 %v382
        %v1561 = vunpack.c.l.b16 %v383
        %v1562 = vunpack.c.h.b16 %v383
        %v1563 = vunpack.c.l.b16 %v384
        %v1564 = vunpack.c.h.b16 %v384
        %v1565 = vunpack.c.l.b16 %v385
        %v1566 = vunpack.c.h.b16 %v385
        %v1567 = vunpack.c.l.b16 %v386
        %v1568 = vunpack.c.h.b16 %v386
        %v1569 = vunpack.c.l.b16 %v387
        %v1570 = vunpack.c.h.b16 %v387
        %v1571 = vunpack.c.l.b16 %v388
        %v1572 = vunpack.c.h.b16 %v388
        %v1573 = vunpack.c.l.b16 %v389
        %v1574 = vunpack.c.h.b16 %v389
        %v1575 = vunpack.c.l.b16 %v390
        %v1576 = vunpack.c.h.b16 %v390
        %v1577 = vunpack.c.l.b16 %v391
        %v1578 = vunpack.c.h.b16 %v391
        %v1579 = vunpack.c.l.b16 %v392
        %v1580 = vunpack.c.h.b16 %v392
        %v1581 = vunpack.c.l.b16 %v393
        %v1582 = vunpack.c.h.b16 %v393
        %v1583 = vunpack.c.l.b16 %v394
        %v1584 = vunpack.c.h.b16 %v394
        %v1585 = vunpack.c.l.b16 %v395
        %v1586 = vunpack.c.h.b16 %v395
        %v1587 = vunpack.c.l.b16 %v396
        %v1588 = vunpack.c.h.b16 %v396
        %v1589 = vunpack.c.l.b16 %v397
        %v1590 = vunpack.c.h.b16 %v397
        %v1591 = vunpack.c.l.b16 %v398
        %v1592 = vunpack.c.h.b16 %v398
        %v1593 = vunpack.c.l.b16 %v399
        %v1594 = vunpack.c.h.b16 %v399
        %v1595 = vunpack.c.l.b16 %v400
        %v1596 = vunpack.c.h.b16 %v400
        %v1597 = vunpack.c.l.b16 %v401
        %v1598 = vunpack.c.h.b16 %v401
        %v1599 = vunpack.c.l.b16 %v402
        %v1600 = vunpack.c.h.b16 %v402
        %v1601 = vunpack.c.l.b16 %v403
        %v1602 = vunpack.c.h.b16 %v403
        %v1603 = vunpack.c.l.b16 %v404
        %v1604 = vunpack.c.h.b16 %v404
        %v1605 = vunpack.c.l.b16 %v405
        %v1606 = vunpack.c.h.b16 %v405
        %v1607 = vunpack.c.l.b16 %v406
        %v1608 = vunpack.c.h.b16 %v406
        %v1609 = vunpack.c.l.b16 %v407
        %v1610 = vunpack.c.h.b16 %v407
        %v1611 = vunpack.c.l.b16 %v408
        %v1612 = vunpack.c.h.b16 %v408
        %v1613 = vunpack.c.l.b16 %v409
        %v1614 = vunpack.c.h.b16 %v409
        %v1615 = vunpack.c.l.b16 %v410
        %v1616 = vunpack.c.h.b16 %v410
        %v1617 = vunpack.c.l.b16 %v411
        %v1618 = vunpack.c.h.b16 %v411
        %v1619 = vunpack.c.l.b16 %v412
        %v1620 = vunpack.c.h.b16 %v412
        %v1621 = vunpack.c.l.b16 %v413
        %v1622 = vunpack.c.h.b16 %v413
        %v1623 = vunpack.c.l.b16 %v414
        %v1624 = vunpack.c.h.b16 %v414
        %v1625 = vunpack.c.l.b16 %v415
        %v1626 = vunpack.c.h.b16 %v415
        %v1627 = vunpack.c.l.b16 %v416
        %v1628 = vunpack.c.h.b16 %v416
        %v1629 = vunpack.c.l.b16 %v417
        %v1630 = vunpack.c.h.b16 %v417
        %v1631 = vunpack.c.l.b16 %v418
        %v1632 = vunpack.c.h.b16 %v418
        %v1633 = vunpack.c.l.b16 %v419
        %v1634 = vunpack.c.h.b16 %v419
        %v1635 = vunpack.c.l.b16 %v420
        %v1636 = vunpack.c.h.b16 %v420
        %v1637 = vunpack.c.l.b16 %v421
        %v1638 = vunpack.c.h.b16 %v421
        %v1639 = vunpack.c.l.b16 %v422
        %v1640 = vunpack.c.h.b16 %v422
        %v1641 = vunpack.c.l.b16 %v423
        %v1642 = vunpack.c.h.b16 %v423
        %v1643 = vunpack.c.l.b16 %v424
        %v1644 = vunpack.c.h.b16 %v424
        %v1645 = vunpack.c.l.b16 %v425
        %v1646 = vunpack.c.h.b16 %v425
        %v1647 = vunpack.c.l.b16 %v426
        %v1648 = vunpack.c.h.b16 %v426
        %v1649 = vunpack.c.l.b16 %v427
        %v1650 = vunpack.c.h.b16 %v427
        %v1651 = vunpack.c.l.b16 %v428
        %v1652 = vunpack.c.h.b16 %v428
        %v1653 = vunpack.c.l.b16 %v429
        %v1654 = vunpack.c.h.b16 %v429
        %v1655 = vunpack.c.l.b16 %v430
        %v1656 = vunpack.c.h.b16 %v430
        %v1657 = vunpack.c.l.b16 %v431
        %v1658 = vunpack.c.h.b16 %v431
        %v1659 = vunpack.c.l.b16 %v432
        %v1660 = vunpack.c.h.b16 %v432
        %v1661 = vunpack.c.l.b16 %v433
        %v1662 = vunpack.c.h.b16 %v433
        %v1663 = vunpack.c.l.b16 %v434
        %v1664 = vunpack.c.h.b16 %v434
        %v1665 = vunpack.c.l.b16 %v435
        %v1666 = vunpack.c.h.b16 %v435
        %v1667 = vunpack.c.l.b16 %v436
        %v1668 = vunpack.c.h.b16 %v436
        %v1669 = vunpack.c.l.b16 %v437
        %v1670 = vunpack.c.h.b16 %v437
        %v1671 = vunpack.c.l.b16 %v438
        %v1672 = vunpack.c.h.b16 %v438
        %v1673 = vunpack.c.l.b16 %v439
        %v1674 = vunpack.c.h.b16 %v439
        %v1675 = vunpack.c.l.b16 %v440
        %v1676 = vunpack.c.h.b16 %v440
        %v1677 = vunpack.c.l.b16 %v441
        %v1678 = vunpack.c.h.b16 %v441
        %v1679 = vunpack.c.l.b16 %v442
        %v1680 = vunpack.c.h.b16 %v442
        %v1681 = vunpack.c.l.b16 %v443
        %v1682 = vunpack.c.h.b16 %v443
        %v1683 = vunpack.c.l.b16 %v444
        %v1684 = vunpack.c.h.b16 %v444
        %v1685 = vunpack.c.l.b16 %v445
        %v1686 = vunpack.c.h.b16 %v445
        %v1687 = vunpack.c.l.b16 %v446
        %v1688 = vunpack.c.h.b16 %v446
        %v1689 = vunpack.c.l.b16 %v447
        %v1690 = vunpack.c.h.b16 %v447
        %v1691 = vunpack.c.l.b16 %v448
        %v1692 = vunpack.c.h.b16 %v448
        %v1693 = vunpack.c.l.b16 %v449
        %v1694 = vunpack.c.h.b16 %v449
        %v1695 = vunpack.c.l.b16 %v450
        %v1696 = vunpack.c.h.b16 %v450
        %v1697 = vunpack.c.l.b16 %v451
        %v1698 = vunpack.c.h.b16 %v451
        %v1699 = vunpack.c.l.b16 %v452
        %v1700 = vunpack.c.h.b16 %v452
        %v1701 = vunpack.c.l.b16 %v453
        %v1702 = vunpack.c.h.b16 %v453
        %v1703 = vunpack.c.l.b16 %v454
        %v1704 = vunpack.c.h.b16 %v454
        %v1705 = vunpack.c.l.b16 %v455
        %v1706 = vunpack.c.h.b16 %v455
        %v1707 = vunpack.c.l.b16 %v456
        %v1708 = vunpack.c.h.b16 %v456
        %v1709 = vunpack.c.l.b16 %v457
        %v1710 = vunpack.c.h.b16 %v457
        %v1711 = vunpack.c.l.b16 %v458
        %v1712 = vunpack.c.h.b16 %v458
        %v1713 = vunpack.c.l.b16 %v459
        %v1714 = vunpack.c.h.b16 %v459
        %v1715 = vunpack.c.l.b16 %v460
        %v1716 = vunpack.c.h.b16 %v460
        %v1717 = vunpack.c.l.b16 %v461
        %v1718 = vunpack.c.h.b16 %v461
        %v1719 = vunpack.c.l.b16 %v462
        %v1720 = vunpack.c.h.b16 %v462
        %v1721 = vunpack.c.l.b16 %v463
        %v1722 = vunpack.c.h.b16 %v463
        %v1723 = vunpack.c.l.b16 %v464
        %v1724 = vunpack.c.h.b16 %v464
        %v1725 = vunpack.c.l.b16 %v465
        %v1726 = vunpack.c.h.b16 %v465
        %v1727 = vunpack.c.l.b16 %v466
        %v1728 = vunpack.c.h.b16 %v466
        %v1729 = vunpack.c.l.b16 %v467
        %v1730 = vunpack.c.h.b16 %v467
        %v1731 = vunpack.c.l.b16 %v468
        %v1732 = vunpack.c.h.b16 %v468
        %v1733 = vunpack.c.l.b16 %v469
        %v1734 = vunpack.c.h.b16 %v469
        %v1735 = vunpack.c.l.b16 %v470
        %v1736 = vunpack.c.h.b16 %v470
        %v1737 = vunpack.c.l.b16 %v471
        %v1738 = vunpack.c.h.b16 %v471
        %v1739 = vunpack.c.l.b16 %v472
        %v1740 = vunpack.c.h.b16 %v472
        %v1741 = vunpack.c.l.b16 %v473
        %v1742 = vunpack.c.h.b16 %v473
        %v1743 = vunpack.c.l.b16 %v474
        %v1744 = vunpack.c.h.b16 %v474
        %v1745 = vunpack.c.l.b16 %v475
        %v1746 = vunpack.c.h.b16 %v475
        %v1747 = vunpack.c.l.b16 %v476
        %v1748 = vunpack.c.h.b16 %v476
        %v1749 = vunpack.c.l.b16 %v477
        %v1750 = vunpack.c.h.b16 %v477
        %v1751 = vunpack.c.l.b16 %v478
        %v1752 = vunpack.c.h.b16 %v478
        %v1753 = vunpack.c.l.b16 %v479
        %v1754 = vunpack.c.h.b16 %v479
        %v1755 = vunpack.c.l.b16 %v480
        %v1756 = vunpack.c.h.b16 %v480
        %v1757 = vunpack.c.l.b16 %v481
        %v1758 = vunpack.c.h.b16 %v481
        %v1759 = vunpack.c.l.b16 %v482
        %v1760 = vunpack.c.h.b16 %v482
        %v1761 = vunpack.c.l.b16 %v483
        %v1762 = vunpack.c.h.b16 %v483
        %v1763 = vunpack.c.l.b16 %v484
        %v1764 = vunpack.c.h.b16 %v484
        %v1765 = vunpack.c.l.b16 %v485
        %v1766 = vunpack.c.h.b16 %v485
        %v1767 = vunpack.c.l.b16 %v486
        %v1768 = vunpack.c.h.b16 %v486
        %v1769 = vunpack.c.l.b16 %v487
        %v1770 = vunpack.c.h.b16 %v487
        %v1771 = vunpack.c.l.b16 %v488
        %v1772 = vunpack.c.h.b16 %v488
        %v1773 = vunpack.c.l.b16 %v489
        %v1774 = vunpack.c.h.b16 %v489
        %v1775 = vunpack.c.l.b16 %v490
        %v1776 = vunpack.c.h.b16 %v490
        %v1777 = vunpack.c.l.b16 %v491
        %v1778 = vunpack.c.h.b16 %v491
        %v1779 = vunpack.c.l.b16 %v492
        %v1780 = vunpack.c.h.b16 %v492
        %v1781 = vunpack.c.l.b16 %v493
        %v1782 = vunpack.c.h.b16 %v493
        %v1783 = vunpack.c.l.b16 %v494
        %v1784 = vunpack.c.h.b16 %v494
        %v1785 = vunpack.c.l.b16 %v495
        %v1786 = vunpack.c.h.b16 %v495
        %v1787 = vunpack.c.l.b16 %v496
        %v1788 = vunpack.c.h.b16 %v496
        %v1789 = vunpack.c.l.b16 %v497
        %v1790 = vunpack.c.h.b16 %v497
        %v1791 = vunpack.c.l.b16 %v498
        %v1792 = vunpack.c.h.b16 %v498
        %v1793 = vunpack.c.l.b16 %v499
        %v1794 = vunpack.c.h.b16 %v499
        %v1795 = vunpack.c.l.b16 %v500
        %v1796 = vunpack.c.h.b16 %v500
        %v1797 = vunpack.c.l.b16 %v501
        %v1798 = vunpack.c.h.b16 %v501
        %v1799 = vunpack.c.l.b16 %v502
        %v1800 = vunpack.c.h.b16 %v502
        %v1801 = vunpack.c.l.b16 %v503
        %v1802 = vunpack.c.h.b16 %v503
        %v1803 = vunpack.c.l.b16 %v504
        %v1804 = vunpack.c.h.b16 %v504
        %v1805 = vunpack.c.l.b16 %v505
        %v1806 = vunpack.c.h.b16 %v505
        %v1807 = vunpack.c.l.b16 %v506
        %v1808 = vunpack.c.h.b16 %v506
        %v1809 = vunpack.c.l.b16 %v507
        %v1810 = vunpack.c.h.b16 %v507
        %v1811 = vunpack.c.l.b16 %v508
        %v1812 = vunpack.c.h.b16 %v508
        %v1813 = vunpack.c.l.b16 %v509
        %v1814 = vunpack.c.h.b16 %v509
        %v1815 = vunpack.c.l.b16 %v510
        %v1816 = vunpack.c.h.b16 %v510
        %v1817 = vunpack.c.l.b16 %v511
        %v1818 = vunpack.c.h.b16 %v511
        %v1819 = vunpack.c.l.b16 %v512
        %v1820 = vunpack.c.h.b16 %v512
        %v1821 = vunpack.c.l.b16 %v513
        %v1822 = vunpack.c.h.b16 %v513
        %v1823 = vunpack.c.l.b16 %v514
        %v1824 = vunpack.c.h.b16 %v514
        %v1825 = vunpack.c.l.b16 %v515
        %v1826 = vunpack.c.h.b16 %v515
        %v1827 = vunpack.c.l.b16 %v516
        %v1828 = vunpack.c.h.b16 %v516
        %v1829 = vunpack.c.l.b16 %v517
        %v1830 = vunpack.c.h.b16 %v517
        %v1831 = vunpack.c.l.b16 %v518
        %v1832 = vunpack.c.h.b16 %v518
        %v1833 = vunpack.c.l.b16 %v519
        %v1834 = vunpack.c.h.b16 %v519
        %v1835 = vunpack.c.l.b16 %v520
        %v1836 = vunpack.c.h.b16 %v520
        %v1837 = vunpack.c.l.b16 %v521
        %v1838 = vunpack.c.h.b16 %v521
        %v1839 = vunpack.c.l.b16 %v522
        %v1840 = vunpack.c.h.b16 %v522
        %v1841 = vunpack.c.l.b16 %v523
        %v1842 = vunpack.c.h.b16 %v523
        %v1843 = vunpack.c.l.b16 %v524
        %v1844 = vunpack.c.h.b16 %v524
        %v1845 = vunpack.c.l.b16 %v525
        %v1846 = vunpack.c.h.b16 %v525
        %v1847 = vunpack.c.l.b16 %v526
        %v1848 = vunpack.c.h.b16 %v526
        %v1849 = vunpack.c.l.b16 %v527
        %v1850 = vunpack.c.h.b16 %v527
        %v1851 = vunpack.c.l.b16 %v528
        %v1852 = vunpack.c.h.b16 %v528
        %v1853 = vunpack.c.l.b16 %v529
        %v1854 = vunpack.c.h.b16 %v529
        %v1855 = vunpack.c.l.b16 %v530
        %v1856 = vunpack.c.h.b16 %v530
        %v1857 = vunpack.c.l.b16 %v531
        %v1858 = vunpack.c.h.b16 %v531
        %v1859 = vunpack.c.l.b16 %v532
        %v1860 = vunpack.c.h.b16 %v532
        %v1861 = vunpack.c.l.b16 %v533
        %v1862 = vunpack.c.h.b16 %v533
        %v1863 = vunpack.c.l.b16 %v534
        %v1864 = vunpack.c.h.b16 %v534
        %v1865 = vunpack.c.l.b16 %v535
        %v1866 = vunpack.c.h.b16 %v535
        %v1867 = vunpack.c.l.b16 %v536
        %v1868 = vunpack.c.h.b16 %v536
        %v1869 = vunpack.c.l.b16 %v537
        %v1870 = vunpack.c.h.b16 %v537
        %v1871 = vunpack.c.l.b16 %v538
        %v1872 = vunpack.c.h.b16 %v538
        %v1873 = vunpack.c.l.b16 %v539
        %v1874 = vunpack.c.h.b16 %v539
        %v1875 = vunpack.c.l.b16 %v540
        %v1876 = vunpack.c.h.b16 %v540
        %v1877 = vunpack.c.l.b16 %v541
        %v1878 = vunpack.c.h.b16 %v541
        %v1879 = vunpack.c.l.b16 %v542
        %v1880 = vunpack.c.h.b16 %v542
        %v1881 = vunpack.c.l.b16 %v543
        %v1882 = vunpack.c.h.b16 %v543
        %v1883 = vunpack.c.l.b16 %v544
        %v1884 = vunpack.c.h.b16 %v544
        %v1885 = vunpack.c.l.b16 %v545
        %v1886 = vunpack.c.h.b16 %v545
        %v1887 = vunpack.c.l.b16 %v546
        %v1888 = vunpack.c.h.b16 %v546
        %v1889 = vunpack.c.l.b16 %v547
        %v1890 = vunpack.c.h.b16 %v547
        %v1891 = vunpack.c.l.b16 %v548
        %v1892 = vunpack.c.h.b16 %v548
        %v1893 = vunpack.c.l.b16 %v549
        %v1894 = vunpack.c.h.b16 %v549
        %v1895 = vunpack.c.l.b16 %v550
        %v1896 = vunpack.c.h.b16 %v550
        %v1897 = vunpack.c.l.b16 %v551
        %v1898 = vunpack.c.h.b16 %v551
        %v1899 = vunpack.c.l.b16 %v552
        %v1900 = vunpack.c.h.b16 %v552
        %v1901 = vunpack.c.l.b16 %v553
        %v1902 = vunpack.c.h.b16 %v553
        %v1903 = vunpack.c.l.b16 %v554
        %v1904 = vunpack.c.h.b16 %v554
        %v1905 = vunpack.c.l.b16 %v555
        %v1906 = vunpack.c.h.b16 %v555
        %v1907 = vunpack.c.l.b16 %v556
        %v1908 = vunpack.c.h.b16 %v556
        %v1909 = vunpack.c.l.b16 %v557
        %v1910 = vunpack.c.h.b16 %v557
        %v1911 = vunpack.c.l.b16 %v558
        %v1912 = vunpack.c.h.b16 %v558
        %v1913 = vunpack.c.l.b16 %v559
        %v1914 = vunpack.c.h.b16 %v559
        %v1915 = vunpack.c.l.b16 %v560
        %v1916 = vunpack.c.h.b16 %v560
        %v1917 = vunpack.c.l.b16 %v561
        %v1918 = vunpack.c.h.b16 %v561
        %v1919 = vunpack.c.l.b16 %v562
        %v1920 = vunpack.c.h.b16 %v562
        %v1921 = vunpack.c.l.b16 %v563
        %v1922 = vunpack.c.h.b16 %v563
        %v1923 = vunpack.c.l.b16 %v564
        %v1924 = vunpack.c.h.b16 %v564
        %v1925 = vunpack.c.l.b16 %v565
        %v1926 = vunpack.c.h.b16 %v565
        %v1927 = vunpack.c.l.b16 %v566
        %v1928 = vunpack.c.h.b16 %v566
        %v1929 = vunpack.c.l.b16 %v567
        %v1930 = vunpack.c.h.b16 %v567
        %v1931 = vunpack.c.l.b16 %v568
        %v1932 = vunpack.c.h.b16 %v568
        %v1933 = vunpack.c.l.b16 %v569
        %v1934 = vunpack.c.h.b16 %v569
        %v1935 = vunpack.c.l.b16 %v570
        %v1936 = vunpack.c.h.b16 %v570
        %v1937 = vunpack.c.l.b16 %v571
        %v1938 = vunpack.c.h.b16 %v571
        %v1939 = vunpack.c.l.b16 %v572
        %v1940 = vunpack.c.h.b16 %v572
        %v1941 = vunpack.c.l.b16 %v573
        %v1942 = vunpack.c.h.b16 %v573
        %v1943 = vunpack.c.l.b16 %v574
        %v1944 = vunpack.c.h.b16 %v574
        %v1945 = vunpack.c.l.b16 %v575
        %v1946 = vunpack.c.h.b16 %v575
        %v1947 = vunpack.c.l.b16 %v576
        %v1948 = vunpack.c.h.b16 %v576
        %v1949 = vunpack.c.l.b16 %v577
        %v1950 = vunpack.c.h.b16 %v577
        %v1951 = vunpack.c.l.b16 %v578
        %v1952 = vunpack.c.h.b16 %v578
        %v1953 = vunpack.c.l.b16 %v579
        %v1954 = vunpack.c.h.b16 %v579
        %v1955 = vunpack.c.l.b16 %v580
        %v1956 = vunpack.c.h.b16 %v580
        %v1957 = vunpack.c.l.b16 %v581
        %v1958 = vunpack.c.h.b16 %v581
        %v1959 = vunpack.c.l.b16 %v582
        %v1960 = vunpack.c.h.b16 %v582
        %v1961 = vunpack.c.l.b16 %v583
        %v1962 = vunpack.c.h.b16 %v583
        %v1963 = vunpack.c.l.b16 %v584
        %v1964 = vunpack.c.h.b16 %v584
        %v1965 = vunpack.c.l.b16 %v585
        %v1966 = vunpack.c.h.b16 %v585
        %v1967 = vunpack.c.l.b16 %v586
        %v1968 = vunpack.c.h.b16 %v586
        %v1969 = vunpack.c.l.b16 %v587
        %v1970 = vunpack.c.h.b16 %v587
        %v1971 = vunpack.c.l.b16 %v588
        %v1972 = vunpack.c.h.b16 %v588
        %v1973 = vunpack.c.l.b16 %v589
        %v1974 = vunpack.c.h.b16 %v589
        %v1975 = vunpack.c.l.b16 %v590
        %v1976 = vunpack.c.h.b16 %v590
        %v1977 = vunpack.c.l.b16 %v591
        %v1978 = vunpack.c.h.b16 %v591
        %v1979 = vunpack.c.l.b16 %v592
        %v1980 = vunpack.c.h.b16 %v592
        %v1981 = vunpack.c.l.b16 %v593
        %v1982 = vunpack.c.h.b16 %v593
        %v1983 = vunpack.c.l.b16 %v594
        %v1984 = vunpack.c.h.b16 %v594
        %v1985 = vunpack.c.l.b16 %v595
        %v1986 = vunpack.c.h.b16 %v595
        %v1987 = vunpack.c.l.b16 %v596
        %v1988 = vunpack.c.h.b16 %v596
        %v1989 = vunpack.c.l.b16 %v597
        %v1990 = vunpack.c.h.b16 %v597
        %v1991 = vunpack.c.l.b16 %v598
        %v1992 = vunpack.c.h.b16 %v598
        %v1993 = vunpack.c.l.b16 %v599
        %v1994 = vunpack.c.h.b16 %v599
        %v1995 = vunpack.c.l.b16 %v600
        %v1996 = vunpack.c.h.b16 %v600
        %v1997 = vunpack.c.l.b16 %v601
        %v1998 = vunpack.c.h.b16 %v601
        %v1999 = vunpack.c.l.b16 %v602
        %v2000 = vunpack.c.h.b16 %v602
        %v2001 = vunpack.c.l.b16 %v603
        %v2002 = vunpack.c.h.b16 %v603
        %v2003 = vunpack.c.l.b16 %v604
        %v2004 = vunpack.c.h.b16 %v604
        %v2005 = vunpack.c.l.b16 %v605
        %v2006 = vunpack.c.h.b16 %v605
        %v2007 = vunpack.c.l.b16 %v606
        %v2008 = vunpack.c.h.b16 %v606
        %v2009 = vunpack.c.l.b16 %v607
        %v2010 = vunpack.c.h.b16 %v607
        %v2011 = vunpack.c.l.b16 %v608
        %v2012 = vunpack.c.h.b16 %v608
        %v2013 = vunpack.c.l.b16 %v609
        %v2014 = vunpack.c.h.b16 %v609
        %v2015 = vunpack.c.l.b16 %v610
        %v2016 = vunpack.c.h.b16 %v610
        %v2017 = vunpack.c.l.b16 %v611
        %v2018 = vunpack.c.h.b16 %v611
        %v2019 = vunpack.c.l.b16 %v612
        %v2020 = vunpack.c.h.b16 %v612
        %v2021 = vunpack.c.l.b16 %v613
        %v2022 = vunpack.c.h.b16 %v613
        %v2023 = vunpack.c.l.b16 %v614
        %v2024 = vunpack.c.h.b16 %v614
        %v2025 = vunpack.c.l.b16 %v615
        %v2026 = vunpack.c.h.b16 %v615
        %v2027 = vunpack.c.l.b16 %v616
        %v2028 = vunpack.c.h.b16 %v616
        %v2029 = vunpack.c.l.b16 %v617
        %v2030 = vunpack.c.h.b16 %v617
        %v2031 = vunpack.c.l.b16 %v618
        %v2032 = vunpack.c.h.b16 %v618
        %v2033 = vunpack.c.l.b16 %v619
        %v2034 = vunpack.c.h.b16 %v619
        %v2035 = vunpack.c.l.b16 %v620
        %v2036 = vunpack.c.h.b16 %v620
        %v2037 = vunpack.c.l.b16 %v621
        %v2038 = vunpack.c.h.b16 %v621
        %v2039 = vunpack.c.l.b16 %v622
        %v2040 = vunpack.c.h.b16 %v622
        %v2041 = vunpack.c.l.b16 %v623
        %v2042 = vunpack.c.h.b16 %v623
        %v2043 = vunpack.c.l.b16 %v624
        %v2044 = vunpack.c.h.b16 %v624
        %v2045 = vunpack.c.l.b16 %v625
        %v2046 = vunpack.c.h.b16 %v625
        %v2047 = vunpack.c.l.b16 %v626
        %v2048 = vunpack.c.h.b16 %v626
        %v2049 = vunpack.c.l.b16 %v627
        %v2050 = vunpack.c.h.b16 %v627
        %v2051 = vunpack.c.l.b16 %v628
        %v2052 = vunpack.c.h.b16 %v628
        %v2053 = vunpack.c.l.b16 %v629
        %v2054 = vunpack.c.h.b16 %v629
        %v2055 = vunpack.c.l.b16 %v630
        %v2056 = vunpack.c.h.b16 %v630
        %v2057 = vunpack.c.l.b16 %v631
        %v2058 = vunpack.c.h.b16 %v631
        %v2059 = vunpack.c.l.b16 %v632
        %v2060 = vunpack.c.h.b16 %v632
        %v2061 = vunpack.c.l.b16 %v633
        %v2062 = vunpack.c.h.b16 %v633
        %v2063 = vunpack.c.l.b16 %v634
        %v2064 = vunpack.c.h.b16 %v634
        %v2065 = vunpack.c.l.b16 %v635
        %v2066 = vunpack.c.h.b16 %v635
        %v2067 = vunpack.c.l.b16 %v636
        %v2068 = vunpack.c.h.b16 %v636
        %v2069 = vunpack.c.l.b16 %v637
        %v2070 = vunpack.c.h.b16 %v637
        %v2071 = vunpack.c.l.b16 %v638
        %v2072 = vunpack.c.h.b16 %v638
        %v2073 = vunpack.c.l.b16 %v639
        %v2074 = vunpack.c.h.b16 %v639
        %v2075 = vunpack.c.l.b16 %v640
        %v2076 = vunpack.c.h.b16 %v640
        %v2077 = vunpack.c.l.b16 %v641
        %v2078 = vunpack.c.h.b16 %v641
        %v2079 = vunpack.c.l.b16 %v642
        %v2080 = vunpack.c.h.b16 %v642
        %v2081 = vunpack.c.l.b16 %v643
        %v2082 = vunpack.c.h.b16 %v643
        %v2083 = vunpack.c.l.b16 %v644
        %v2084 = vunpack.c.h.b16 %v644
        %v2085 = vunpack.c.l.b16 %v645
        %v2086 = vunpack.c.h.b16 %v645
        %v2087 = vunpack.c.l.b16 %v646
        %v2088 = vunpack.c.h.b16 %v646
        %v2089 = vunpack.c.l.b16 %v647
        %v2090 = vunpack.c.h.b16 %v647
        %v2091 = vunpack.c.l.b16 %v648
        %v2092 = vunpack.c.h.b16 %v648
        %v2093 = vunpack.c.l.b16 %v649
        %v2094 = vunpack.c.h.b16 %v649
        %v2095 = vunpack.c.l.b16 %v650
        %v2096 = vunpack.c.h.b16 %v650
        %v2097 = vunpack.c.l.b16 %v651
        %v2098 = vunpack.c.h.b16 %v651
        %v2099 = vunpack.c.l.b16 %v652
        %v2100 = vunpack.c.h.b16 %v652
        %v2101 = vunpack.c.l.b16 %v653
        %v2102 = vunpack.c.h.b16 %v653
        %v2103 = vunpack.c.l.b16 %v654
        %v2104 = vunpack.c.h.b16 %v654
        %v2105 = vunpack.c.l.b16 %v655
        %v2106 = vunpack.c.h.b16 %v655
        %v2107 = vunpack.c.l.b16 %v656
        %v2108 = vunpack.c.h.b16 %v656
        %v2109 = vunpack.c.l.b16 %v657
        %v2110 = vunpack.c.h.b16 %v657
        %v2111 = vunpack.c.l.b16 %v658
        %v2112 = vunpack.c.h.b16 %v658
        %v2113 = vunpack.c.l.b16 %v659
        %v2114 = vunpack.c.h.b16 %v659
        %v2115 = vunpack.c.l.b16 %v660
        %v2116 = vunpack.c.h.b16 %v660
        %v2117 = vunpack.c.l.b16 %v661
        %v2118 = vunpack.c.h.b16 %v661
        %v2119 = vunpack.c.l.b16 %v662
        %v2120 = vunpack.c.h.b16 %v662
        %v2121 = vunpack.c.l.b16 %v663
        %v2122 = vunpack.c.h.b16 %v663
        %v2123 = vunpack.c.l.b16 %v664
        %v2124 = vunpack.c.h.b16 %v664
        %v2125 = vunpack.c.l.b16 %v665
        %v2126 = vunpack.c.h.b16 %v665
        %v2127 = vunpack.c.l.b16 %v666
        %v2128 = vunpack.c.h.b16 %v666
        %v2129 = vunpack.c.l.b16 %v667
        %v2130 = vunpack.c.h.b16 %v667
        %v2131 = vunpack.c.l.b16 %v668
        %v2132 = vunpack.c.h.b16 %v668
        %v2133 = vunpack.c.l.b16 %v669
        %v2134 = vunpack.c.h.b16 %v669
        %v2135 = vunpack.c.l.b16 %v670
        %v2136 = vunpack.c.h.b16 %v670
        %v2137 = vunpack.c.l.b16 %v671
        %v2138 = vunpack.c.h.b16 %v671
        %v2139 = vunpack.c.l.b16 %v672
        %v2140 = vunpack.c.h.b16 %v672
        %v2141 = vunpack.c.l.b16 %v673
        %v2142 = vunpack.c.h.b16 %v673
        %v2143 = vunpack.c.l.b16 %v674
        %v2144 = vunpack.c.h.b16 %v674
        %v2145 = vunpack.c.l.b16 %v675
        %v2146 = vunpack.c.h.b16 %v675
        %v2147 = vunpack.c.l.b16 %v676
        %v2148 = vunpack.c.h.b16 %v676
        %v2149 = vunpack.c.l.b16 %v677
        %v2150 = vunpack.c.h.b16 %v677
        %v2151 = vunpack.c.l.b16 %v678
        %v2152 = vunpack.c.h.b16 %v678
        %v2153 = vunpack.c.l.b16 %v679
        %v2154 = vunpack.c.h.b16 %v679
        %v2155 = vunpack.c.l.b16 %v680
        %v2156 = vunpack.c.h.b16 %v680
        %v2157 = vunpack.c.l.b16 %v681
        %v2158 = vunpack.c.h.b16 %v681
        %v2159 = vunpack.c.l.b16 %v682
        %v2160 = vunpack.c.h.b16 %v682
        %v2161 = vunpack.c.l.b16 %v683
        %v2162 = vunpack.c.h.b16 %v683
        %v2163 = vunpack.c.l.b16 %v684
        %v2164 = vunpack.c.h.b16 %v684
        %v2165 = vunpack.c.l.b16 %v685
        %v2166 = vunpack.c.h.b16 %v685
        %v2167 = vunpack.c.l.b16 %v686
        %v2168 = vunpack.c.h.b16 %v686
        %v2169 = vunpack.c.l.b16 %v687
        %v2170 = vunpack.c.h.b16 %v687
        %v2171 = vunpack.c.l.b16 %v688
        %v2172 = vunpack.c.h.b16 %v688
        %v2173 = vunpack.c.l.b16 %v689
        %v2174 = vunpack.c.h.b16 %v689
        %v2175 = vunpack.c.l.b16 %v690
        %v2176 = vunpack.c.h.b16 %v690
        %v2177 = vunpack.c.l.b16 %v691
        %v2178 = vunpack.c.h.b16 %v691
        %v2179 = vunpack.c.l.b16 %v692
        %v2180 = vunpack.c.h.b16 %v692
        %v2181 = vunpack.c.l.b16 %v693
        %v2182 = vunpack.c.h.b16 %v693
        %v2183 = vunpack.c.l.b16 %v694
        %v2184 = vunpack.c.h.b16 %v694
        %v2185 = vunpack.c.l.b16 %v695
        %v2186 = vunpack.c.h.b16 %v695
        %v2187 = vunpack.c.l.b16 %v696
        %v2188 = vunpack.c.h.b16 %v696
        %v2189 = vunpack.c.l.b16 %v697
        %v2190 = vunpack.c.h.b16 %v697
        %v2191 = vunpack.c.l.b16 %v698
        %v2192 = vunpack.c.h.b16 %v698
        %v2193 = vunpack.c.l.b16 %v699
        %v2194 = vunpack.c.h.b16 %v699
        %v2195 = vunpack.c.l.b16 %v700
        %v2196 = vunpack.c.h.b16 %v700
        %v2197 = vunpack.c.l.b16 %v701
        %v2198 = vunpack.c.h.b16 %v701
        %v2199 = vunpack.c.l.b16 %v702
        %v2200 = vunpack.c.h.b16 %v702
        %v2201 = vunpack.c.l.b16 %v703
        %v2202 = vunpack.c.h.b16 %v703
        %v2203 = vunpack.c.l.b16 %v704
        %v2204 = vunpack.c.h.b16 %v704
        %v2205 = vunpack.c.l.b16 %v705
        %v2206 = vunpack.c.h.b16 %v705
        %v2207 = vunpack.c.l.b16 %v706
        %v2208 = vunpack.c.h.b16 %v706
        %v2209 = vunpack.c.l.b16 %v707
        %v2210 = vunpack.c.h.b16 %v707
        %v2211 = vunpack.c.l.b16 %v708
        %v2212 = vunpack.c.h.b16 %v708
        %v2213 = vunpack.c.l.b16 %v709
        %v2214 = vunpack.c.h.b16 %v709
        %v2215 = vunpack.c.l.b16 %v710
        %v2216 = vunpack.c.h.b16 %v710
        %v2217 = vunpack.c.l.b16 %v711
        %v2218 = vunpack.c.h.b16 %v711
        %v2219 = vunpack.c.l.b16 %v712
        %v2220 = vunpack.c.h.b16 %v712
        %v2221 = vunpack.c.l.b16 %v713
        %v2222 = vunpack.c.h.b16 %v713
        %v2223 = vunpack.c.l.b16 %v714
        %v2224 = vunpack.c.h.b16 %v714
        %v2225 = vunpack.c.l.b16 %v715
        %v2226 = vunpack.c.h.b16 %v715
        %v2227 = vunpack.c.l.b16 %v716
        %v2228 = vunpack.c.h.b16 %v716
        %v2229 = vunpack.c.l.b16 %v717
        %v2230 = vunpack.c.h.b16 %v717
        %v2231 = vunpack.c.l.b16 %v718
        %v2232 = vunpack.c.h.b16 %v718
        %v2233 = vunpack.c.l.b16 %v719
        %v2234 = vunpack.c.h.b16 %v719
        %v2235 = vunpack.c.l.b16 %v720
        %v2236 = vunpack.c.h.b16 %v720
        %v2237 = vunpack.c.l.b16 %v721
        %v2238 = vunpack.c.h.b16 %v721
        %v2239 = vunpack.c.l.b16 %v722
        %v2240 = vunpack.c.h.b16 %v722
        %v2241 = vunpack.c.l.b16 %v723
        %v2242 = vunpack.c.h.b16 %v723
        %v2243 = vunpack.c.l.b16 %v724
        %v2244 = vunpack.c.h.b16 %v724
        %v2245 = vunpack.c.l.b16 %v725
        %v2246 = vunpack.c.h.b16 %v725
        %v2247 = vunpack.c.l.b16 %v726
        %v2248 = vunpack.c.h.b16 %v726
        %v2249 = vunpack.c.l.b16 %v727
        %v2250 = vunpack.c.h.b16 %v727
        %v2251 = vunpack.c.l.b16 %v728
        %v2252 = vunpack.c.h.b16 %v728
        %v2253 = vunpack.c.l.b16 %v729
        %v2254 = vunpack.c.h.b16 %v729
        %v2255 = vunpack.c.l.b16 %v730
        %v2256 = vunpack.c.h.b16 %v730
        %v2257 = vunpack.c.l.b16 %v731
        %v2258 = vunpack.c.h.b16 %v731
        %v2259 = vunpack.c.l.b16 %v732
        %v2260 = vunpack.c.h.b16 %v732
        %v2261 = vunpack.c.l.b16 %v733
        %v2262 = vunpack.c.h.b16 %v733
        %v2263 = vunpack.c.l.b16 %v734
        %v2264 = vunpack.c.h.b16 %v734
        %v2265 = vunpack.c.l.b16 %v735
        %v2266 = vunpack.c.h.b16 %v735
        %v2267 = vunpack.c.l.b16 %v736
        %v2268 = vunpack.c.h.b16 %v736
        %v2269 = vunpack.c.l.b16 %v737
        %v2270 = vunpack.c.h.b16 %v737
        %v2271 = vunpack.c.l.b16 %v738
        %v2272 = vunpack.c.h.b16 %v738
        %v2273 = vunpack.c.l.b16 %v739
        %v2274 = vunpack.c.h.b16 %v739
        %v2275 = vunpack.c.l.b16 %v740
        %v2276 = vunpack.c.h.b16 %v740
        %v2277 = vpack.c.b16 %v1521, %v1509
        %v2278 = vpack.c.b16 %v1522, %v1510
        %v2279 = vpack.c.b16 %v1523, %v1511
        %v2280 = vpack.c.b16 %v1524, %v1512
        %v2281 = vpack.c.b16 %v1525, %v1513
        %v2282 = vpack.c.b16 %v1526, %v1514
        %v2283 = vpack.c.b16 %v1527, %v1515
        %v2284 = vpack.c.b16 %v1528, %v1516
        %v2285 = vpack.c.b16 %v1529, %v1517
        %v2286 = vpack.c.b16 %v1530, %v1518
        %v2287 = vpack.c.b16 %v1531, %v1519
        %v2288 = vpack.c.b16 %v1532, %v1520
        %v2289 = vpack.c.b16 %v1545, %v1533
        %v2290 = vpack.c.b16 %v1546, %v1534
        %v2291 = vpack.c.b16 %v1547, %v1535
        %v2292 = vpack.c.b16 %v1548, %v1536
        %v2293 = vpack.c.b16 %v1549, %v1537
        %v2294 = vpack.c.b16 %v1550, %v1538
        %v2295 = vpack.c.b16 %v1551, %v1539
        %v2296 = vpack.c.b16 %v1552, %v1540
        %v2297 = vpack.c.b16 %v1553, %v1541
        %v2298 = vpack.c.b16 %v1554, %v1542
        %v2299 = vpack.c.b16 %v1555, %v1543
        %v2300 = vpack.c.b16 %v1556, %v1544
        %v2301 = vpack.c.b16 %v1569, %v1557
        %v2302 = vpack.c.b16 %v1570, %v1558
        %v2303 = vpack.c.b16 %v1571, %v1559
        %v2304 = vpack.c.b16 %v1572, %v1560
        %v2305 = vpack.c.b16 %v1573, %v1561
        %v2306 = vpack.c.b16 %v1574, %v1562
        %v2307 = vpack.c.b16 %v1575, %v1563
        %v2308 = vpack.c.b16 %v1576, %v1564
        %v2309 = vpack.c.b16 %v1577, %v1565
        %v2310 = vpack.c.b16 %v1578, %v1566
        %v2311 = vpack.c.b16 %v1579, %v1567
        %v2312 = vpack.c.b16 %v1580, %v1568
        %v2313 = vpack.c.b16 %v1593, %v1581
        %v2314 = vpack.c.b16 %v1594, %v1582
        %v2315 = vpack.c.b16 %v1595, %v1583
        %v2316 = vpack.c.b16 %v1596, %v1584
        %v2317 = vpack.c.b16 %v1597, %v1585
        %v2318 = vpack.c.b16 %v1598, %v1586
        %v2319 = vpack.c.b16 %v1599, %v1587
        %v2320 = vpack.c.b16 %v1600, %v1588
        %v2321 = vpack.c.b16 %v1601, %v1589
        %v2322 = vpack.c.b16 %v1602, %v1590
        %v2323 = vpack.c.b16 %v1603, %v1591
        %v2324 = vpack.c.b16 %v1604, %v1592
        %v2325 = vpack.c.b16 %v1617, %v1605
        %v2326 = vpack.c.b16 %v1618, %v1606
        %v2327 = vpack.c.b16 %v1619, %v1607
        %v2328 = vpack.c.b16 %v1620, %v1608
        %v2329 = vpack.c.b16 %v1621, %v1609
        %v2330 = vpack.c.b16 %v1622, %v1610
        %v2331 = vpack.c.b16 %v1623, %v1611
        %v2332 = vpack.c.b16 %v1624, %v1612
        %v2333 = vpack.c.b16 %v1625, %v1613
        %v2334 = vpack.c.b16 %v1626, %v1614
        %v2335 = vpack.c.b16 %v1627, %v1615
        %v2336 = vpack.c.b16 %v1628, %v1616
        %v2337 = vpack.c.b16 %v1641, %v1629
        %v2338 = vpack.c.b16 %v1642, %v1630
        %v2339 = vpack.c.b16 %v1643, %v1631
        %v2340 = vpack.c.b16 %v1644, %v1632
        %v2341 = vpack.c.b16 %v1645, %v1633
        %v2342 = vpack.c.b16 %v1646, %v1634
        %v2343 = vpack.c.b16 %v1647, %v1635
        %v2344 = vpack.c.b16 %v1648, %v1636
        %v2345 = vpack.c.b16 %v1649, %v1637
        %v2346 = vpack.c.b16 %v1650, %v1638
        %v2347 = vpack.c.b16 %v1651, %v1639
        %v2348 = vpack.c.b16 %v1652, %v1640
        %v2349 = vpack.c.b16 %v1665, %v1653
        %v2350 = vpack.c.b16 %v1666, %v1654
        %v2351 = vpack.c.b16 %v1667, %v1655
        %v2352 = vpack.c.b16 %v1668, %v1656
        %v2353 = vpack.c.b16 %v1669, %v1657
        %v2354 = vpack.c.b16 %v1670, %v1658
        %v2355 = vpack.c.b16 %v1671, %v1659
        %v2356 = vpack.c.b16 %v1672, %v1660
        %v2357 = vpack.c.b16 %v1673, %v1661
        %v2358 = vpack.c.b16 %v1674, %v1662
        %v2359 = vpack.c.b16 %v1675, %v1663
        %v2360 = vpack.c.b16 %v1676, %v1664
        %v2361 = vpack.c.b16 %v1689, %v1677
        %v2362 = vpack.c.b16 %v1690, %v1678
        %v2363 = vpack.c.b16 %v1691, %v1679
        %v2364 = vpack.c.b16 %v1692, %v1680
        %v2365 = vpack.c.b16 %v1693, %v1681
        %v2366 = vpack.c.b16 %v1694, %v1682
        %v2367 = vpack.c.b16 %v1695, %v1683
        %v2368 = vpack.c.b16 %v1696, %v1684
        %v2369 = vpack.c.b16 %v1697, %v1685
        %v2370 = vpack.c.b16 %v1698, %v1686
        %v2371 = vpack.c.b16 %v1699, %v1687
        %v2372 = vpack.c.b16 %v1700, %v1688
        %v2373 = vpack.c.b16 %v1713, %v1701
        %v2374 = vpack.c.b16 %v1714, %v1702
        %v2375 = vpack.c.b16 %v1715, %v1703
        %v2376 = vpack.c.b16 %v1716, %v1704
        %v2377 = vpack.c.b16 %v1717, %v1705
        %v2378 = vpack.c.b16 %v1718, %v1706
        %v2379 = vpack.c.b16 %v1719, %v1707
        %v2380 = vpack.c.b16 %v1720, %v1708
        %v2381 = vpack.c.b16 %v1721, %v1709
        %v2382 = vpack.c.b16 %v1722, %v1710
        %v2383 = vpack.c.b16 %v1723, %v1711
        %v2384 = vpack.c.b16 %v1724, %v1712
        %v2385 = vpack.c.b16 %v1737, %v1725
        %v2386 = vpack.c.b16 %v1738, %v1726
        %v2387 = vpack.c.b16 %v1739, %v1727
        %v2388 = vpack.c.b16 %v1740, %v1728
        %v2389 = vpack.c.b16 %v1741, %v1729
        %v2390 = vpack.c.b16 %v1742, %v1730
        %v2391 = vpack.c.b16 %v1743, %v1731
        %v2392 = vpack.c.b16 %v1744, %v1732
        %v2393 = vpack.c.b16 %v1745, %v1733
        %v2394 = vpack.c.b16 %v1746, %v1734
        %v2395 = vpack.c.b16 %v1747, %v1735
        %v2396 = vpack.c.b16 %v1748, %v1736
        %v2397 = vpack.c.b16 %v1761, %v1749
        %v2398 = vpack.c.b16 %v1762, %v1750
        %v2399 = vpack.c.b16 %v1763, %v1751
        %v2400 = vpack.c.b16 %v1764, %v1752
        %v2401 = vpack.c.b16 %v1765, %v1753
        %v2402 = vpack.c.b16 %v1766, %v1754
        %v2403 = vpack.c.b16 %v1767, %v1755
        %v2404 = vpack.c.b16 %v1768, %v1756
        %v2405 = vpack.c.b16 %v1769, %v1757
        %v2406 = vpack.c.b16 %v1770, %v1758
        %v2407 = vpack.c.b16 %v1771, %v1759
        %v2408 = vpack.c.b16 %v1772, %v1760
        %v2409 = vpack.c.b16 %v1785, %v1773
        %v2410 = vpack.c.b16 %v1786, %v1774
        %v2411 = vpack.c.b16 %v1787, %v1775
        %v2412 = vpack.c.b16 %v1788, %v1776
        %v2413 = vpack.c.b16 %v1789, %v1777
        %v2414 = vpack.c.b16 %v1790, %v1778
        %v2415 = vpack.c.b16 %v1791, %v1779
        %v2416 = vpack.c.b16 %v1792, %v1780
        %v2417 = vpack.c.b16 %v1793, %v1781
        %v2418 = vpack.c.b16 %v1794, %v1782
        %v2419 = vpack.c.b16 %v1795, %v1783
        %v2420 = vpack.c.b16 %v1796, %v1784
        %v2421 = vpack.c.b16 %v1809, %v1797
        %v2422 = vpack.c.b16 %v1810, %v1798
        %v2423 = vpack.c.b16 %v1811, %v1799
        %v2424 = vpack.c.b16 %v1812, %v1800
        %v2425 = vpack.c.b16 %v1813, %v1801
        %v2426 = vpack.c.b16 %v1814, %v1802
        %v2427 = vpack.c.b16 %v1815, %v1803
        %v2428 = vpack.c.b16 %v1816, %v1804
        %v2429 = vpack.c.b16 %v1817, %v1805
        %v2430 = vpack.c.b16 %v1818, %v1806
        %v2431 = vpack.c.b16 %v1819, %v1807
        %v2432 = vpack.c.b16 %v1820, %v1808
        %v2433 = vpack.c.b16 %v1833, %v1821
        %v2434 = vpack.c.b16 %v1834, %v1822
        %v2435 = vpack.c.b16 %v1835, %v1823
        %v2436 = vpack.c.b16 %v1836, %v1824
        %v2437 = vpack.c.b16 %v1837, %v1825
        %v2438 = vpack.c.b16 %v1838, %v1826
        %v2439 = vpack.c.b16 %v1839, %v1827
        %v2440 = vpack.c.b16 %v1840, %v1828
        %v2441 = vpack.c.b16 %v1841, %v1829
        %v2442 = vpack.c.b16 %v1842, %v1830
        %v2443 = vpack.c.b16 %v1843, %v1831
        %v2444 = vpack.c.b16 %v1844, %v1832
        %v2445 = vpack.c.b16 %v1857, %v1845
        %v2446 = vpack.c.b16 %v1858, %v1846
        %v2447 = vpack.c.b16 %v1859, %v1847
        %v2448 = vpack.c.b16 %v1860, %v1848
        %v2449 = vpack.c.b16 %v1861, %v1849
        %v2450 = vpack.c.b16 %v1862, %v1850
        %v2451 = vpack.c.b16 %v1863, %v1851
        %v2452 = vpack.c.b16 %v1864, %v1852
        %v2453 = vpack.c.b16 %v1865, %v1853
        %v2454 = vpack.c.b16 %v1866, %v1854
        %v2455 = vpack.c.b16 %v1867, %v1855
        %v2456 = vpack.c.b16 %v1868, %v1856
        %v2457 = vpack.c.b16 %v1881, %v1869
        %v2458 = vpack.c.b16 %v1882, %v1870
        %v2459 = vpack.c.b16 %v1883, %v1871
        %v2460 = vpack.c.b16 %v1884, %v1872
        %v2461 = vpack.c.b16 %v1885, %v1873
        %v2462 = vpack.c.b16 %v1886, %v1874
        %v2463 = vpack.c.b16 %v1887, %v1875
        %v2464 = vpack.c.b16 %v1888, %v1876
        %v2465 = vpack.c.b16 %v1889, %v1877
        %v2466 = vpack.c.b16 %v1890, %v1878
        %v2467 = vpack.c.b16 %v1891, %v1879
        %v2468 = vpack.c.b16 %v1892, %v1880
        %v2469 = vpack.c.b16 %v1905, %v1893
        %v2470 = vpack.c.b16 %v1906, %v1894
        %v2471 = vpack.c.b16 %v1907, %v1895
        %v2472 = vpack.c.b16 %v1908, %v1896
        %v2473 = vpack.c.b16 %v1909, %v1897
        %v2474 = vpack.c.b16 %v1910, %v1898
        %v2475 = vpack.c.b16 %v1911, %v1899
        %v2476 = vpack.c.b16 %v1912, %v1900
        %v2477 = vpack.c.b16 %v1913, %v1901
        %v2478 = vpack.c.b16 %v1914, %v1902
        %v2479 = vpack.c.b16 %v1915, %v1903
        %v2480 = vpack.c.b16 %v1916, %v1904
        %v2481 = vpack.c.b16 %v1929, %v1917
        %v2482 = vpack.c.b16 %v1930, %v1918
        %v2483 = vpack.c.b16 %v1931, %v1919
        %v2484 = vpack.c.b16 %v1932, %v1920
        %v2485 = vpack.c.b16 %v1933, %v1921
        %v2486 = vpack.c.b16 %v1934, %v1922
        %v2487 = vpack.c.b16 %v1935, %v1923
        %v2488 = vpack.c.b16 %v1936, %v1924
        %v2489 = vpack.c.b16 %v1937, %v1925
        %v2490 = vpack.c.b16 %v1938, %v1926
        %v2491 = vpack.c.b16 %v1939, %v1927
        %v2492 = vpack.c.b16 %v1940, %v1928
        %v2493 = vpack.c.b16 %v1953, %v1941
        %v2494 = vpack.c.b16 %v1954, %v1942
        %v2495 = vpack.c.b16 %v1955, %v1943
        %v2496 = vpack.c.b16 %v1956, %v1944
        %v2497 = vpack.c.b16 %v1957, %v1945
        %v2498 = vpack.c.b16 %v1958, %v1946
        %v2499 = vpack.c.b16 %v1959, %v1947
        %v2500 = vpack.c.b16 %v1960, %v1948
        %v2501 = vpack.c.b16 %v1961, %v1949
        %v2502 = vpack.c.b16 %v1962, %v1950
        %v2503 = vpack.c.b16 %v1963, %v1951
        %v2504 = vpack.c.b16 %v1964, %v1952
        %v2505 = vpack.c.b16 %v1977, %v1965
        %v2506 = vpack.c.b16 %v1978, %v1966
        %v2507 = vpack.c.b16 %v1979, %v1967
        %v2508 = vpack.c.b16 %v1980, %v1968
        %v2509 = vpack.c.b16 %v1981, %v1969
        %v2510 = vpack.c.b16 %v1982, %v1970
        %v2511 = vpack.c.b16 %v1983, %v1971
        %v2512 = vpack.c.b16 %v1984, %v1972
        %v2513 = vpack.c.b16 %v1985, %v1973
        %v2514 = vpack.c.b16 %v1986, %v1974
        %v2515 = vpack.c.b16 %v1987, %v1975
        %v2516 = vpack.c.b16 %v1988, %v1976
        %v2517 = vpack.c.b16 %v2001, %v1989
        %v2518 = vpack.c.b16 %v2002, %v1990
        %v2519 = vpack.c.b16 %v2003, %v1991
        %v2520 = vpack.c.b16 %v2004, %v1992
        %v2521 = vpack.c.b16 %v2005, %v1993
        %v2522 = vpack.c.b16 %v2006, %v1994
        %v2523 = vpack.c.b16 %v2007, %v1995
        %v2524 = vpack.c.b16 %v2008, %v1996
        %v2525 = vpack.c.b16 %v2009, %v1997
        %v2526 = vpack.c.b16 %v2010, %v1998
        %v2527 = vpack.c.b16 %v2011, %v1999
        %v2528 = vpack.c.b16 %v2012, %v2000
        %v2529 = vpack.c.b16 %v2025, %v2013
        %v2530 = vpack.c.b16 %v2026, %v2014
        %v2531 = vpack.c.b16 %v2027, %v2015
        %v2532 = vpack.c.b16 %v2028, %v2016
        %v2533 = vpack.c.b16 %v2029, %v2017
        %v2534 = vpack.c.b16 %v2030, %v2018
        %v2535 = vpack.c.b16 %v2031, %v2019
        %v2536 = vpack.c.b16 %v2032, %v2020
        %v2537 = vpack.c.b16 %v2033, %v2021
        %v2538 = vpack.c.b16 %v2034, %v2022
        %v2539 = vpack.c.b16 %v2035, %v2023
        %v2540 = vpack.c.b16 %v2036, %v2024
        %v2541 = vpack.c.b16 %v2049, %v2037
        %v2542 = vpack.c.b16 %v2050, %v2038
        %v2543 = vpack.c.b16 %v2051, %v2039
        %v2544 = vpack.c.b16 %v2052, %v2040
        %v2545 = vpack.c.b16 %v2053, %v2041
        %v2546 = vpack.c.b16 %v2054, %v2042
        %v2547 = vpack.c.b16 %v2055, %v2043
        %v2548 = vpack.c.b16 %v2056, %v2044
        %v2549 = vpack.c.b16 %v2057, %v2045
        %v2550 = vpack.c.b16 %v2058, %v2046
        %v2551 = vpack.c.b16 %v2059, %v2047
        %v2552 = vpack.c.b16 %v2060, %v2048
        %v2553 = vpack.c.b16 %v2073, %v2061
        %v2554 = vpack.c.b16 %v2074, %v2062
        %v2555 = vpack.c.b16 %v2075, %v2063
        %v2556 = vpack.c.b16 %v2076, %v2064
        %v2557 = vpack.c.b16 %v2077, %v2065
        %v2558 = vpack.c.b16 %v2078, %v2066
        %v2559 = vpack.c.b16 %v2079, %v2067
        %v2560 = vpack.c.b16 %v2080, %v2068
        %v2561 = vpack.c.b16 %v2081, %v2069
        %v2562 = vpack.c.b16 %v2082, %v2070
        %v2563 = vpack.c.b16 %v2083, %v2071
        %v2564 = vpack.c.b16 %v2084, %v2072
        %v2565 = vpack.c.b16 %v2097, %v2085
        %v2566 = vpack.c.b16 %v2098, %v2086
        %v2567 = vpack.c.b16 %v2099, %v2087
        %v2568 = vpack.c.b16 %v2100, %v2088
        %v2569 = vpack.c.b16 %v2101, %v2089
        %v2570 = vpack.c.b16 %v2102, %v2090
        %v2571 = vpack.c.b16 %v2103, %v2091
        %v2572 = vpack.c.b16 %v2104, %v2092
        %v2573 = vpack.c.b16 %v2105, %v2093
        %v2574 = vpack.c.b16 %v2106, %v2094
        %v2575 = vpack.c.b16 %v2107, %v2095
        %v2576 = vpack.c.b16 %v2108, %v2096
        %v2577 = vpack.c.b16 %v2121, %v2109
        %v2578 = vpack.c.b16 %v2122, %v2110
        %v2579 = vpack.c.b16 %v2123, %v2111
        %v2580 = vpack.c.b16 %v2124, %v2112
        %v2581 = vpack.c.b16 %v2125, %v2113
        %v2582 = vpack.c.b16 %v2126, %v2114
        %v2583 = vpack.c.b16 %v2127, %v2115
        %v2584 = vpack.c.b16 %v2128, %v2116
        %v2585 = vpack.c.b16 %v2129, %v2117
        %v2586 = vpack.c.b16 %v2130, %v2118
        %v2587 = vpack.c.b16 %v2131, %v2119
        %v2588 = vpack.c.b16 %v2132, %v2120
        %v2589 = vpack.c.b16 %v2145, %v2133
        %v2590 = vpack.c.b16 %v2146, %v2134
        %v2591 = vpack.c.b16 %v2147, %v2135
        %v2592 = vpack.c.b16 %v2148, %v2136
        %v2593 = vpack.c.b16 %v2149, %v2137
        %v2594 = vpack.c.b16 %v2150, %v2138
        %v2595 = vpack.c.b16 %v2151, %v2139
        %v2596 = vpack.c.b16 %v2152, %v2140
        %v2597 = vpack.c.b16 %v2153, %v2141
        %v2598 = vpack.c.b16 %v2154, %v2142
        %v2599 = vpack.c.b16 %v2155, %v2143
        %v2600 = vpack.c.b16 %v2156, %v2144
        %v2601 = vpack.c.b16 %v2169, %v2157
        %v2602 = vpack.c.b16 %v2170, %v2158
        %v2603 = vpack.c.b16 %v2171, %v2159
        %v2604 = vpack.c.b16 %v2172, %v2160
        %v2605 = vpack.c.b16 %v2173, %v2161
        %v2606 = vpack.c.b16 %v2174, %v2162
        %v2607 = vpack.c.b16 %v2175, %v2163
        %v2608 = vpack.c.b16 %v2176, %v2164
        %v2609 = vpack.c.b16 %v2177, %v2165
        %v2610 = vpack.c.b16 %v2178, %v2166
        %v2611 = vpack.c.b16 %v2179, %v2167
        %v2612 = vpack.c.b16 %v2180, %v2168
        %v2613 = vpack.c.b16 %v2193, %v2181
        %v2614 = vpack.c.b16 %v2194, %v2182
        %v2615 = vpack.c.b16 %v2195, %v2183
        %v2616 = vpack.c.b16 %v2196, %v2184
        %v2617 = vpack.c.b16 %v2197, %v2185
        %v2618 = vpack.c.b16 %v2198, %v2186
        %v2619 = vpack.c.b16 %v2199, %v2187
        %v2620 = vpack.c.b16 %v2200, %v2188
        %v2621 = vpack.c.b16 %v2201, %v2189
        %v2622 = vpack.c.b16 %v2202, %v2190
        %v2623 = vpack.c.b16 %v2203, %v2191
        %v2624 = vpack.c.b16 %v2204, %v2192
        %v2625 = vpack.c.b16 %v2217, %v2205
        %v2626 = vpack.c.b16 %v2218, %v2206
        %v2627 = vpack.c.b16 %v2219, %v2207
        %v2628 = vpack.c.b16 %v2220, %v2208
        %v2629 = vpack.c.b16 %v2221, %v2209
        %v2630 = vpack.c.b16 %v2222, %v2210
        %v2631 = vpack.c.b16 %v2223, %v2211
        %v2632 = vpack.c.b16 %v2224, %v2212
        %v2633 = vpack.c.b16 %v2225, %v2213
        %v2634 = vpack.c.b16 %v2226, %v2214
        %v2635 = vpack.c.b16 %v2227, %v2215
        %v2636 = vpack.c.b16 %v2228, %v2216
        %v2637 = vpack.c.b16 %v2241, %v2229
        %v2638 = vpack.c.b16 %v2242, %v2230
        %v2639 = vpack.c.b16 %v2243, %v2231
        %v2640 = vpack.c.b16 %v2244, %v2232
        %v2641 = vpack.c.b16 %v2245, %v2233
        %v2642 = vpack.c.b16 %v2246, %v2234
        %v2643 = vpack.c.b16 %v2247, %v2235
        %v2644 = vpack.c.b16 %v2248, %v2236
        %v2645 = vpack.c.b16 %v2249, %v2237
        %v2646 = vpack.c.b16 %v2250, %v2238
        %v2647 = vpack.c.b16 %v2251, %v2239
        %v2648 = vpack.c.b16 %v2252, %v2240
        %v2649 = vpack.c.b16 %v2265, %v2253
        %v2650 = vpack.c.b16 %v2266, %v2254
        %v2651 = vpack.c.b16 %v2267, %v2255
        %v2652 = vpack.c.b16 %v2268, %v2256
        %v2653 = vpack.c.b16 %v2269, %v2257
        %v2654 = vpack.c.b16 %v2270, %v2258
        %v2655 = vpack.c.b16 %v2271, %v2259
        %v2656 = vpack.c.b16 %v2272, %v2260
        %v2657 = vpack.c.b16 %v2273, %v2261
        %v2658 = vpack.c.b16 %v2274, %v2262
        %v2659 = vpack.c.b16 %v2275, %v2263
        %v2660 = vpack.c.b16 %v2276, %v2264
        %3045 = vmatprep.subr.bf16.mxu0 %v2278
        %3046 = vmatpush1.bf16.msra.mxu0 %v2277
        %3047 = vmatprep.subr.bf16.mxu0 %v2290
        %3048 = vmatpush1.bf16.msra.mxu0 %v2289
        %3049 = vmatprep.subr.bf16.mxu0 %v2302
        %3050 = vmatpush1.bf16.msra.mxu0 %v2301
        %3051 = vmatprep.subr.bf16.mxu0 %v2314
        %3052 = vmatpush1.bf16.msra.mxu0 %v2313
        %3053 = vmatprep.subr.bf16.mxu0 %v2326
        %3054 = vmatpush1.bf16.msra.mxu0 %v2325
        %3055 = vmatprep.subr.bf16.mxu0 %v2338
        %3056 = vmatpush1.bf16.msra.mxu0 %v2337
        %3057 = vmatprep.subr.bf16.mxu0 %v2350
        %3058 = vmatpush1.bf16.msra.mxu0 %v2349
        %3059 = vmatprep.subr.bf16.mxu0 %v2362
        %3060 = vmatpush1.bf16.msra.mxu0 %v2361
        %3061 = vmatprep.subr.bf16.mxu0 %v2374
        %3062 = vmatpush1.bf16.msra.mxu0 %v2373
        %3063 = vmatprep.subr.bf16.mxu0 %v2386
        %3064 = vmatpush1.bf16.msra.mxu0 %v2385
        %3065 = vmatprep.subr.bf16.mxu0 %v2398
        %3066 = vmatpush1.bf16.msra.mxu0 %v2397
        %3067 = vmatprep.subr.bf16.mxu0 %v2410
        %3068 = vmatpush1.bf16.msra.mxu0 %v2409
        %3069 = vmatprep.subr.bf16.mxu0 %v2422
        %3070 = vmatpush1.bf16.msra.mxu0 %v2421
        %3071 = vmatprep.subr.bf16.mxu0 %v2434
        %3072 = vmatpush1.bf16.msra.mxu0 %v2433
        %3073 = vmatprep.subr.bf16.mxu0 %v2446
        %3074 = vmatpush1.bf16.msra.mxu0 %v2445
        %3075 = vmatprep.subr.bf16.mxu0 %v2458
        %3076 = vmatpush1.bf16.msra.mxu0 %v2457
        %3077 = vmatprep.mubr.bf16.mxu0 %v998
        %3078 = vmatmul.mubr.bf16.gmra.mrb[0].mxu0 %v997
        %v3079 = vpop.f32.mrb[0].mxu0
        %v3080 = vadd.f32 %v748, %v3079
        %v3081 = vpop.f32.mrb[0].mxu0
        %v3082 = vadd.f32 %v752, %v3081
        %v3083 = vpop.f32.mrb[0].mxu0
        %v3084 = vadd.f32 %v748, %v3083
        %v3085 = vpop.f32.mrb[0].mxu0
        %v3086 = vadd.f32 %v752, %v3085
        %3087 = vmatprep.mubr.bf16.mxu0 %v1002
        %3088 = vmatmul.mubr.bf16.gmra.mrb[0].mxu0 %v1001
        %v3089 = vpop.f32.mrb[0].mxu0
        %v3090 = vadd.f32 %v748, %v3089
        %v3091 = vpop.f32.mrb[0].mxu0
        %v3092 = vadd.f32 %v752, %v3091
        %v3093 = vpop.f32.mrb[0].mxu0
        %v3094 = vadd.f32 %v748, %v3093
        %v3095 = vpop.f32.mrb[0].mxu0
        %v3096 = vadd.f32 %v752, %v3095
        %3097 = vmatprep.mubr.bf16.mxu0 %v1006
        %3098 = vmatmul.mubr.bf16.gmra.mrb[0].mxu0 %v1005
        %v3099 = vpop.f32.mrb[0].mxu0
        %v3100 = vadd.f32 %v748, %v3099
        %v3101 = vpop.f32.mrb[0].mxu0
        %v3102 = vadd.f32 %v752, %v3101
        %v3103 = vpop.f32.mrb[0].mxu0
        %v3104 = vadd.f32 %v748, %v3103
        %v3105 = vpop.f32.mrb[0].mxu0
        %v3106 = vadd.f32 %v752, %v3105
        %3107 = vmatprep.mubr.bf16.mxu0 %v1010
        %3108 = vmatmul.mubr.bf16.gmra.mrb[0].mxu0 %v1009
        %v3109 = vpop.f32.mrb[0].mxu0
        %v3110 = vadd.f32 %v748, %v3109
        %v3111 = vpop.f32.mrb[0].mxu0
        %v3112 = vadd.f32 %v752, %v3111
        %v3113 = vpop.f32.mrb[0].mxu0
        %v3114 = vadd.f32 %v748, %v3113
        %v3115 = vpop.f32.mrb[0].mxu0
        %v3116 = vadd.f32 %v752, %v3115
        %3117 = vmatprep.mubr.bf16.mxu0 %v1014
        %3118 = vmatmul.mubr.bf16.gmra.mrb[0].mxu0 %v1013
        %v3119 = vpop.f32.mrb[0].mxu0
        %v3120 = vadd.f32 %v748, %v3119
        %v3121 = vpop.f32.mrb[0].mxu0
        %v3122 = vadd.f32 %v752, %v3121
        %v3123 = vpop.f32.mrb[0].mxu0
        %v3124 = vadd.f32 %v748, %v3123
        %v3125 = vpop.f32.mrb[0].mxu0
        %v3126 = vadd.f32 %v752, %v3125
        %3127 = vmatprep.mubr.bf16.mxu0 %v1018
        %3128 = vmatmul.mubr.bf16.gmra.mrb[0].mxu0 %v1017
        %v3129 = vpop.f32.mrb[0].mxu0
        %v3130 = vadd.f32 %v748, %v3129
        %v3131 = vpop.f32.mrb[0].mxu0
        %v3132 = vadd.f32 %v752, %v3131
        %v3133 = vpop.f32.mrb[0].mxu0
        %v3134 = vadd.f32 %v748, %v3133
        %v3135 = vpop.f32.mrb[0].mxu0
        %v3136 = vadd.f32 %v752, %v3135
        %3137 = vmatprep.mubr.bf16.mxu0 %v1022
        %3138 = vmatmul.mubr.bf16.gmra.mrb[0].mxu0 %v1021
        %v3139 = vpop.f32.mrb[0].mxu0
        %v3140 = vadd.f32 %v748, %v3139
        %v3141 = vpop.f32.mrb[0].mxu0
        %v3142 = vadd.f32 %v752, %v3141
        %v3143 = vpop.f32.mrb[0].mxu0
        %v3144 = vadd.f32 %v748, %v3143
        %v3145 = vpop.f32.mrb[0].mxu0
        %v3146 = vadd.f32 %v752, %v3145
        %3147 = vmatprep.mubr.bf16.mxu0 %v1026
        %3148 = vmatmul.mubr.bf16.gmra.mrb[0].mxu0 %v1025
        %v3149 = vpop.f32.mrb[0].mxu0
        %v3150 = vadd.f32 %v748, %v3149
        %v3151 = vpop.f32.mrb[0].mxu0
        %v3152 = vadd.f32 %v752, %v3151
        %v3153 = vpop.f32.mrb[0].mxu0
        %v3154 = vadd.f32 %v748, %v3153
        %v3155 = vpop.f32.mrb[0].mxu0
        %v3156 = vadd.f32 %v752, %v3155
        %3157 = vmatprep.mubr.bf16.mxu0 %v1030
        %3158 = vmatmul.mubr.bf16.gmra.mrb[0].mxu0 %v1029
        %v3159 = vpop.f32.mrb[0].mxu0
        %v3160 = vadd.f32 %v748, %v3159
        %v3161 = vpop.f32.mrb[0].mxu0
        %v3162 = vadd.f32 %v752, %v3161
        %v3163 = vpop.f32.mrb[0].mxu0
        %v3164 = vadd.f32 %v748, %v3163
        %v3165 = vpop.f32.mrb[0].mxu0
        %v3166 = vadd.f32 %v752, %v3165
        %3167 = vmatprep.mubr.bf16.mxu0 %v1034
        %3168 = vmatmul.mubr.bf16.gmra.mrb[0].mxu0 %v1033
        %v3169 = vpop.f32.mrb[0].mxu0
        %v3170 = vadd.f32 %v748, %v3169
        %v3171 = vpop.f32.mrb[0].mxu0
        %v3172 = vadd.f32 %v752, %v3171
        %v3173 = vpop.f32.mrb[0].mxu0
        %v3174 = vadd.f32 %v748, %v3173
        %v3175 = vpop.f32.mrb[0].mxu0
        %v3176 = vadd.f32 %v752, %v3175
        %3177 = vmatprep.mubr.bf16.mxu0 %v1038
        %3178 = vmatmul.mubr.bf16.gmra.mrb[0].mxu0 %v1037
        %v3179 = vpop.f32.mrb[0].mxu0
        %v3180 = vadd.f32 %v748, %v3179
        %v3181 = vpop.f32.mrb[0].mxu0
        %v3182 = vadd.f32 %v752, %v3181
        %v3183 = vpop.f32.mrb[0].mxu0
        %v3184 = vadd.f32 %v748, %v3183
        %v3185 = vpop.f32.mrb[0].mxu0
        %v3186 = vadd.f32 %v752, %v3185
        %3187 = vmatprep.mubr.bf16.mxu0 %v1042
        %3188 = vmatmul.mubr.bf16.gmra.mrb[0].mxu0 %v1041
        %v3189 = vpop.f32.mrb[0].mxu0
        %v3190 = vadd.f32 %v748, %v3189
        %v3191 = vpop.f32.mrb[0].mxu0
        %v3192 = vadd.f32 %v752, %v3191
        %v3193 = vpop.f32.mrb[0].mxu0
        %v3194 = vadd.f32 %v748, %v3193
        %v3195 = vpop.f32.mrb[0].mxu0
        %v3196 = vadd.f32 %v752, %v3195
        %3197 = vmatprep.mubr.bf16.mxu0 %v1046
        %3198 = vmatmul.mubr.bf16.gmra.mrb[0].mxu0 %v1045
        %v3199 = vpop.f32.mrb[0].mxu0
        %v3200 = vadd.f32 %v748, %v3199
        %v3201 = vpop.f32.mrb[0].mxu0
        %v3202 = vadd.f32 %v752, %v3201
        %v3203 = vpop.f32.mrb[0].mxu0
        %v3204 = vadd.f32 %v748, %v3203
        %v3205 = vpop.f32.mrb[0].mxu0
        %v3206 = vadd.f32 %v752, %v3205
        %3207 = vmatprep.mubr.bf16.mxu0 %v1050
        %3208 = vmatmul.mubr.bf16.gmra.mrb[0].mxu0 %v1049
        %v3209 = vpop.f32.mrb[0].mxu0
        %v3210 = vadd.f32 %v748, %v3209
        %v3211 = vpop.f32.mrb[0].mxu0
        %v3212 = vadd.f32 %v752, %v3211
        %v3213 = vpop.f32.mrb[0].mxu0
        %v3214 = vadd.f32 %v748, %v3213
        %v3215 = vpop.f32.mrb[0].mxu0
        %v3216 = vadd.f32 %v752, %v3215
        %3217 = vmatprep.mubr.bf16.mxu0 %v1054
        %3218 = vmatmul.mubr.bf16.gmra.mrb[0].mxu0 %v1053
        %v3219 = vpop.f32.mrb[0].mxu0
        %v3220 = vadd.f32 %v748, %v3219
        %v3221 = vpop.f32.mrb[0].mxu0
        %v3222 = vadd.f32 %v752, %v3221
        %v3223 = vpop.f32.mrb[0].mxu0
        %v3224 = vadd.f32 %v748, %v3223
        %v3225 = vpop.f32.mrb[0].mxu0
        %v3226 = vadd.f32 %v752, %v3225
        %3227 = vmatprep.mubr.bf16.mxu0 %v1058
        %3228 = vmatmul.mubr.bf16.gmra.mrb[0].mxu0 %v1057
        %v3229 = vpop.f32.mrb[0].mxu0
        %v3230 = vadd.f32 %v748, %v3229
        %v3231 = vpop.f32.mrb[0].mxu0
        %v3232 = vadd.f32 %v752, %v3231
        %v3233 = vpop.f32.mrb[0].mxu0
        %v3234 = vadd.f32 %v748, %v3233
        %v3235 = vpop.f32.mrb[0].mxu0
        %v3236 = vadd.f32 %v752, %v3235
        %3237 = vdwg.mxu0
        %3238 = vmatprep.subr.bf16.mxu0 %v2470
        %3239 = vmatpush1.bf16.msra.mxu0 %v2469
        %3240 = vmatprep.subr.bf16.mxu0 %v2482
        %3241 = vmatpush1.bf16.msra.mxu0 %v2481
        %3242 = vmatprep.subr.bf16.mxu0 %v2494
        %3243 = vmatpush1.bf16.msra.mxu0 %v2493
        %3244 = vmatprep.subr.bf16.mxu0 %v2506
        %3245 = vmatpush1.bf16.msra.mxu0 %v2505
        %3246 = vmatprep.subr.bf16.mxu0 %v2518
        %3247 = vmatpush1.bf16.msra.mxu0 %v2517
        %3248 = vmatprep.subr.bf16.mxu0 %v2530
        %3249 = vmatpush1.bf16.msra.mxu0 %v2529
        %3250 = vmatprep.subr.bf16.mxu0 %v2542
        %3251 = vmatpush1.bf16.msra.mxu0 %v2541
        %3252 = vmatprep.subr.bf16.mxu0 %v2554
        %3253 = vmatpush1.bf16.msra.mxu0 %v2553
        %3254 = vmatprep.subr.bf16.mxu0 %v2566
        %3255 = vmatpush1.bf16.msra.mxu0 %v2565
        %3256 = vmatprep.subr.bf16.mxu0 %v2578
        %3257 = vmatpush1.bf16.msra.mxu0 %v2577
        %3258 = vmatprep.subr.bf16.mxu0 %v2590
        %3259 = vmatpush1.bf16.msra.mxu0 %v2589
        %3260 = vmatprep.subr.bf16.mxu0 %v2602
        %3261 = vmatpush1.bf16.msra.mxu0 %v2601
        %3262 = vmatprep.subr.bf16.mxu0 %v2614
        %3263 = vmatpush1.bf16.msra.mxu0 %v2613
        %3264 = vmatprep.subr.bf16.mxu0 %v2626
        %3265 = vmatpush1.bf16.msra.mxu0 %v2625
        %3266 = vmatprep.subr.bf16.mxu0 %v2638
        %3267 = vmatpush1.bf16.msra.mxu0 %v2637
        %3268 = vmatprep.subr.bf16.mxu0 %v2650
        %3269 = vmatpush1.bf16.msra.mxu0 %v2649
        %3270 = vmatprep.mubr.bf16.mxu0 %v1000
        %3271 = vmatmul.mubr.bf16.gmra.mrb[0].mxu0 %v999
        %v3272 = vpop.f32.mrb[0].mxu0
        %v3273 = vadd.f32 %v3080, %v3272
        %v3274 = vpop.f32.mrb[0].mxu0
        %v3275 = vadd.f32 %v3082, %v3274
        %v3276 = vpop.f32.mrb[0].mxu0
        %v3277 = vadd.f32 %v3084, %v3276
        %v3278 = vpop.f32.mrb[0].mxu0
        %v3279 = vadd.f32 %v3086, %v3278
        %3280 = vmatprep.mubr.bf16.mxu0 %v1004
        %3281 = vmatmul.mubr.bf16.gmra.mrb[0].mxu0 %v1003
        %v3282 = vpop.f32.mrb[0].mxu0
        %v3283 = vadd.f32 %v3090, %v3282
        %v3284 = vpop.f32.mrb[0].mxu0
        %v3285 = vadd.f32 %v3092, %v3284
        %v3286 = vpop.f32.mrb[0].mxu0
        %v3287 = vadd.f32 %v3094, %v3286
        %v3288 = vpop.f32.mrb[0].mxu0
        %v3289 = vadd.f32 %v3096, %v3288
        %3290 = vmatprep.mubr.bf16.mxu0 %v1008
        %3291 = vmatmul.mubr.bf16.gmra.mrb[0].mxu0 %v1007
        %v3292 = vpop.f32.mrb[0].mxu0
        %v3293 = vadd.f32 %v3100, %v3292
        %v3294 = vpop.f32.mrb[0].mxu0
        %v3295 = vadd.f32 %v3102, %v3294
        %v3296 = vpop.f32.mrb[0].mxu0
        %v3297 = vadd.f32 %v3104, %v3296
        %v3298 = vpop.f32.mrb[0].mxu0
        %v3299 = vadd.f32 %v3106, %v3298
        %3300 = vmatprep.mubr.bf16.mxu0 %v1012
        %3301 = vmatmul.mubr.bf16.gmra.mrb[0].mxu0 %v1011
        %v3302 = vpop.f32.mrb[0].mxu0
        %v3303 = vadd.f32 %v3110, %v3302
        %v3304 = vpop.f32.mrb[0].mxu0
        %v3305 = vadd.f32 %v3112, %v3304
        %v3306 = vpop.f32.mrb[0].mxu0
        %v3307 = vadd.f32 %v3114, %v3306
        %v3308 = vpop.f32.mrb[0].mxu0
        %v3309 = vadd.f32 %v3116, %v3308
        %3310 = vmatprep.mubr.bf16.mxu0 %v1016
        %3311 = vmatmul.mubr.bf16.gmra.mrb[0].mxu0 %v1015
        %v3312 = vpop.f32.mrb[0].mxu0
        %v3313 = vadd.f32 %v3120, %v3312
        %v3314 = vpop.f32.mrb[0].mxu0
        %v3315 = vadd.f32 %v3122, %v3314
        %v3316 = vpop.f32.mrb[0].mxu0
        %v3317 = vadd.f32 %v3124, %v3316
        %v3318 = vpop.f32.mrb[0].mxu0
        %v3319 = vadd.f32 %v3126, %v3318
        %3320 = vmatprep.mubr.bf16.mxu0 %v1020
        %3321 = vmatmul.mubr.bf16.gmra.mrb[0].mxu0 %v1019
        %v3322 = vpop.f32.mrb[0].mxu0
        %v3323 = vadd.f32 %v3130, %v3322
        %v3324 = vpop.f32.mrb[0].mxu0
        %v3325 = vadd.f32 %v3132, %v3324
        %v3326 = vpop.f32.mrb[0].mxu0
        %v3327 = vadd.f32 %v3134, %v3326
        %v3328 = vpop.f32.mrb[0].mxu0
        %v3329 = vadd.f32 %v3136, %v3328
        %3330 = vmatprep.mubr.bf16.mxu0 %v1024
        %3331 = vmatmul.mubr.bf16.gmra.mrb[0].mxu0 %v1023
        %v3332 = vpop.f32.mrb[0].mxu0
        %v3333 = vadd.f32 %v3140, %v3332
        %v3334 = vpop.f32.mrb[0].mxu0
        %v3335 = vadd.f32 %v3142, %v3334
        %v3336 = vpop.f32.mrb[0].mxu0
        %v3337 = vadd.f32 %v3144, %v3336
        %v3338 = vpop.f32.mrb[0].mxu0
        %v3339 = vadd.f32 %v3146, %v3338
        %3340 = vmatprep.mubr.bf16.mxu0 %v1028
        %3341 = vmatmul.mubr.bf16.gmra.mrb[0].mxu0 %v1027
        %v3342 = vpop.f32.mrb[0].mxu0
        %v3343 = vadd.f32 %v3150, %v3342
        %v3344 = vpop.f32.mrb[0].mxu0
        %v3345 = vadd.f32 %v3152, %v3344
        %v3346 = vpop.f32.mrb[0].mxu0
        %v3347 = vadd.f32 %v3154, %v3346
        %v3348 = vpop.f32.mrb[0].mxu0
        %v3349 = vadd.f32 %v3156, %v3348
        %3350 = vmatprep.mubr.bf16.mxu0 %v1032
        %3351 = vmatmul.mubr.bf16.gmra.mrb[0].mxu0 %v1031
        %v3352 = vpop.f32.mrb[0].mxu0
        %v3353 = vadd.f32 %v3160, %v3352
        %v3354 = vpop.f32.mrb[0].mxu0
        %v3355 = vadd.f32 %v3162, %v3354
        %v3356 = vpop.f32.mrb[0].mxu0
        %v3357 = vadd.f32 %v3164, %v3356
        %v3358 = vpop.f32.mrb[0].mxu0
        %v3359 = vadd.f32 %v3166, %v3358
        %3360 = vmatprep.mubr.bf16.mxu0 %v1036
        %3361 = vmatmul.mubr.bf16.gmra.mrb[0].mxu0 %v1035
        %v3362 = vpop.f32.mrb[0].mxu0
        %v3363 = vadd.f32 %v3170, %v3362
        %v3364 = vpop.f32.mrb[0].mxu0
        %v3365 = vadd.f32 %v3172, %v3364
        %v3366 = vpop.f32.mrb[0].mxu0
        %v3367 = vadd.f32 %v3174, %v3366
        %v3368 = vpop.f32.mrb[0].mxu0
        %v3369 = vadd.f32 %v3176, %v3368
        %3370 = vmatprep.mubr.bf16.mxu0 %v1040
        %3371 = vmatmul.mubr.bf16.gmra.mrb[0].mxu0 %v1039
        %v3372 = vpop.f32.mrb[0].mxu0
        %v3373 = vadd.f32 %v3180, %v3372
        %v3374 = vpop.f32.mrb[0].mxu0
        %v3375 = vadd.f32 %v3182, %v3374
        %v3376 = vpop.f32.mrb[0].mxu0
        %v3377 = vadd.f32 %v3184, %v3376
        %v3378 = vpop.f32.mrb[0].mxu0
        %v3379 = vadd.f32 %v3186, %v3378
        %3380 = vmatprep.mubr.bf16.mxu0 %v1044
        %3381 = vmatmul.mubr.bf16.gmra.mrb[0].mxu0 %v1043
        %v3382 = vpop.f32.mrb[0].mxu0
        %v3383 = vadd.f32 %v3190, %v3382
        %v3384 = vpop.f32.mrb[0].mxu0
        %v3385 = vadd.f32 %v3192, %v3384
        %v3386 = vpop.f32.mrb[0].mxu0
        %v3387 = vadd.f32 %v3194, %v3386
        %v3388 = vpop.f32.mrb[0].mxu0
        %v3389 = vadd.f32 %v3196, %v3388
        %3390 = vmatprep.mubr.bf16.mxu0 %v1048
        %3391 = vmatmul.mubr.bf16.gmra.mrb[0].mxu0 %v1047
        %v3392 = vpop.f32.mrb[0].mxu0
        %v3393 = vadd.f32 %v3200, %v3392
        %v3394 = vpop.f32.mrb[0].mxu0
        %v3395 = vadd.f32 %v3202, %v3394
        %v3396 = vpop.f32.mrb[0].mxu0
        %v3397 = vadd.f32 %v3204, %v3396
        %v3398 = vpop.f32.mrb[0].mxu0
        %v3399 = vadd.f32 %v3206, %v3398
        %3400 = vmatprep.mubr.bf16.mxu0 %v1052
        %3401 = vmatmul.mubr.bf16.gmra.mrb[0].mxu0 %v1051
        %v3402 = vpop.f32.mrb[0].mxu0
        %v3403 = vadd.f32 %v3210, %v3402
        %v3404 = vpop.f32.mrb[0].mxu0
        %v3405 = vadd.f32 %v3212, %v3404
        %v3406 = vpop.f32.mrb[0].mxu0
        %v3407 = vadd.f32 %v3214, %v3406
        %v3408 = vpop.f32.mrb[0].mxu0
        %v3409 = vadd.f32 %v3216, %v3408
        %3410 = vmatprep.mubr.bf16.mxu0 %v1056
        %3411 = vmatmul.mubr.bf16.gmra.mrb[0].mxu0 %v1055
        %v3412 = vpop.f32.mrb[0].mxu0
        %v3413 = vadd.f32 %v3220, %v3412
        %v3414 = vpop.f32.mrb[0].mxu0
        %v3415 = vadd.f32 %v3222, %v3414
        %v3416 = vpop.f32.mrb[0].mxu0
        %v3417 = vadd.f32 %v3224, %v3416
        %v3418 = vpop.f32.mrb[0].mxu0
        %v3419 = vadd.f32 %v3226, %v3418
        %3420 = vmatprep.mubr.bf16.mxu0 %v1060
        %3421 = vmatmul.mubr.bf16.gmra.mrb[0].mxu0 %v1059
        %v3422 = vpop.f32.mrb[0].mxu0
        %v3423 = vadd.f32 %v3230, %v3422
        %v3424 = vpop.f32.mrb[0].mxu0
        %v3425 = vadd.f32 %v3232, %v3424
        %v3426 = vpop.f32.mrb[0].mxu0
        %v3427 = vadd.f32 %v3234, %v3426
        %v3428 = vpop.f32.mrb[0].mxu0
        %v3429 = vadd.f32 %v3236, %v3428
        %3430 = vdwg.mxu0
        %3431 = vmatprep.subr.bf16.mxu0 %v2280
        %3432 = vmatpush1.bf16.msra.mxu0 %v2279
        %3433 = vmatprep.subr.bf16.mxu0 %v2292
        %3434 = vmatpush1.bf16.msra.mxu0 %v2291
        %3435 = vmatprep.subr.bf16.mxu0 %v2304
        %3436 = vmatpush1.bf16.msra.mxu0 %v2303
        %3437 = vmatprep.subr.bf16.mxu0 %v2316
        %3438 = vmatpush1.bf16.msra.mxu0 %v2315
        %3439 = vmatprep.subr.bf16.mxu0 %v2328
        %3440 = vmatpush1.bf16.msra.mxu0 %v2327
        %3441 = vmatprep.subr.bf16.mxu0 %v2340
        %3442 = vmatpush1.bf16.msra.mxu0 %v2339
        %3443 = vmatprep.subr.bf16.mxu0 %v2352
        %3444 = vmatpush1.bf16.msra.mxu0 %v2351
        %3445 = vmatprep.subr.bf16.mxu0 %v2364
        %3446 = vmatpush1.bf16.msra.mxu0 %v2363
        %3447 = vmatprep.subr.bf16.mxu0 %v2376
        %3448 = vmatpush1.bf16.msra.mxu0 %v2375
        %3449 = vmatprep.subr.bf16.mxu0 %v2388
        %3450 = vmatpush1.bf16.msra.mxu0 %v2387
        %3451 = vmatprep.subr.bf16.mxu0 %v2400
        %3452 = vmatpush1.bf16.msra.mxu0 %v2399
        %3453 = vmatprep.subr.bf16.mxu0 %v2412
        %3454 = vmatpush1.bf16.msra.mxu0 %v2411
        %3455 = vmatprep.subr.bf16.mxu0 %v2424
        %3456 = vmatpush1.bf16.msra.mxu0 %v2423
        %3457 = vmatprep.subr.bf16.mxu0 %v2436
        %3458 = vmatpush1.bf16.msra.mxu0 %v2435
        %3459 = vmatprep.subr.bf16.mxu0 %v2448
        %3460 = vmatpush1.bf16.msra.mxu0 %v2447
        %3461 = vmatprep.subr.bf16.mxu0 %v2460
        %3462 = vmatpush1.bf16.msra.mxu0 %v2459
        %3463 = vmatprep.mubr.bf16.mxu0 %v998
        %3464 = vmatmul.mubr.bf16.gmra.mrb[0].mxu0 %v997
        %v3465 = vpop.f32.mrb[0].mxu0
        %v3466 = vadd.f32 %v756, %v3465
        %v3467 = vpop.f32.mrb[0].mxu0
        %v3468 = vadd.f32 %v760, %v3467
        %v3469 = vpop.f32.mrb[0].mxu0
        %v3470 = vadd.f32 %v756, %v3469
        %v3471 = vpop.f32.mrb[0].mxu0
        %v3472 = vadd.f32 %v760, %v3471
        %3473 = vmatprep.mubr.bf16.mxu0 %v1002
        %3474 = vmatmul.mubr.bf16.gmra.mrb[0].mxu0 %v1001
        %v3475 = vpop.f32.mrb[0].mxu0
        %v3476 = vadd.f32 %v756, %v3475
        %v3477 = vpop.f32.mrb[0].mxu0
        %v3478 = vadd.f32 %v760, %v3477
        %v3479 = vpop.f32.mrb[0].mxu0
        %v3480 = vadd.f32 %v756, %v3479
        %v3481 = vpop.f32.mrb[0].mxu0
        %v3482 = vadd.f32 %v760, %v3481
        %3483 = vmatprep.mubr.bf16.mxu0 %v1006
        %3484 = vmatmul.mubr.bf16.gmra.mrb[0].mxu0 %v1005
        %v3485 = vpop.f32.mrb[0].mxu0
        %v3486 = vadd.f32 %v756, %v3485
        %v3487 = vpop.f32.mrb[0].mxu0
        %v3488 = vadd.f32 %v760, %v3487
        %v3489 = vpop.f32.mrb[0].mxu0
        %v3490 = vadd.f32 %v756, %v3489
        %v3491 = vpop.f32.mrb[0].mxu0
        %v3492 = vadd.f32 %v760, %v3491
        %3493 = vmatprep.mubr.bf16.mxu0 %v1010
        %3494 = vmatmul.mubr.bf16.gmra.mrb[0].mxu0 %v1009
        %v3495 = vpop.f32.mrb[0].mxu0
        %v3496 = vadd.f32 %v756, %v3495
        %v3497 = vpop.f32.mrb[0].mxu0
        %v3498 = vadd.f32 %v760, %v3497
        %v3499 = vpop.f32.mrb[0].mxu0
        %v3500 = vadd.f32 %v756, %v3499
        %v3501 = vpop.f32.mrb[0].mxu0
        %v3502 = vadd.f32 %v760, %v3501
        %3503 = vmatprep.mubr.bf16.mxu0 %v1014
        %3504 = vmatmul.mubr.bf16.gmra.mrb[0].mxu0 %v1013
        %v3505 = vpop.f32.mrb[0].mxu0
        %v3506 = vadd.f32 %v756, %v3505
        %v3507 = vpop.f32.mrb[0].mxu0
        %v3508 = vadd.f32 %v760, %v3507
        %v3509 = vpop.f32.mrb[0].mxu0
        %v3510 = vadd.f32 %v756, %v3509
        %v3511 = vpop.f32.mrb[0].mxu0
        %v3512 = vadd.f32 %v760, %v3511
        %3513 = vmatprep.mubr.bf16.mxu0 %v1018
        %3514 = vmatmul.mubr.bf16.gmra.mrb[0].mxu0 %v1017
        %v3515 = vpop.f32.mrb[0].mxu0
        %v3516 = vadd.f32 %v756, %v3515
        %v3517 = vpop.f32.mrb[0].mxu0
        %v3518 = vadd.f32 %v760, %v3517
        %v3519 = vpop.f32.mrb[0].mxu0
        %v3520 = vadd.f32 %v756, %v3519
        %v3521 = vpop.f32.mrb[0].mxu0
        %v3522 = vadd.f32 %v760, %v3521
        %3523 = vmatprep.mubr.bf16.mxu0 %v1022
        %3524 = vmatmul.mubr.bf16.gmra.mrb[0].mxu0 %v1021
        %v3525 = vpop.f32.mrb[0].mxu0
        %v3526 = vadd.f32 %v756, %v3525
        %v3527 = vpop.f32.mrb[0].mxu0
        %v3528 = vadd.f32 %v760, %v3527
        %v3529 = vpop.f32.mrb[0].mxu0
        %v3530 = vadd.f32 %v756, %v3529
        %v3531 = vpop.f32.mrb[0].mxu0
        %v3532 = vadd.f32 %v760, %v3531
        %3533 = vmatprep.mubr.bf16.mxu0 %v1026
        %3534 = vmatmul.mubr.bf16.gmra.mrb[0].mxu0 %v1025
        %v3535 = vpop.f32.mrb[0].mxu0
        %v3536 = vadd.f32 %v756, %v3535
        %v3537 = vpop.f32.mrb[0].mxu0
        %v3538 = vadd.f32 %v760, %v3537
        %v3539 = vpop.f32.mrb[0].mxu0
        %v3540 = vadd.f32 %v756, %v3539
        %v3541 = vpop.f32.mrb[0].mxu0
        %v3542 = vadd.f32 %v760, %v3541
        %3543 = vmatprep.mubr.bf16.mxu0 %v1030
        %3544 = vmatmul.mubr.bf16.gmra.mrb[0].mxu0 %v1029
        %v3545 = vpop.f32.mrb[0].mxu0
        %v3546 = vadd.f32 %v756, %v3545
        %v3547 = vpop.f32.mrb[0].mxu0
        %v3548 = vadd.f32 %v760, %v3547
        %v3549 = vpop.f32.mrb[0].mxu0
        %v3550 = vadd.f32 %v756, %v3549
        %v3551 = vpop.f32.mrb[0].mxu0
        %v3552 = vadd.f32 %v760, %v3551
        %3553 = vmatprep.mubr.bf16.mxu0 %v1034
        %3554 = vmatmul.mubr.bf16.gmra.mrb[0].mxu0 %v1033
        %v3555 = vpop.f32.mrb[0].mxu0
        %v3556 = vadd.f32 %v756, %v3555
        %v3557 = vpop.f32.mrb[0].mxu0
        %v3558 = vadd.f32 %v760, %v3557
        %v3559 = vpop.f32.mrb[0].mxu0
        %v3560 = vadd.f32 %v756, %v3559
        %v3561 = vpop.f32.mrb[0].mxu0
        %v3562 = vadd.f32 %v760, %v3561
        %3563 = vmatprep.mubr.bf16.mxu0 %v1038
        %3564 = vmatmul.mubr.bf16.gmra.mrb[0].mxu0 %v1037
        %v3565 = vpop.f32.mrb[0].mxu0
        %v3566 = vadd.f32 %v756, %v3565
        %v3567 = vpop.f32.mrb[0].mxu0
        %v3568 = vadd.f32 %v760, %v3567
        %v3569 = vpop.f32.mrb[0].mxu0
        %v3570 = vadd.f32 %v756, %v3569
        %v3571 = vpop.f32.mrb[0].mxu0
        %v3572 = vadd.f32 %v760, %v3571
        %3573 = vmatprep.mubr.bf16.mxu0 %v1042
        %3574 = vmatmul.mubr.bf16.gmra.mrb[0].mxu0 %v1041
        %v3575 = vpop.f32.mrb[0].mxu0
        %v3576 = vadd.f32 %v756, %v3575
        %v3577 = vpop.f32.mrb[0].mxu0
        %v3578 = vadd.f32 %v760, %v3577
        %v3579 = vpop.f32.mrb[0].mxu0
        %v3580 = vadd.f32 %v756, %v3579
        %v3581 = vpop.f32.mrb[0].mxu0
        %v3582 = vadd.f32 %v760, %v3581
        %3583 = vmatprep.mubr.bf16.mxu0 %v1046
        %3584 = vmatmul.mubr.bf16.gmra.mrb[0].mxu0 %v1045
        %v3585 = vpop.f32.mrb[0].mxu0
        %v3586 = vadd.f32 %v756, %v3585
        %v3587 = vpop.f32.mrb[0].mxu0
        %v3588 = vadd.f32 %v760, %v3587
        %v3589 = vpop.f32.mrb[0].mxu0
        %v3590 = vadd.f32 %v756, %v3589
        %v3591 = vpop.f32.mrb[0].mxu0
        %v3592 = vadd.f32 %v760, %v3591
        %3593 = vmatprep.mubr.bf16.mxu0 %v1050
        %3594 = vmatmul.mubr.bf16.gmra.mrb[0].mxu0 %v1049
        %v3595 = vpop.f32.mrb[0].mxu0
        %v3596 = vadd.f32 %v756, %v3595
        %v3597 = vpop.f32.mrb[0].mxu0
        %v3598 = vadd.f32 %v760, %v3597
        %v3599 = vpop.f32.mrb[0].mxu0
        %v3600 = vadd.f32 %v756, %v3599
        %v3601 = vpop.f32.mrb[0].mxu0
        %v3602 = vadd.f32 %v760, %v3601
        %3603 = vmatprep.mubr.bf16.mxu0 %v1054
        %3604 = vmatmul.mubr.bf16.gmra.mrb[0].mxu0 %v1053
        %v3605 = vpop.f32.mrb[0].mxu0
        %v3606 = vadd.f32 %v756, %v3605
        %v3607 = vpop.f32.mrb[0].mxu0
        %v3608 = vadd.f32 %v760, %v3607
        %v3609 = vpop.f32.mrb[0].mxu0
        %v3610 = vadd.f32 %v756, %v3609
        %v3611 = vpop.f32.mrb[0].mxu0
        %v3612 = vadd.f32 %v760, %v3611
        %3613 = vmatprep.mubr.bf16.mxu0 %v1058
        %3614 = vmatmul.mubr.bf16.gmra.mrb[0].mxu0 %v1057
        %v3615 = vpop.f32.mrb[0].mxu0
        %v3616 = vadd.f32 %v756, %v3615
        %v3617 = vpop.f32.mrb[0].mxu0
        %v3618 = vadd.f32 %v760, %v3617
        %v3619 = vpop.f32.mrb[0].mxu0
        %v3620 = vadd.f32 %v756, %v3619
        %v3621 = vpop.f32.mrb[0].mxu0
        %v3622 = vadd.f32 %v760, %v3621
        %3623 = vdwg.mxu0
        %3624 = vmatprep.subr.bf16.mxu0 %v2472
        %3625 = vmatpush1.bf16.msra.mxu0 %v2471
        %3626 = vmatprep.subr.bf16.mxu0 %v2484
        %3627 = vmatpush1.bf16.msra.mxu0 %v2483
        %3628 = vmatprep.subr.bf16.mxu0 %v2496
        %3629 = vmatpush1.bf16.msra.mxu0 %v2495
        %3630 = vmatprep.subr.bf16.mxu0 %v2508
        %3631 = vmatpush1.bf16.msra.mxu0 %v2507
        %3632 = vmatprep.subr.bf16.mxu0 %v2520
        %3633 = vmatpush1.bf16.msra.mxu0 %v2519
        %3634 = vmatprep.subr.bf16.mxu0 %v2532
        %3635 = vmatpush1.bf16.msra.mxu0 %v2531
        %3636 = vmatprep.subr.bf16.mxu0 %v2544
        %3637 = vmatpush1.bf16.msra.mxu0 %v2543
        %3638 = vmatprep.subr.bf16.mxu0 %v2556
        %3639 = vmatpush1.bf16.msra.mxu0 %v2555
        %3640 = vmatprep.subr.bf16.mxu0 %v2568
        %3641 = vmatpush1.bf16.msra.mxu0 %v2567
        %3642 = vmatprep.subr.bf16.mxu0 %v2580
        %3643 = vmatpush1.bf16.msra.mxu0 %v2579
        %3644 = vmatprep.subr.bf16.mxu0 %v2592
        %3645 = vmatpush1.bf16.msra.mxu0 %v2591
        %3646 = vmatprep.subr.bf16.mxu0 %v2604
        %3647 = vmatpush1.bf16.msra.mxu0 %v2603
        %3648 = vmatprep.subr.bf16.mxu0 %v2616
        %3649 = vmatpush1.bf16.msra.mxu0 %v2615
        %3650 = vmatprep.subr.bf16.mxu0 %v2628
        %3651 = vmatpush1.bf16.msra.mxu0 %v2627
        %3652 = vmatprep.subr.bf16.mxu0 %v2640
        %3653 = vmatpush1.bf16.msra.mxu0 %v2639
        %3654 = vmatprep.subr.bf16.mxu0 %v2652
        %3655 = vmatpush1.bf16.msra.mxu0 %v2651
        %3656 = vmatprep.mubr.bf16.mxu0 %v1000
        %3657 = vmatmul.mubr.bf16.gmra.mrb[0].mxu0 %v999
        %v3658 = vpop.f32.mrb[0].mxu0
        %v3659 = vadd.f32 %v3466, %v3658
        %v3660 = vpop.f32.mrb[0].mxu0
        %v3661 = vadd.f32 %v3468, %v3660
        %v3662 = vpop.f32.mrb[0].mxu0
        %v3663 = vadd.f32 %v3470, %v3662
        %v3664 = vpop.f32.mrb[0].mxu0
        %v3665 = vadd.f32 %v3472, %v3664
        %3666 = vmatprep.mubr.bf16.mxu0 %v1004
        %3667 = vmatmul.mubr.bf16.gmra.mrb[0].mxu0 %v1003
        %v3668 = vpop.f32.mrb[0].mxu0
        %v3669 = vadd.f32 %v3476, %v3668
        %v3670 = vpop.f32.mrb[0].mxu0
        %v3671 = vadd.f32 %v3478, %v3670
        %v3672 = vpop.f32.mrb[0].mxu0
        %v3673 = vadd.f32 %v3480, %v3672
        %v3674 = vpop.f32.mrb[0].mxu0
        %v3675 = vadd.f32 %v3482, %v3674
        %3676 = vmatprep.mubr.bf16.mxu0 %v1008
        %3677 = vmatmul.mubr.bf16.gmra.mrb[0].mxu0 %v1007
        %v3678 = vpop.f32.mrb[0].mxu0
        %v3679 = vadd.f32 %v3486, %v3678
        %v3680 = vpop.f32.mrb[0].mxu0
        %v3681 = vadd.f32 %v3488, %v3680
        %v3682 = vpop.f32.mrb[0].mxu0
        %v3683 = vadd.f32 %v3490, %v3682
        %v3684 = vpop.f32.mrb[0].mxu0
        %v3685 = vadd.f32 %v3492, %v3684
        %3686 = vmatprep.mubr.bf16.mxu0 %v1012
        %3687 = vmatmul.mubr.bf16.gmra.mrb[0].mxu0 %v1011
        %v3688 = vpop.f32.mrb[0].mxu0
        %v3689 = vadd.f32 %v3496, %v3688
        %v3690 = vpop.f32.mrb[0].mxu0
        %v3691 = vadd.f32 %v3498, %v3690
        %v3692 = vpop.f32.mrb[0].mxu0
        %v3693 = vadd.f32 %v3500, %v3692
        %v3694 = vpop.f32.mrb[0].mxu0
        %v3695 = vadd.f32 %v3502, %v3694
        %3696 = vmatprep.mubr.bf16.mxu0 %v1016
        %3697 = vmatmul.mubr.bf16.gmra.mrb[0].mxu0 %v1015
        %v3698 = vpop.f32.mrb[0].mxu0
        %v3699 = vadd.f32 %v3506, %v3698
        %v3700 = vpop.f32.mrb[0].mxu0
        %v3701 = vadd.f32 %v3508, %v3700
        %v3702 = vpop.f32.mrb[0].mxu0
        %v3703 = vadd.f32 %v3510, %v3702
        %v3704 = vpop.f32.mrb[0].mxu0
        %v3705 = vadd.f32 %v3512, %v3704
        %3706 = vmatprep.mubr.bf16.mxu0 %v1020
        %3707 = vmatmul.mubr.bf16.gmra.mrb[0].mxu0 %v1019
        %v3708 = vpop.f32.mrb[0].mxu0
        %v3709 = vadd.f32 %v3516, %v3708
        %v3710 = vpop.f32.mrb[0].mxu0
        %v3711 = vadd.f32 %v3518, %v3710
        %v3712 = vpop.f32.mrb[0].mxu0
        %v3713 = vadd.f32 %v3520, %v3712
        %v3714 = vpop.f32.mrb[0].mxu0
        %v3715 = vadd.f32 %v3522, %v3714
        %3716 = vmatprep.mubr.bf16.mxu0 %v1024
        %3717 = vmatmul.mubr.bf16.gmra.mrb[0].mxu0 %v1023
        %v3718 = vpop.f32.mrb[0].mxu0
        %v3719 = vadd.f32 %v3526, %v3718
        %v3720 = vpop.f32.mrb[0].mxu0
        %v3721 = vadd.f32 %v3528, %v3720
        %v3722 = vpop.f32.mrb[0].mxu0
        %v3723 = vadd.f32 %v3530, %v3722
        %v3724 = vpop.f32.mrb[0].mxu0
        %v3725 = vadd.f32 %v3532, %v3724
        %3726 = vmatprep.mubr.bf16.mxu0 %v1028
        %3727 = vmatmul.mubr.bf16.gmra.mrb[0].mxu0 %v1027
        %v3728 = vpop.f32.mrb[0].mxu0
        %v3729 = vadd.f32 %v3536, %v3728
        %v3730 = vpop.f32.mrb[0].mxu0
        %v3731 = vadd.f32 %v3538, %v3730
        %v3732 = vpop.f32.mrb[0].mxu0
        %v3733 = vadd.f32 %v3540, %v3732
        %v3734 = vpop.f32.mrb[0].mxu0
        %v3735 = vadd.f32 %v3542, %v3734
        %3736 = vmatprep.mubr.bf16.mxu0 %v1032
        %3737 = vmatmul.mubr.bf16.gmra.mrb[0].mxu0 %v1031
        %v3738 = vpop.f32.mrb[0].mxu0
        %v3739 = vadd.f32 %v3546, %v3738
        %v3740 = vpop.f32.mrb[0].mxu0
        %v3741 = vadd.f32 %v3548, %v3740
        %v3742 = vpop.f32.mrb[0].mxu0
        %v3743 = vadd.f32 %v3550, %v3742
        %v3744 = vpop.f32.mrb[0].mxu0
        %v3745 = vadd.f32 %v3552, %v3744
        %3746 = vmatprep.mubr.bf16.mxu0 %v1036
        %3747 = vmatmul.mubr.bf16.gmra.mrb[0].mxu0 %v1035
        %v3748 = vpop.f32.mrb[0].mxu0
        %v3749 = vadd.f32 %v3556, %v3748
        %v3750 = vpop.f32.mrb[0].mxu0
        %v3751 = vadd.f32 %v3558, %v3750
        %v3752 = vpop.f32.mrb[0].mxu0
        %v3753 = vadd.f32 %v3560, %v3752
        %v3754 = vpop.f32.mrb[0].mxu0
        %v3755 = vadd.f32 %v3562, %v3754
        %3756 = vmatprep.mubr.bf16.mxu0 %v1040
        %3757 = vmatmul.mubr.bf16.gmra.mrb[0].mxu0 %v1039
        %v3758 = vpop.f32.mrb[0].mxu0
        %v3759 = vadd.f32 %v3566, %v3758
        %v3760 = vpop.f32.mrb[0].mxu0
        %v3761 = vadd.f32 %v3568, %v3760
        %v3762 = vpop.f32.mrb[0].mxu0
        %v3763 = vadd.f32 %v3570, %v3762
        %v3764 = vpop.f32.mrb[0].mxu0
        %v3765 = vadd.f32 %v3572, %v3764
        %3766 = vmatprep.mubr.bf16.mxu0 %v1044
        %3767 = vmatmul.mubr.bf16.gmra.mrb[0].mxu0 %v1043
        %v3768 = vpop.f32.mrb[0].mxu0
        %v3769 = vadd.f32 %v3576, %v3768
        %v3770 = vpop.f32.mrb[0].mxu0
        %v3771 = vadd.f32 %v3578, %v3770
        %v3772 = vpop.f32.mrb[0].mxu0
        %v3773 = vadd.f32 %v3580, %v3772
        %v3774 = vpop.f32.mrb[0].mxu0
        %v3775 = vadd.f32 %v3582, %v3774
        %3776 = vmatprep.mubr.bf16.mxu0 %v1048
        %3777 = vmatmul.mubr.bf16.gmra.mrb[0].mxu0 %v1047
        %v3778 = vpop.f32.mrb[0].mxu0
        %v3779 = vadd.f32 %v3586, %v3778
        %v3780 = vpop.f32.mrb[0].mxu0
        %v3781 = vadd.f32 %v3588, %v3780
        %v3782 = vpop.f32.mrb[0].mxu0
        %v3783 = vadd.f32 %v3590, %v3782
        %v3784 = vpop.f32.mrb[0].mxu0
        %v3785 = vadd.f32 %v3592, %v3784
        %3786 = vmatprep.mubr.bf16.mxu0 %v1052
        %3787 = vmatmul.mubr.bf16.gmra.mrb[0].mxu0 %v1051
        %v3788 = vpop.f32.mrb[0].mxu0
        %v3789 = vadd.f32 %v3596, %v3788
        %v3790 = vpop.f32.mrb[0].mxu0
        %v3791 = vadd.f32 %v3598, %v3790
        %v3792 = vpop.f32.mrb[0].mxu0
        %v3793 = vadd.f32 %v3600, %v3792
        %v3794 = vpop.f32.mrb[0].mxu0
        %v3795 = vadd.f32 %v3602, %v3794
        %3796 = vmatprep.mubr.bf16.mxu0 %v1056
        %3797 = vmatmul.mubr.bf16.gmra.mrb[0].mxu0 %v1055
        %v3798 = vpop.f32.mrb[0].mxu0
        %v3799 = vadd.f32 %v3606, %v3798
        %v3800 = vpop.f32.mrb[0].mxu0
        %v3801 = vadd.f32 %v3608, %v3800
        %v3802 = vpop.f32.mrb[0].mxu0
        %v3803 = vadd.f32 %v3610, %v3802
        %v3804 = vpop.f32.mrb[0].mxu0
        %v3805 = vadd.f32 %v3612, %v3804
        %3806 = vmatprep.mubr.bf16.mxu0 %v1060
        %3807 = vmatmul.mubr.bf16.gmra.mrb[0].mxu0 %v1059
        %v3808 = vpop.f32.mrb[0].mxu0
        %v3809 = vadd.f32 %v3616, %v3808
        %v3810 = vpop.f32.mrb[0].mxu0
        %v3811 = vadd.f32 %v3618, %v3810
        %v3812 = vpop.f32.mrb[0].mxu0
        %v3813 = vadd.f32 %v3620, %v3812
        %v3814 = vpop.f32.mrb[0].mxu0
        %v3815 = vadd.f32 %v3622, %v3814
        %3816 = vdwg.mxu0
        %3817 = vmatprep.subr.bf16.mxu0 %v2282
        %3818 = vmatpush1.bf16.msra.mxu0 %v2281
        %3819 = vmatprep.subr.bf16.mxu0 %v2294
        %3820 = vmatpush1.bf16.msra.mxu0 %v2293
        %3821 = vmatprep.subr.bf16.mxu0 %v2306
        %3822 = vmatpush1.bf16.msra.mxu0 %v2305
        %3823 = vmatprep.subr.bf16.mxu0 %v2318
        %3824 = vmatpush1.bf16.msra.mxu0 %v2317
        %3825 = vmatprep.subr.bf16.mxu0 %v2330
        %3826 = vmatpush1.bf16.msra.mxu0 %v2329
        %3827 = vmatprep.subr.bf16.mxu0 %v2342
        %3828 = vmatpush1.bf16.msra.mxu0 %v2341
        %3829 = vmatprep.subr.bf16.mxu0 %v2354
        %3830 = vmatpush1.bf16.msra.mxu0 %v2353
        %3831 = vmatprep.subr.bf16.mxu0 %v2366
        %3832 = vmatpush1.bf16.msra.mxu0 %v2365
        %3833 = vmatprep.subr.bf16.mxu0 %v2378
        %3834 = vmatpush1.bf16.msra.mxu0 %v2377
        %3835 = vmatprep.subr.bf16.mxu0 %v2390
        %3836 = vmatpush1.bf16.msra.mxu0 %v2389
        %3837 = vmatprep.subr.bf16.mxu0 %v2402
        %3838 = vmatpush1.bf16.msra.mxu0 %v2401
        %3839 = vmatprep.subr.bf16.mxu0 %v2414
        %3840 = vmatpush1.bf16.msra.mxu0 %v2413
        %3841 = vmatprep.subr.bf16.mxu0 %v2426
        %3842 = vmatpush1.bf16.msra.mxu0 %v2425
        %3843 = vmatprep.subr.bf16.mxu0 %v2438
        %3844 = vmatpush1.bf16.msra.mxu0 %v2437
        %3845 = vmatprep.subr.bf16.mxu0 %v2450
        %3846 = vmatpush1.bf16.msra.mxu0 %v2449
        %3847 = vmatprep.subr.bf16.mxu0 %v2462
        %3848 = vmatpush1.bf16.msra.mxu0 %v2461
        %3849 = vmatprep.mubr.bf16.mxu0 %v998
        %3850 = vmatmul.mubr.bf16.gmra.mrb[0].mxu0 %v997
        %v3851 = vpop.f32.mrb[0].mxu0
        %v3852 = vadd.f32 %v764, %v3851
        %v3853 = vpop.f32.mrb[0].mxu0
        %v3854 = vadd.f32 %v768, %v3853
        %v3855 = vpop.f32.mrb[0].mxu0
        %v3856 = vadd.f32 %v764, %v3855
        %v3857 = vpop.f32.mrb[0].mxu0
        %v3858 = vadd.f32 %v768, %v3857
        %3859 = vmatprep.mubr.bf16.mxu0 %v1002
        %3860 = vmatmul.mubr.bf16.gmra.mrb[0].mxu0 %v1001
        %v3861 = vpop.f32.mrb[0].mxu0
        %v3862 = vadd.f32 %v764, %v3861
        %v3863 = vpop.f32.mrb[0].mxu0
        %v3864 = vadd.f32 %v768, %v3863
        %v3865 = vpop.f32.mrb[0].mxu0
        %v3866 = vadd.f32 %v764, %v3865
        %v3867 = vpop.f32.mrb[0].mxu0
        %v3868 = vadd.f32 %v768, %v3867
        %3869 = vmatprep.mubr.bf16.mxu0 %v1006
        %3870 = vmatmul.mubr.bf16.gmra.mrb[0].mxu0 %v1005
        %v3871 = vpop.f32.mrb[0].mxu0
        %v3872 = vadd.f32 %v764, %v3871
        %v3873 = vpop.f32.mrb[0].mxu0
        %v3874 = vadd.f32 %v768, %v3873
        %v3875 = vpop.f32.mrb[0].mxu0
        %v3876 = vadd.f32 %v764, %v3875
        %v3877 = vpop.f32.mrb[0].mxu0
        %v3878 = vadd.f32 %v768, %v3877
        %3879 = vmatprep.mubr.bf16.mxu0 %v1010
        %3880 = vmatmul.mubr.bf16.gmra.mrb[0].mxu0 %v1009
        %v3881 = vpop.f32.mrb[0].mxu0
        %v3882 = vadd.f32 %v764, %v3881
        %v3883 = vpop.f32.mrb[0].mxu0
        %v3884 = vadd.f32 %v768, %v3883
        %v3885 = vpop.f32.mrb[0].mxu0
        %v3886 = vadd.f32 %v764, %v3885
        %v3887 = vpop.f32.mrb[0].mxu0
        %v3888 = vadd.f32 %v768, %v3887
        %3889 = vmatprep.mubr.bf16.mxu0 %v1014
        %3890 = vmatmul.mubr.bf16.gmra.mrb[0].mxu0 %v1013
        %v3891 = vpop.f32.mrb[0].mxu0
        %v3892 = vadd.f32 %v764, %v3891
        %v3893 = vpop.f32.mrb[0].mxu0
        %v3894 = vadd.f32 %v768, %v3893
        %v3895 = vpop.f32.mrb[0].mxu0
        %v3896 = vadd.f32 %v764, %v3895
        %v3897 = vpop.f32.mrb[0].mxu0
        %v3898 = vadd.f32 %v768, %v3897
        %3899 = vmatprep.mubr.bf16.mxu0 %v1018
        %3900 = vmatmul.mubr.bf16.gmra.mrb[0].mxu0 %v1017
        %v3901 = vpop.f32.mrb[0].mxu0
        %v3902 = vadd.f32 %v764, %v3901
        %v3903 = vpop.f32.mrb[0].mxu0
        %v3904 = vadd.f32 %v768, %v3903
        %v3905 = vpop.f32.mrb[0].mxu0
        %v3906 = vadd.f32 %v764, %v3905
        %v3907 = vpop.f32.mrb[0].mxu0
        %v3908 = vadd.f32 %v768, %v3907
        %3909 = vmatprep.mubr.bf16.mxu0 %v1022
        %3910 = vmatmul.mubr.bf16.gmra.mrb[0].mxu0 %v1021
        %v3911 = vpop.f32.mrb[0].mxu0
        %v3912 = vadd.f32 %v764, %v3911
        %v3913 = vpop.f32.mrb[0].mxu0
        %v3914 = vadd.f32 %v768, %v3913
        %v3915 = vpop.f32.mrb[0].mxu0
        %v3916 = vadd.f32 %v764, %v3915
        %v3917 = vpop.f32.mrb[0].mxu0
        %v3918 = vadd.f32 %v768, %v3917
        %3919 = vmatprep.mubr.bf16.mxu0 %v1026
        %3920 = vmatmul.mubr.bf16.gmra.mrb[0].mxu0 %v1025
        %v3921 = vpop.f32.mrb[0].mxu0
        %v3922 = vadd.f32 %v764, %v3921
        %v3923 = vpop.f32.mrb[0].mxu0
        %v3924 = vadd.f32 %v768, %v3923
        %v3925 = vpop.f32.mrb[0].mxu0
        %v3926 = vadd.f32 %v764, %v3925
        %v3927 = vpop.f32.mrb[0].mxu0
        %v3928 = vadd.f32 %v768, %v3927
        %3929 = vmatprep.mubr.bf16.mxu0 %v1030
        %3930 = vmatmul.mubr.bf16.gmra.mrb[0].mxu0 %v1029
        %v3931 = vpop.f32.mrb[0].mxu0
        %v3932 = vadd.f32 %v764, %v3931
        %v3933 = vpop.f32.mrb[0].mxu0
        %v3934 = vadd.f32 %v768, %v3933
        %v3935 = vpop.f32.mrb[0].mxu0
        %v3936 = vadd.f32 %v764, %v3935
        %v3937 = vpop.f32.mrb[0].mxu0
        %v3938 = vadd.f32 %v768, %v3937
        %3939 = vmatprep.mubr.bf16.mxu0 %v1034
        %3940 = vmatmul.mubr.bf16.gmra.mrb[0].mxu0 %v1033
        %v3941 = vpop.f32.mrb[0].mxu0
        %v3942 = vadd.f32 %v764, %v3941
        %v3943 = vpop.f32.mrb[0].mxu0
        %v3944 = vadd.f32 %v768, %v3943
        %v3945 = vpop.f32.mrb[0].mxu0
        %v3946 = vadd.f32 %v764, %v3945
        %v3947 = vpop.f32.mrb[0].mxu0
        %v3948 = vadd.f32 %v768, %v3947
        %3949 = vmatprep.mubr.bf16.mxu0 %v1038
        %3950 = vmatmul.mubr.bf16.gmra.mrb[0].mxu0 %v1037
        %v3951 = vpop.f32.mrb[0].mxu0
        %v3952 = vadd.f32 %v764, %v3951
        %v3953 = vpop.f32.mrb[0].mxu0
        %v3954 = vadd.f32 %v768, %v3953
        %v3955 = vpop.f32.mrb[0].mxu0
        %v3956 = vadd.f32 %v764, %v3955
        %v3957 = vpop.f32.mrb[0].mxu0
        %v3958 = vadd.f32 %v768, %v3957
        %3959 = vmatprep.mubr.bf16.mxu0 %v1042
        %3960 = vmatmul.mubr.bf16.gmra.mrb[0].mxu0 %v1041
        %v3961 = vpop.f32.mrb[0].mxu0
        %v3962 = vadd.f32 %v764, %v3961
        %v3963 = vpop.f32.mrb[0].mxu0
        %v3964 = vadd.f32 %v768, %v3963
        %v3965 = vpop.f32.mrb[0].mxu0
        %v3966 = vadd.f32 %v764, %v3965
        %v3967 = vpop.f32.mrb[0].mxu0
        %v3968 = vadd.f32 %v768, %v3967
        %3969 = vmatprep.mubr.bf16.mxu0 %v1046
        %3970 = vmatmul.mubr.bf16.gmra.mrb[0].mxu0 %v1045
        %v3971 = vpop.f32.mrb[0].mxu0
        %v3972 = vadd.f32 %v764, %v3971
        %v3973 = vpop.f32.mrb[0].mxu0
        %v3974 = vadd.f32 %v768, %v3973
        %v3975 = vpop.f32.mrb[0].mxu0
        %v3976 = vadd.f32 %v764, %v3975
        %v3977 = vpop.f32.mrb[0].mxu0
        %v3978 = vadd.f32 %v768, %v3977
        %3979 = vmatprep.mubr.bf16.mxu0 %v1050
        %3980 = vmatmul.mubr.bf16.gmra.mrb[0].mxu0 %v1049
        %v3981 = vpop.f32.mrb[0].mxu0
        %v3982 = vadd.f32 %v764, %v3981
        %v3983 = vpop.f32.mrb[0].mxu0
        %v3984 = vadd.f32 %v768, %v3983
        %v3985 = vpop.f32.mrb[0].mxu0
        %v3986 = vadd.f32 %v764, %v3985
        %v3987 = vpop.f32.mrb[0].mxu0
        %v3988 = vadd.f32 %v768, %v3987
        %3989 = vmatprep.mubr.bf16.mxu0 %v1054
        %3990 = vmatmul.mubr.bf16.gmra.mrb[0].mxu0 %v1053
        %v3991 = vpop.f32.mrb[0].mxu0
        %v3992 = vadd.f32 %v764, %v3991
        %v3993 = vpop.f32.mrb[0].mxu0
        %v3994 = vadd.f32 %v768, %v3993
        %v3995 = vpop.f32.mrb[0].mxu0
        %v3996 = vadd.f32 %v764, %v3995
        %v3997 = vpop.f32.mrb[0].mxu0
        %v3998 = vadd.f32 %v768, %v3997
        %3999 = vmatprep.mubr.bf16.mxu0 %v1058
        %4000 = vmatmul.mubr.bf16.gmra.mrb[0].mxu0 %v1057
        %v4001 = vpop.f32.mrb[0].mxu0
        %v4002 = vadd.f32 %v764, %v4001
        %v4003 = vpop.f32.mrb[0].mxu0
        %v4004 = vadd.f32 %v768, %v4003
        %v4005 = vpop.f32.mrb[0].mxu0
        %v4006 = vadd.f32 %v764, %v4005
        %v4007 = vpop.f32.mrb[0].mxu0
        %v4008 = vadd.f32 %v768, %v4007
        %4009 = vdwg.mxu0
        %4010 = vmatprep.subr.bf16.mxu0 %v2474
        %4011 = vmatpush1.bf16.msra.mxu0 %v2473
        %4012 = vmatprep.subr.bf16.mxu0 %v2486
        %4013 = vmatpush1.bf16.msra.mxu0 %v2485
        %4014 = vmatprep.subr.bf16.mxu0 %v2498
        %4015 = vmatpush1.bf16.msra.mxu0 %v2497
        %4016 = vmatprep.subr.bf16.mxu0 %v2510
        %4017 = vmatpush1.bf16.msra.mxu0 %v2509
        %4018 = vmatprep.subr.bf16.mxu0 %v2522
        %4019 = vmatpush1.bf16.msra.mxu0 %v2521
        %4020 = vmatprep.subr.bf16.mxu0 %v2534
        %4021 = vmatpush1.bf16.msra.mxu0 %v2533
        %4022 = vmatprep.subr.bf16.mxu0 %v2546
        %4023 = vmatpush1.bf16.msra.mxu0 %v2545
        %4024 = vmatprep.subr.bf16.mxu0 %v2558
        %4025 = vmatpush1.bf16.msra.mxu0 %v2557
        %4026 = vmatprep.subr.bf16.mxu0 %v2570
        %4027 = vmatpush1.bf16.msra.mxu0 %v2569
        %4028 = vmatprep.subr.bf16.mxu0 %v2582
        %4029 = vmatpush1.bf16.msra.mxu0 %v2581
        %4030 = vmatprep.subr.bf16.mxu0 %v2594
        %4031 = vmatpush1.bf16.msra.mxu0 %v2593
        %4032 = vmatprep.subr.bf16.mxu0 %v2606
        %4033 = vmatpush1.bf16.msra.mxu0 %v2605
        %4034 = vmatprep.subr.bf16.mxu0 %v2618
        %4035 = vmatpush1.bf16.msra.mxu0 %v2617
        %4036 = vmatprep.subr.bf16.mxu0 %v2630
        %4037 = vmatpush1.bf16.msra.mxu0 %v2629
        %4038 = vmatprep.subr.bf16.mxu0 %v2642
        %4039 = vmatpush1.bf16.msra.mxu0 %v2641
        %4040 = vmatprep.subr.bf16.mxu0 %v2654
        %4041 = vmatpush1.bf16.msra.mxu0 %v2653
        %4042 = vmatprep.mubr.bf16.mxu0 %v1000
        %4043 = vmatmul.mubr.bf16.gmra.mrb[0].mxu0 %v999
        %v4044 = vpop.f32.mrb[0].mxu0
        %v4045 = vadd.f32 %v3852, %v4044
        %v4046 = vpop.f32.mrb[0].mxu0
        %v4047 = vadd.f32 %v3854, %v4046
        %v4048 = vpop.f32.mrb[0].mxu0
        %v4049 = vadd.f32 %v3856, %v4048
        %v4050 = vpop.f32.mrb[0].mxu0
        %v4051 = vadd.f32 %v3858, %v4050
        %4052 = vmatprep.mubr.bf16.mxu0 %v1004
        %4053 = vmatmul.mubr.bf16.gmra.mrb[0].mxu0 %v1003
        %v4054 = vpop.f32.mrb[0].mxu0
        %v4055 = vadd.f32 %v3862, %v4054
        %v4056 = vpop.f32.mrb[0].mxu0
        %v4057 = vadd.f32 %v3864, %v4056
        %v4058 = vpop.f32.mrb[0].mxu0
        %v4059 = vadd.f32 %v3866, %v4058
        %v4060 = vpop.f32.mrb[0].mxu0
        %v4061 = vadd.f32 %v3868, %v4060
        %4062 = vmatprep.mubr.bf16.mxu0 %v1008
        %4063 = vmatmul.mubr.bf16.gmra.mrb[0].mxu0 %v1007
        %v4064 = vpop.f32.mrb[0].mxu0
        %v4065 = vadd.f32 %v3872, %v4064
        %v4066 = vpop.f32.mrb[0].mxu0
        %v4067 = vadd.f32 %v3874, %v4066
        %v4068 = vpop.f32.mrb[0].mxu0
        %v4069 = vadd.f32 %v3876, %v4068
        %v4070 = vpop.f32.mrb[0].mxu0
        %v4071 = vadd.f32 %v3878, %v4070
        %4072 = vmatprep.mubr.bf16.mxu0 %v1012
        %4073 = vmatmul.mubr.bf16.gmra.mrb[0].mxu0 %v1011
        %v4074 = vpop.f32.mrb[0].mxu0
        %v4075 = vadd.f32 %v3882, %v4074
        %v4076 = vpop.f32.mrb[0].mxu0
        %v4077 = vadd.f32 %v3884, %v4076
        %v4078 = vpop.f32.mrb[0].mxu0
        %v4079 = vadd.f32 %v3886, %v4078
        %v4080 = vpop.f32.mrb[0].mxu0
        %v4081 = vadd.f32 %v3888, %v4080
        %4082 = vmatprep.mubr.bf16.mxu0 %v1016
        %4083 = vmatmul.mubr.bf16.gmra.mrb[0].mxu0 %v1015
        %v4084 = vpop.f32.mrb[0].mxu0
        %v4085 = vadd.f32 %v3892, %v4084
        %v4086 = vpop.f32.mrb[0].mxu0
        %v4087 = vadd.f32 %v3894, %v4086
        %v4088 = vpop.f32.mrb[0].mxu0
        %v4089 = vadd.f32 %v3896, %v4088
        %v4090 = vpop.f32.mrb[0].mxu0
        %v4091 = vadd.f32 %v3898, %v4090
        %4092 = vmatprep.mubr.bf16.mxu0 %v1020
        %4093 = vmatmul.mubr.bf16.gmra.mrb[0].mxu0 %v1019
        %v4094 = vpop.f32.mrb[0].mxu0
        %v4095 = vadd.f32 %v3902, %v4094
        %v4096 = vpop.f32.mrb[0].mxu0
        %v4097 = vadd.f32 %v3904, %v4096
        %v4098 = vpop.f32.mrb[0].mxu0
        %v4099 = vadd.f32 %v3906, %v4098
        %v4100 = vpop.f32.mrb[0].mxu0
        %v4101 = vadd.f32 %v3908, %v4100
        %4102 = vmatprep.mubr.bf16.mxu0 %v1024
        %4103 = vmatmul.mubr.bf16.gmra.mrb[0].mxu0 %v1023
        %v4104 = vpop.f32.mrb[0].mxu0
        %v4105 = vadd.f32 %v3912, %v4104
        %v4106 = vpop.f32.mrb[0].mxu0
        %v4107 = vadd.f32 %v3914, %v4106
        %v4108 = vpop.f32.mrb[0].mxu0
        %v4109 = vadd.f32 %v3916, %v4108
        %v4110 = vpop.f32.mrb[0].mxu0
        %v4111 = vadd.f32 %v3918, %v4110
        %4112 = vmatprep.mubr.bf16.mxu0 %v1028
        %4113 = vmatmul.mubr.bf16.gmra.mrb[0].mxu0 %v1027
        %v4114 = vpop.f32.mrb[0].mxu0
        %v4115 = vadd.f32 %v3922, %v4114
        %v4116 = vpop.f32.mrb[0].mxu0
        %v4117 = vadd.f32 %v3924, %v4116
        %v4118 = vpop.f32.mrb[0].mxu0
        %v4119 = vadd.f32 %v3926, %v4118
        %v4120 = vpop.f32.mrb[0].mxu0
        %v4121 = vadd.f32 %v3928, %v4120
        %4122 = vmatprep.mubr.bf16.mxu0 %v1032
        %4123 = vmatmul.mubr.bf16.gmra.mrb[0].mxu0 %v1031
        %v4124 = vpop.f32.mrb[0].mxu0
        %v4125 = vadd.f32 %v3932, %v4124
        %v4126 = vpop.f32.mrb[0].mxu0
        %v4127 = vadd.f32 %v3934, %v4126
        %v4128 = vpop.f32.mrb[0].mxu0
        %v4129 = vadd.f32 %v3936, %v4128
        %v4130 = vpop.f32.mrb[0].mxu0
        %v4131 = vadd.f32 %v3938, %v4130
        %4132 = vmatprep.mubr.bf16.mxu0 %v1036
        %4133 = vmatmul.mubr.bf16.gmra.mrb[0].mxu0 %v1035
        %v4134 = vpop.f32.mrb[0].mxu0
        %v4135 = vadd.f32 %v3942, %v4134
        %v4136 = vpop.f32.mrb[0].mxu0
        %v4137 = vadd.f32 %v3944, %v4136
        %v4138 = vpop.f32.mrb[0].mxu0
        %v4139 = vadd.f32 %v3946, %v4138
        %v4140 = vpop.f32.mrb[0].mxu0
        %v4141 = vadd.f32 %v3948, %v4140
        %4142 = vmatprep.mubr.bf16.mxu0 %v1040
        %4143 = vmatmul.mubr.bf16.gmra.mrb[0].mxu0 %v1039
        %v4144 = vpop.f32.mrb[0].mxu0
        %v4145 = vadd.f32 %v3952, %v4144
        %v4146 = vpop.f32.mrb[0].mxu0
        %v4147 = vadd.f32 %v3954, %v4146
        %v4148 = vpop.f32.mrb[0].mxu0
        %v4149 = vadd.f32 %v3956, %v4148
        %v4150 = vpop.f32.mrb[0].mxu0
        %v4151 = vadd.f32 %v3958, %v4150
        %4152 = vmatprep.mubr.bf16.mxu0 %v1044
        %4153 = vmatmul.mubr.bf16.gmra.mrb[0].mxu0 %v1043
        %v4154 = vpop.f32.mrb[0].mxu0
        %v4155 = vadd.f32 %v3962, %v4154
        %v4156 = vpop.f32.mrb[0].mxu0
        %v4157 = vadd.f32 %v3964, %v4156
        %v4158 = vpop.f32.mrb[0].mxu0
        %v4159 = vadd.f32 %v3966, %v4158
        %v4160 = vpop.f32.mrb[0].mxu0
        %v4161 = vadd.f32 %v3968, %v4160
        %4162 = vmatprep.mubr.bf16.mxu0 %v1048
        %4163 = vmatmul.mubr.bf16.gmra.mrb[0].mxu0 %v1047
        %v4164 = vpop.f32.mrb[0].mxu0
        %v4165 = vadd.f32 %v3972, %v4164
        %v4166 = vpop.f32.mrb[0].mxu0
        %v4167 = vadd.f32 %v3974, %v4166
        %v4168 = vpop.f32.mrb[0].mxu0
        %v4169 = vadd.f32 %v3976, %v4168
        %v4170 = vpop.f32.mrb[0].mxu0
        %v4171 = vadd.f32 %v3978, %v4170
        %4172 = vmatprep.mubr.bf16.mxu0 %v1052
        %4173 = vmatmul.mubr.bf16.gmra.mrb[0].mxu0 %v1051
        %v4174 = vpop.f32.mrb[0].mxu0
        %v4175 = vadd.f32 %v3982, %v4174
        %v4176 = vpop.f32.mrb[0].mxu0
        %v4177 = vadd.f32 %v3984, %v4176
        %v4178 = vpop.f32.mrb[0].mxu0
        %v4179 = vadd.f32 %v3986, %v4178
        %v4180 = vpop.f32.mrb[0].mxu0
        %v4181 = vadd.f32 %v3988, %v4180
        %4182 = vmatprep.mubr.bf16.mxu0 %v1056
        %4183 = vmatmul.mubr.bf16.gmra.mrb[0].mxu0 %v1055
        %v4184 = vpop.f32.mrb[0].mxu0
        %v4185 = vadd.f32 %v3992, %v4184
        %v4186 = vpop.f32.mrb[0].mxu0
        %v4187 = vadd.f32 %v3994, %v4186
        %v4188 = vpop.f32.mrb[0].mxu0
        %v4189 = vadd.f32 %v3996, %v4188
        %v4190 = vpop.f32.mrb[0].mxu0
        %v4191 = vadd.f32 %v3998, %v4190
        %4192 = vmatprep.mubr.bf16.mxu0 %v1060
        %4193 = vmatmul.mubr.bf16.gmra.mrb[0].mxu0 %v1059
        %v4194 = vpop.f32.mrb[0].mxu0
        %v4195 = vadd.f32 %v4002, %v4194
        %v4196 = vpop.f32.mrb[0].mxu0
        %v4197 = vadd.f32 %v4004, %v4196
        %v4198 = vpop.f32.mrb[0].mxu0
        %v4199 = vadd.f32 %v4006, %v4198
        %v4200 = vpop.f32.mrb[0].mxu0
        %v4201 = vadd.f32 %v4008, %v4200
        %4202 = vdwg.mxu0
        %4203 = vmatprep.subr.bf16.mxu0 %v2284
        %4204 = vmatpush1.bf16.msra.mxu0 %v2283
        %4205 = vmatprep.subr.bf16.mxu0 %v2296
        %4206 = vmatpush1.bf16.msra.mxu0 %v2295
        %4207 = vmatprep.subr.bf16.mxu0 %v2308
        %4208 = vmatpush1.bf16.msra.mxu0 %v2307
        %4209 = vmatprep.subr.bf16.mxu0 %v2320
        %4210 = vmatpush1.bf16.msra.mxu0 %v2319
        %4211 = vmatprep.subr.bf16.mxu0 %v2332
        %4212 = vmatpush1.bf16.msra.mxu0 %v2331
        %4213 = vmatprep.subr.bf16.mxu0 %v2344
        %4214 = vmatpush1.bf16.msra.mxu0 %v2343
        %4215 = vmatprep.subr.bf16.mxu0 %v2356
        %4216 = vmatpush1.bf16.msra.mxu0 %v2355
        %4217 = vmatprep.subr.bf16.mxu0 %v2368
        %4218 = vmatpush1.bf16.msra.mxu0 %v2367
        %4219 = vmatprep.subr.bf16.mxu0 %v2380
        %4220 = vmatpush1.bf16.msra.mxu0 %v2379
        %4221 = vmatprep.subr.bf16.mxu0 %v2392
        %4222 = vmatpush1.bf16.msra.mxu0 %v2391
        %4223 = vmatprep.subr.bf16.mxu0 %v2404
        %4224 = vmatpush1.bf16.msra.mxu0 %v2403
        %4225 = vmatprep.subr.bf16.mxu0 %v2416
        %4226 = vmatpush1.bf16.msra.mxu0 %v2415
        %4227 = vmatprep.subr.bf16.mxu0 %v2428
        %4228 = vmatpush1.bf16.msra.mxu0 %v2427
        %4229 = vmatprep.subr.bf16.mxu0 %v2440
        %4230 = vmatpush1.bf16.msra.mxu0 %v2439
        %4231 = vmatprep.subr.bf16.mxu0 %v2452
        %4232 = vmatpush1.bf16.msra.mxu0 %v2451
        %4233 = vmatprep.subr.bf16.mxu0 %v2464
        %4234 = vmatpush1.bf16.msra.mxu0 %v2463
        %4235 = vmatprep.mubr.bf16.mxu0 %v998
        %4236 = vmatmul.mubr.bf16.gmra.mrb[0].mxu0 %v997
        %v4237 = vpop.f32.mrb[0].mxu0
        %v4238 = vadd.f32 %v772, %v4237
        %v4239 = vpop.f32.mrb[0].mxu0
        %v4240 = vadd.f32 %v776, %v4239
        %v4241 = vpop.f32.mrb[0].mxu0
        %v4242 = vadd.f32 %v772, %v4241
        %v4243 = vpop.f32.mrb[0].mxu0
        %v4244 = vadd.f32 %v776, %v4243
        %4245 = vmatprep.mubr.bf16.mxu0 %v1002
        %4246 = vmatmul.mubr.bf16.gmra.mrb[0].mxu0 %v1001
        %v4247 = vpop.f32.mrb[0].mxu0
        %v4248 = vadd.f32 %v772, %v4247
        %v4249 = vpop.f32.mrb[0].mxu0
        %v4250 = vadd.f32 %v776, %v4249
        %v4251 = vpop.f32.mrb[0].mxu0
        %v4252 = vadd.f32 %v772, %v4251
        %v4253 = vpop.f32.mrb[0].mxu0
        %v4254 = vadd.f32 %v776, %v4253
        %4255 = vmatprep.mubr.bf16.mxu0 %v1006
        %4256 = vmatmul.mubr.bf16.gmra.mrb[0].mxu0 %v1005
        %v4257 = vpop.f32.mrb[0].mxu0
        %v4258 = vadd.f32 %v772, %v4257
        %v4259 = vpop.f32.mrb[0].mxu0
        %v4260 = vadd.f32 %v776, %v4259
        %v4261 = vpop.f32.mrb[0].mxu0
        %v4262 = vadd.f32 %v772, %v4261
        %v4263 = vpop.f32.mrb[0].mxu0
        %v4264 = vadd.f32 %v776, %v4263
        %4265 = vmatprep.mubr.bf16.mxu0 %v1010
        %4266 = vmatmul.mubr.bf16.gmra.mrb[0].mxu0 %v1009
        %v4267 = vpop.f32.mrb[0].mxu0
        %v4268 = vadd.f32 %v772, %v4267
        %v4269 = vpop.f32.mrb[0].mxu0
        %v4270 = vadd.f32 %v776, %v4269
        %v4271 = vpop.f32.mrb[0].mxu0
        %v4272 = vadd.f32 %v772, %v4271
        %v4273 = vpop.f32.mrb[0].mxu0
        %v4274 = vadd.f32 %v776, %v4273
        %4275 = vmatprep.mubr.bf16.mxu0 %v1014
        %4276 = vmatmul.mubr.bf16.gmra.mrb[0].mxu0 %v1013
        %v4277 = vpop.f32.mrb[0].mxu0
        %v4278 = vadd.f32 %v772, %v4277
        %v4279 = vpop.f32.mrb[0].mxu0
        %v4280 = vadd.f32 %v776, %v4279
        %v4281 = vpop.f32.mrb[0].mxu0
        %v4282 = vadd.f32 %v772, %v4281
        %v4283 = vpop.f32.mrb[0].mxu0
        %v4284 = vadd.f32 %v776, %v4283
        %4285 = vmatprep.mubr.bf16.mxu0 %v1018
        %4286 = vmatmul.mubr.bf16.gmra.mrb[0].mxu0 %v1017
        %v4287 = vpop.f32.mrb[0].mxu0
        %v4288 = vadd.f32 %v772, %v4287
        %v4289 = vpop.f32.mrb[0].mxu0
        %v4290 = vadd.f32 %v776, %v4289
        %v4291 = vpop.f32.mrb[0].mxu0
        %v4292 = vadd.f32 %v772, %v4291
        %v4293 = vpop.f32.mrb[0].mxu0
        %v4294 = vadd.f32 %v776, %v4293
        %4295 = vmatprep.mubr.bf16.mxu0 %v1022
        %4296 = vmatmul.mubr.bf16.gmra.mrb[0].mxu0 %v1021
        %v4297 = vpop.f32.mrb[0].mxu0
        %v4298 = vadd.f32 %v772, %v4297
        %v4299 = vpop.f32.mrb[0].mxu0
        %v4300 = vadd.f32 %v776, %v4299
        %v4301 = vpop.f32.mrb[0].mxu0
        %v4302 = vadd.f32 %v772, %v4301
        %v4303 = vpop.f32.mrb[0].mxu0
        %v4304 = vadd.f32 %v776, %v4303
        %4305 = vmatprep.mubr.bf16.mxu0 %v1026
        %4306 = vmatmul.mubr.bf16.gmra.mrb[0].mxu0 %v1025
        %v4307 = vpop.f32.mrb[0].mxu0
        %v4308 = vadd.f32 %v772, %v4307
        %v4309 = vpop.f32.mrb[0].mxu0
        %v4310 = vadd.f32 %v776, %v4309
        %v4311 = vpop.f32.mrb[0].mxu0
        %v4312 = vadd.f32 %v772, %v4311
        %v4313 = vpop.f32.mrb[0].mxu0
        %v4314 = vadd.f32 %v776, %v4313
        %4315 = vmatprep.mubr.bf16.mxu0 %v1030
        %4316 = vmatmul.mubr.bf16.gmra.mrb[0].mxu0 %v1029
        %v4317 = vpop.f32.mrb[0].mxu0
        %v4318 = vadd.f32 %v772, %v4317
        %v4319 = vpop.f32.mrb[0].mxu0
        %v4320 = vadd.f32 %v776, %v4319
        %v4321 = vpop.f32.mrb[0].mxu0
        %v4322 = vadd.f32 %v772, %v4321
        %v4323 = vpop.f32.mrb[0].mxu0
        %v4324 = vadd.f32 %v776, %v4323
        %4325 = vmatprep.mubr.bf16.mxu0 %v1034
        %4326 = vmatmul.mubr.bf16.gmra.mrb[0].mxu0 %v1033
        %v4327 = vpop.f32.mrb[0].mxu0
        %v4328 = vadd.f32 %v772, %v4327
        %v4329 = vpop.f32.mrb[0].mxu0
        %v4330 = vadd.f32 %v776, %v4329
        %v4331 = vpop.f32.mrb[0].mxu0
        %v4332 = vadd.f32 %v772, %v4331
        %v4333 = vpop.f32.mrb[0].mxu0
        %v4334 = vadd.f32 %v776, %v4333
        %4335 = vmatprep.mubr.bf16.mxu0 %v1038
        %4336 = vmatmul.mubr.bf16.gmra.mrb[0].mxu0 %v1037
        %v4337 = vpop.f32.mrb[0].mxu0
        %v4338 = vadd.f32 %v772, %v4337
        %v4339 = vpop.f32.mrb[0].mxu0
        %v4340 = vadd.f32 %v776, %v4339
        %v4341 = vpop.f32.mrb[0].mxu0
        %v4342 = vadd.f32 %v772, %v4341
        %v4343 = vpop.f32.mrb[0].mxu0
        %v4344 = vadd.f32 %v776, %v4343
        %4345 = vmatprep.mubr.bf16.mxu0 %v1042
        %4346 = vmatmul.mubr.bf16.gmra.mrb[0].mxu0 %v1041
        %v4347 = vpop.f32.mrb[0].mxu0
        %v4348 = vadd.f32 %v772, %v4347
        %v4349 = vpop.f32.mrb[0].mxu0
        %v4350 = vadd.f32 %v776, %v4349
        %v4351 = vpop.f32.mrb[0].mxu0
        %v4352 = vadd.f32 %v772, %v4351
        %v4353 = vpop.f32.mrb[0].mxu0
        %v4354 = vadd.f32 %v776, %v4353
        %4355 = vmatprep.mubr.bf16.mxu0 %v1046
        %4356 = vmatmul.mubr.bf16.gmra.mrb[0].mxu0 %v1045
        %v4357 = vpop.f32.mrb[0].mxu0
        %v4358 = vadd.f32 %v772, %v4357
        %v4359 = vpop.f32.mrb[0].mxu0
        %v4360 = vadd.f32 %v776, %v4359
        %v4361 = vpop.f32.mrb[0].mxu0
        %v4362 = vadd.f32 %v772, %v4361
        %v4363 = vpop.f32.mrb[0].mxu0
        %v4364 = vadd.f32 %v776, %v4363
        %4365 = vmatprep.mubr.bf16.mxu0 %v1050
        %4366 = vmatmul.mubr.bf16.gmra.mrb[0].mxu0 %v1049
        %v4367 = vpop.f32.mrb[0].mxu0
        %v4368 = vadd.f32 %v772, %v4367
        %v4369 = vpop.f32.mrb[0].mxu0
        %v4370 = vadd.f32 %v776, %v4369
        %v4371 = vpop.f32.mrb[0].mxu0
        %v4372 = vadd.f32 %v772, %v4371
        %v4373 = vpop.f32.mrb[0].mxu0
        %v4374 = vadd.f32 %v776, %v4373
        %4375 = vmatprep.mubr.bf16.mxu0 %v1054
        %4376 = vmatmul.mubr.bf16.gmra.mrb[0].mxu0 %v1053
        %v4377 = vpop.f32.mrb[0].mxu0
        %v4378 = vadd.f32 %v772, %v4377
        %v4379 = vpop.f32.mrb[0].mxu0
        %v4380 = vadd.f32 %v776, %v4379
        %v4381 = vpop.f32.mrb[0].mxu0
        %v4382 = vadd.f32 %v772, %v4381
        %v4383 = vpop.f32.mrb[0].mxu0
        %v4384 = vadd.f32 %v776, %v4383
        %4385 = vmatprep.mubr.bf16.mxu0 %v1058
        %4386 = vmatmul.mubr.bf16.gmra.mrb[0].mxu0 %v1057
        %v4387 = vpop.f32.mrb[0].mxu0
        %v4388 = vadd.f32 %v772, %v4387
        %v4389 = vpop.f32.mrb[0].mxu0
        %v4390 = vadd.f32 %v776, %v4389
        %v4391 = vpop.f32.mrb[0].mxu0
        %v4392 = vadd.f32 %v772, %v4391
        %v4393 = vpop.f32.mrb[0].mxu0
        %v4394 = vadd.f32 %v776, %v4393
        %4395 = vdwg.mxu0
        %4396 = vmatprep.subr.bf16.mxu0 %v2476
        %4397 = vmatpush1.bf16.msra.mxu0 %v2475
        %4398 = vmatprep.subr.bf16.mxu0 %v2488
        %4399 = vmatpush1.bf16.msra.mxu0 %v2487
        %4400 = vmatprep.subr.bf16.mxu0 %v2500
        %4401 = vmatpush1.bf16.msra.mxu0 %v2499
        %4402 = vmatprep.subr.bf16.mxu0 %v2512
        %4403 = vmatpush1.bf16.msra.mxu0 %v2511
        %4404 = vmatprep.subr.bf16.mxu0 %v2524
        %4405 = vmatpush1.bf16.msra.mxu0 %v2523
        %4406 = vmatprep.subr.bf16.mxu0 %v2536
        %4407 = vmatpush1.bf16.msra.mxu0 %v2535
        %4408 = vmatprep.subr.bf16.mxu0 %v2548
        %4409 = vmatpush1.bf16.msra.mxu0 %v2547
        %4410 = vmatprep.subr.bf16.mxu0 %v2560
        %4411 = vmatpush1.bf16.msra.mxu0 %v2559
        %4412 = vmatprep.subr.bf16.mxu0 %v2572
        %4413 = vmatpush1.bf16.msra.mxu0 %v2571
        %4414 = vmatprep.subr.bf16.mxu0 %v2584
        %4415 = vmatpush1.bf16.msra.mxu0 %v2583
        %4416 = vmatprep.subr.bf16.mxu0 %v2596
        %4417 = vmatpush1.bf16.msra.mxu0 %v2595
        %4418 = vmatprep.subr.bf16.mxu0 %v2608
        %4419 = vmatpush1.bf16.msra.mxu0 %v2607
        %4420 = vmatprep.subr.bf16.mxu0 %v2620
        %4421 = vmatpush1.bf16.msra.mxu0 %v2619
        %4422 = vmatprep.subr.bf16.mxu0 %v2632
        %4423 = vmatpush1.bf16.msra.mxu0 %v2631
        %4424 = vmatprep.subr.bf16.mxu0 %v2644
        %4425 = vmatpush1.bf16.msra.mxu0 %v2643
        %4426 = vmatprep.subr.bf16.mxu0 %v2656
        %4427 = vmatpush1.bf16.msra.mxu0 %v2655
        %4428 = vmatprep.mubr.bf16.mxu0 %v1000
        %4429 = vmatmul.mubr.bf16.gmra.mrb[0].mxu0 %v999
        %v4430 = vpop.f32.mrb[0].mxu0
        %v4431 = vadd.f32 %v4238, %v4430
        %v4432 = vpop.f32.mrb[0].mxu0
        %v4433 = vadd.f32 %v4240, %v4432
        %v4434 = vpop.f32.mrb[0].mxu0
        %v4435 = vadd.f32 %v4242, %v4434
        %v4436 = vpop.f32.mrb[0].mxu0
        %v4437 = vadd.f32 %v4244, %v4436
        %4438 = vmatprep.mubr.bf16.mxu0 %v1004
        %4439 = vmatmul.mubr.bf16.gmra.mrb[0].mxu0 %v1003
        %v4440 = vpop.f32.mrb[0].mxu0
        %v4441 = vadd.f32 %v4248, %v4440
        %v4442 = vpop.f32.mrb[0].mxu0
        %v4443 = vadd.f32 %v4250, %v4442
        %v4444 = vpop.f32.mrb[0].mxu0
        %v4445 = vadd.f32 %v4252, %v4444
        %v4446 = vpop.f32.mrb[0].mxu0
        %v4447 = vadd.f32 %v4254, %v4446
        %4448 = vmatprep.mubr.bf16.mxu0 %v1008
        %4449 = vmatmul.mubr.bf16.gmra.mrb[0].mxu0 %v1007
        %v4450 = vpop.f32.mrb[0].mxu0
        %v4451 = vadd.f32 %v4258, %v4450
        %v4452 = vpop.f32.mrb[0].mxu0
        %v4453 = vadd.f32 %v4260, %v4452
        %v4454 = vpop.f32.mrb[0].mxu0
        %v4455 = vadd.f32 %v4262, %v4454
        %v4456 = vpop.f32.mrb[0].mxu0
        %v4457 = vadd.f32 %v4264, %v4456
        %4458 = vmatprep.mubr.bf16.mxu0 %v1012
        %4459 = vmatmul.mubr.bf16.gmra.mrb[0].mxu0 %v1011
        %v4460 = vpop.f32.mrb[0].mxu0
        %v4461 = vadd.f32 %v4268, %v4460
        %v4462 = vpop.f32.mrb[0].mxu0
        %v4463 = vadd.f32 %v4270, %v4462
        %v4464 = vpop.f32.mrb[0].mxu0
        %v4465 = vadd.f32 %v4272, %v4464
        %v4466 = vpop.f32.mrb[0].mxu0
        %v4467 = vadd.f32 %v4274, %v4466
        %4468 = vmatprep.mubr.bf16.mxu0 %v1016
        %4469 = vmatmul.mubr.bf16.gmra.mrb[0].mxu0 %v1015
        %v4470 = vpop.f32.mrb[0].mxu0
        %v4471 = vadd.f32 %v4278, %v4470
        %v4472 = vpop.f32.mrb[0].mxu0
        %v4473 = vadd.f32 %v4280, %v4472
        %v4474 = vpop.f32.mrb[0].mxu0
        %v4475 = vadd.f32 %v4282, %v4474
        %v4476 = vpop.f32.mrb[0].mxu0
        %v4477 = vadd.f32 %v4284, %v4476
        %4478 = vmatprep.mubr.bf16.mxu0 %v1020
        %4479 = vmatmul.mubr.bf16.gmra.mrb[0].mxu0 %v1019
        %v4480 = vpop.f32.mrb[0].mxu0
        %v4481 = vadd.f32 %v4288, %v4480
        %v4482 = vpop.f32.mrb[0].mxu0
        %v4483 = vadd.f32 %v4290, %v4482
        %v4484 = vpop.f32.mrb[0].mxu0
        %v4485 = vadd.f32 %v4292, %v4484
        %v4486 = vpop.f32.mrb[0].mxu0
        %v4487 = vadd.f32 %v4294, %v4486
        %4488 = vmatprep.mubr.bf16.mxu0 %v1024
        %4489 = vmatmul.mubr.bf16.gmra.mrb[0].mxu0 %v1023
        %v4490 = vpop.f32.mrb[0].mxu0
        %v4491 = vadd.f32 %v4298, %v4490
        %v4492 = vpop.f32.mrb[0].mxu0
        %v4493 = vadd.f32 %v4300, %v4492
        %v4494 = vpop.f32.mrb[0].mxu0
        %v4495 = vadd.f32 %v4302, %v4494
        %v4496 = vpop.f32.mrb[0].mxu0
        %v4497 = vadd.f32 %v4304, %v4496
        %4498 = vmatprep.mubr.bf16.mxu0 %v1028
        %4499 = vmatmul.mubr.bf16.gmra.mrb[0].mxu0 %v1027
        %v4500 = vpop.f32.mrb[0].mxu0
        %v4501 = vadd.f32 %v4308, %v4500
        %v4502 = vpop.f32.mrb[0].mxu0
        %v4503 = vadd.f32 %v4310, %v4502
        %v4504 = vpop.f32.mrb[0].mxu0
        %v4505 = vadd.f32 %v4312, %v4504
        %v4506 = vpop.f32.mrb[0].mxu0
        %v4507 = vadd.f32 %v4314, %v4506
        %4508 = vmatprep.mubr.bf16.mxu0 %v1032
        %4509 = vmatmul.mubr.bf16.gmra.mrb[0].mxu0 %v1031
        %v4510 = vpop.f32.mrb[0].mxu0
        %v4511 = vadd.f32 %v4318, %v4510
        %v4512 = vpop.f32.mrb[0].mxu0
        %v4513 = vadd.f32 %v4320, %v4512
        %v4514 = vpop.f32.mrb[0].mxu0
        %v4515 = vadd.f32 %v4322, %v4514
        %v4516 = vpop.f32.mrb[0].mxu0
        %v4517 = vadd.f32 %v4324, %v4516
        %4518 = vmatprep.mubr.bf16.mxu0 %v1036
        %4519 = vmatmul.mubr.bf16.gmra.mrb[0].mxu0 %v1035
        %v4520 = vpop.f32.mrb[0].mxu0
        %v4521 = vadd.f32 %v4328, %v4520
        %v4522 = vpop.f32.mrb[0].mxu0
        %v4523 = vadd.f32 %v4330, %v4522
        %v4524 = vpop.f32.mrb[0].mxu0
        %v4525 = vadd.f32 %v4332, %v4524
        %v4526 = vpop.f32.mrb[0].mxu0
        %v4527 = vadd.f32 %v4334, %v4526
        %4528 = vmatprep.mubr.bf16.mxu0 %v1040
        %4529 = vmatmul.mubr.bf16.gmra.mrb[0].mxu0 %v1039
        %v4530 = vpop.f32.mrb[0].mxu0
        %v4531 = vadd.f32 %v4338, %v4530
        %v4532 = vpop.f32.mrb[0].mxu0
        %v4533 = vadd.f32 %v4340, %v4532
        %v4534 = vpop.f32.mrb[0].mxu0
        %v4535 = vadd.f32 %v4342, %v4534
        %v4536 = vpop.f32.mrb[0].mxu0
        %v4537 = vadd.f32 %v4344, %v4536
        %4538 = vmatprep.mubr.bf16.mxu0 %v1044
        %4539 = vmatmul.mubr.bf16.gmra.mrb[0].mxu0 %v1043
        %v4540 = vpop.f32.mrb[0].mxu0
        %v4541 = vadd.f32 %v4348, %v4540
        %v4542 = vpop.f32.mrb[0].mxu0
        %v4543 = vadd.f32 %v4350, %v4542
        %v4544 = vpop.f32.mrb[0].mxu0
        %v4545 = vadd.f32 %v4352, %v4544
        %v4546 = vpop.f32.mrb[0].mxu0
        %v4547 = vadd.f32 %v4354, %v4546
        %4548 = vmatprep.mubr.bf16.mxu0 %v1048
        %4549 = vmatmul.mubr.bf16.gmra.mrb[0].mxu0 %v1047
        %v4550 = vpop.f32.mrb[0].mxu0
        %v4551 = vadd.f32 %v4358, %v4550
        %v4552 = vpop.f32.mrb[0].mxu0
        %v4553 = vadd.f32 %v4360, %v4552
        %v4554 = vpop.f32.mrb[0].mxu0
        %v4555 = vadd.f32 %v4362, %v4554
        %v4556 = vpop.f32.mrb[0].mxu0
        %v4557 = vadd.f32 %v4364, %v4556
        %4558 = vmatprep.mubr.bf16.mxu0 %v1052
        %4559 = vmatmul.mubr.bf16.gmra.mrb[0].mxu0 %v1051
        %v4560 = vpop.f32.mrb[0].mxu0
        %v4561 = vadd.f32 %v4368, %v4560
        %v4562 = vpop.f32.mrb[0].mxu0
        %v4563 = vadd.f32 %v4370, %v4562
        %v4564 = vpop.f32.mrb[0].mxu0
        %v4565 = vadd.f32 %v4372, %v4564
        %v4566 = vpop.f32.mrb[0].mxu0
        %v4567 = vadd.f32 %v4374, %v4566
        %4568 = vmatprep.mubr.bf16.mxu0 %v1056
        %4569 = vmatmul.mubr.bf16.gmra.mrb[0].mxu0 %v1055
        %v4570 = vpop.f32.mrb[0].mxu0
        %v4571 = vadd.f32 %v4378, %v4570
        %v4572 = vpop.f32.mrb[0].mxu0
        %v4573 = vadd.f32 %v4380, %v4572
        %v4574 = vpop.f32.mrb[0].mxu0
        %v4575 = vadd.f32 %v4382, %v4574
        %v4576 = vpop.f32.mrb[0].mxu0
        %v4577 = vadd.f32 %v4384, %v4576
        %4578 = vmatprep.mubr.bf16.mxu0 %v1060
        %4579 = vmatmul.mubr.bf16.gmra.mrb[0].mxu0 %v1059
        %v4580 = vpop.f32.mrb[0].mxu0
        %v4581 = vadd.f32 %v4388, %v4580
        %v4582 = vpop.f32.mrb[0].mxu0
        %v4583 = vadd.f32 %v4390, %v4582
        %v4584 = vpop.f32.mrb[0].mxu0
        %v4585 = vadd.f32 %v4392, %v4584
        %v4586 = vpop.f32.mrb[0].mxu0
        %v4587 = vadd.f32 %v4394, %v4586
        %4588 = vdwg.mxu0
        %4589 = vmatprep.subr.bf16.mxu0 %v2286
        %4590 = vmatpush1.bf16.msra.mxu0 %v2285
        %4591 = vmatprep.subr.bf16.mxu0 %v2298
        %4592 = vmatpush1.bf16.msra.mxu0 %v2297
        %4593 = vmatprep.subr.bf16.mxu0 %v2310
        %4594 = vmatpush1.bf16.msra.mxu0 %v2309
        %4595 = vmatprep.subr.bf16.mxu0 %v2322
        %4596 = vmatpush1.bf16.msra.mxu0 %v2321
        %4597 = vmatprep.subr.bf16.mxu0 %v2334
        %4598 = vmatpush1.bf16.msra.mxu0 %v2333
        %4599 = vmatprep.subr.bf16.mxu0 %v2346
        %4600 = vmatpush1.bf16.msra.mxu0 %v2345
        %4601 = vmatprep.subr.bf16.mxu0 %v2358
        %4602 = vmatpush1.bf16.msra.mxu0 %v2357
        %4603 = vmatprep.subr.bf16.mxu0 %v2370
        %4604 = vmatpush1.bf16.msra.mxu0 %v2369
        %4605 = vmatprep.subr.bf16.mxu0 %v2382
        %4606 = vmatpush1.bf16.msra.mxu0 %v2381
        %4607 = vmatprep.subr.bf16.mxu0 %v2394
        %4608 = vmatpush1.bf16.msra.mxu0 %v2393
        %4609 = vmatprep.subr.bf16.mxu0 %v2406
        %4610 = vmatpush1.bf16.msra.mxu0 %v2405
        %4611 = vmatprep.subr.bf16.mxu0 %v2418
        %4612 = vmatpush1.bf16.msra.mxu0 %v2417
        %4613 = vmatprep.subr.bf16.mxu0 %v2430
        %4614 = vmatpush1.bf16.msra.mxu0 %v2429
        %4615 = vmatprep.subr.bf16.mxu0 %v2442
        %4616 = vmatpush1.bf16.msra.mxu0 %v2441
        %4617 = vmatprep.subr.bf16.mxu0 %v2454
        %4618 = vmatpush1.bf16.msra.mxu0 %v2453
        %4619 = vmatprep.subr.bf16.mxu0 %v2466
        %4620 = vmatpush1.bf16.msra.mxu0 %v2465
        %4621 = vmatprep.mubr.bf16.mxu0 %v998
        %4622 = vmatmul.mubr.bf16.gmra.mrb[0].mxu0 %v997
        %v4623 = vpop.f32.mrb[0].mxu0
        %v4624 = vadd.f32 %v780, %v4623
        %v4625 = vpop.f32.mrb[0].mxu0
        %v4626 = vadd.f32 %v784, %v4625
        %v4627 = vpop.f32.mrb[0].mxu0
        %v4628 = vadd.f32 %v780, %v4627
        %v4629 = vpop.f32.mrb[0].mxu0
        %v4630 = vadd.f32 %v784, %v4629
        %4631 = vmatprep.mubr.bf16.mxu0 %v1002
        %4632 = vmatmul.mubr.bf16.gmra.mrb[0].mxu0 %v1001
        %v4633 = vpop.f32.mrb[0].mxu0
        %v4634 = vadd.f32 %v780, %v4633
        %v4635 = vpop.f32.mrb[0].mxu0
        %v4636 = vadd.f32 %v784, %v4635
        %v4637 = vpop.f32.mrb[0].mxu0
        %v4638 = vadd.f32 %v780, %v4637
        %v4639 = vpop.f32.mrb[0].mxu0
        %v4640 = vadd.f32 %v784, %v4639
        %4641 = vmatprep.mubr.bf16.mxu0 %v1006
        %4642 = vmatmul.mubr.bf16.gmra.mrb[0].mxu0 %v1005
        %v4643 = vpop.f32.mrb[0].mxu0
        %v4644 = vadd.f32 %v780, %v4643
        %v4645 = vpop.f32.mrb[0].mxu0
        %v4646 = vadd.f32 %v784, %v4645
        %v4647 = vpop.f32.mrb[0].mxu0
        %v4648 = vadd.f32 %v780, %v4647
        %v4649 = vpop.f32.mrb[0].mxu0
        %v4650 = vadd.f32 %v784, %v4649
        %4651 = vmatprep.mubr.bf16.mxu0 %v1010
        %4652 = vmatmul.mubr.bf16.gmra.mrb[0].mxu0 %v1009
        %v4653 = vpop.f32.mrb[0].mxu0
        %v4654 = vadd.f32 %v780, %v4653
        %v4655 = vpop.f32.mrb[0].mxu0
        %v4656 = vadd.f32 %v784, %v4655
        %v4657 = vpop.f32.mrb[0].mxu0
        %v4658 = vadd.f32 %v780, %v4657
        %v4659 = vpop.f32.mrb[0].mxu0
        %v4660 = vadd.f32 %v784, %v4659
        %4661 = vmatprep.mubr.bf16.mxu0 %v1014
        %4662 = vmatmul.mubr.bf16.gmra.mrb[0].mxu0 %v1013
        %v4663 = vpop.f32.mrb[0].mxu0
        %v4664 = vadd.f32 %v780, %v4663
        %v4665 = vpop.f32.mrb[0].mxu0
        %v4666 = vadd.f32 %v784, %v4665
        %v4667 = vpop.f32.mrb[0].mxu0
        %v4668 = vadd.f32 %v780, %v4667
        %v4669 = vpop.f32.mrb[0].mxu0
        %v4670 = vadd.f32 %v784, %v4669
        %4671 = vmatprep.mubr.bf16.mxu0 %v1018
        %4672 = vmatmul.mubr.bf16.gmra.mrb[0].mxu0 %v1017
        %v4673 = vpop.f32.mrb[0].mxu0
        %v4674 = vadd.f32 %v780, %v4673
        %v4675 = vpop.f32.mrb[0].mxu0
        %v4676 = vadd.f32 %v784, %v4675
        %v4677 = vpop.f32.mrb[0].mxu0
        %v4678 = vadd.f32 %v780, %v4677
        %v4679 = vpop.f32.mrb[0].mxu0
        %v4680 = vadd.f32 %v784, %v4679
        %4681 = vmatprep.mubr.bf16.mxu0 %v1022
        %4682 = vmatmul.mubr.bf16.gmra.mrb[0].mxu0 %v1021
        %v4683 = vpop.f32.mrb[0].mxu0
        %v4684 = vadd.f32 %v780, %v4683
        %v4685 = vpop.f32.mrb[0].mxu0
        %v4686 = vadd.f32 %v784, %v4685
        %v4687 = vpop.f32.mrb[0].mxu0
        %v4688 = vadd.f32 %v780, %v4687
        %v4689 = vpop.f32.mrb[0].mxu0
        %v4690 = vadd.f32 %v784, %v4689
        %4691 = vmatprep.mubr.bf16.mxu0 %v1026
        %4692 = vmatmul.mubr.bf16.gmra.mrb[0].mxu0 %v1025
        %v4693 = vpop.f32.mrb[0].mxu0
        %v4694 = vadd.f32 %v780, %v4693
        %v4695 = vpop.f32.mrb[0].mxu0
        %v4696 = vadd.f32 %v784, %v4695
        %v4697 = vpop.f32.mrb[0].mxu0
        %v4698 = vadd.f32 %v780, %v4697
        %v4699 = vpop.f32.mrb[0].mxu0
        %v4700 = vadd.f32 %v784, %v4699
        %4701 = vmatprep.mubr.bf16.mxu0 %v1030
        %4702 = vmatmul.mubr.bf16.gmra.mrb[0].mxu0 %v1029
        %v4703 = vpop.f32.mrb[0].mxu0
        %v4704 = vadd.f32 %v780, %v4703
        %v4705 = vpop.f32.mrb[0].mxu0
        %v4706 = vadd.f32 %v784, %v4705
        %v4707 = vpop.f32.mrb[0].mxu0
        %v4708 = vadd.f32 %v780, %v4707
        %v4709 = vpop.f32.mrb[0].mxu0
        %v4710 = vadd.f32 %v784, %v4709
        %4711 = vmatprep.mubr.bf16.mxu0 %v1034
        %4712 = vmatmul.mubr.bf16.gmra.mrb[0].mxu0 %v1033
        %v4713 = vpop.f32.mrb[0].mxu0
        %v4714 = vadd.f32 %v780, %v4713
        %v4715 = vpop.f32.mrb[0].mxu0
        %v4716 = vadd.f32 %v784, %v4715
        %v4717 = vpop.f32.mrb[0].mxu0
        %v4718 = vadd.f32 %v780, %v4717
        %v4719 = vpop.f32.mrb[0].mxu0
        %v4720 = vadd.f32 %v784, %v4719
        %4721 = vmatprep.mubr.bf16.mxu0 %v1038
        %4722 = vmatmul.mubr.bf16.gmra.mrb[0].mxu0 %v1037
        %v4723 = vpop.f32.mrb[0].mxu0
        %v4724 = vadd.f32 %v780, %v4723
        %v4725 = vpop.f32.mrb[0].mxu0
        %v4726 = vadd.f32 %v784, %v4725
        %v4727 = vpop.f32.mrb[0].mxu0
        %v4728 = vadd.f32 %v780, %v4727
        %v4729 = vpop.f32.mrb[0].mxu0
        %v4730 = vadd.f32 %v784, %v4729
        %4731 = vmatprep.mubr.bf16.mxu0 %v1042
        %4732 = vmatmul.mubr.bf16.gmra.mrb[0].mxu0 %v1041
        %v4733 = vpop.f32.mrb[0].mxu0
        %v4734 = vadd.f32 %v780, %v4733
        %v4735 = vpop.f32.mrb[0].mxu0
        %v4736 = vadd.f32 %v784, %v4735
        %v4737 = vpop.f32.mrb[0].mxu0
        %v4738 = vadd.f32 %v780, %v4737
        %v4739 = vpop.f32.mrb[0].mxu0
        %v4740 = vadd.f32 %v784, %v4739
        %4741 = vmatprep.mubr.bf16.mxu0 %v1046
        %4742 = vmatmul.mubr.bf16.gmra.mrb[0].mxu0 %v1045
        %v4743 = vpop.f32.mrb[0].mxu0
        %v4744 = vadd.f32 %v780, %v4743
        %v4745 = vpop.f32.mrb[0].mxu0
        %v4746 = vadd.f32 %v784, %v4745
        %v4747 = vpop.f32.mrb[0].mxu0
        %v4748 = vadd.f32 %v780, %v4747
        %v4749 = vpop.f32.mrb[0].mxu0
        %v4750 = vadd.f32 %v784, %v4749
        %4751 = vmatprep.mubr.bf16.mxu0 %v1050
        %4752 = vmatmul.mubr.bf16.gmra.mrb[0].mxu0 %v1049
        %v4753 = vpop.f32.mrb[0].mxu0
        %v4754 = vadd.f32 %v780, %v4753
        %v4755 = vpop.f32.mrb[0].mxu0
        %v4756 = vadd.f32 %v784, %v4755
        %v4757 = vpop.f32.mrb[0].mxu0
        %v4758 = vadd.f32 %v780, %v4757
        %v4759 = vpop.f32.mrb[0].mxu0
        %v4760 = vadd.f32 %v784, %v4759
        %4761 = vmatprep.mubr.bf16.mxu0 %v1054
        %4762 = vmatmul.mubr.bf16.gmra.mrb[0].mxu0 %v1053
        %v4763 = vpop.f32.mrb[0].mxu0
        %v4764 = vadd.f32 %v780, %v4763
        %v4765 = vpop.f32.mrb[0].mxu0
        %v4766 = vadd.f32 %v784, %v4765
        %v4767 = vpop.f32.mrb[0].mxu0
        %v4768 = vadd.f32 %v780, %v4767
        %v4769 = vpop.f32.mrb[0].mxu0
        %v4770 = vadd.f32 %v784, %v4769
        %4771 = vmatprep.mubr.bf16.mxu0 %v1058
        %4772 = vmatmul.mubr.bf16.gmra.mrb[0].mxu0 %v1057
        %v4773 = vpop.f32.mrb[0].mxu0
        %v4774 = vadd.f32 %v780, %v4773
        %v4775 = vpop.f32.mrb[0].mxu0
        %v4776 = vadd.f32 %v784, %v4775
        %v4777 = vpop.f32.mrb[0].mxu0
        %v4778 = vadd.f32 %v780, %v4777
        %v4779 = vpop.f32.mrb[0].mxu0
        %v4780 = vadd.f32 %v784, %v4779
        %4781 = vdwg.mxu0
        %4782 = vmatprep.subr.bf16.mxu0 %v2478
        %4783 = vmatpush1.bf16.msra.mxu0 %v2477
        %4784 = vmatprep.subr.bf16.mxu0 %v2490
        %4785 = vmatpush1.bf16.msra.mxu0 %v2489
        %4786 = vmatprep.subr.bf16.mxu0 %v2502
        %4787 = vmatpush1.bf16.msra.mxu0 %v2501
        %4788 = vmatprep.subr.bf16.mxu0 %v2514
        %4789 = vmatpush1.bf16.msra.mxu0 %v2513
        %4790 = vmatprep.subr.bf16.mxu0 %v2526
        %4791 = vmatpush1.bf16.msra.mxu0 %v2525
        %4792 = vmatprep.subr.bf16.mxu0 %v2538
        %4793 = vmatpush1.bf16.msra.mxu0 %v2537
        %4794 = vmatprep.subr.bf16.mxu0 %v2550
        %4795 = vmatpush1.bf16.msra.mxu0 %v2549
        %4796 = vmatprep.subr.bf16.mxu0 %v2562
        %4797 = vmatpush1.bf16.msra.mxu0 %v2561
        %4798 = vmatprep.subr.bf16.mxu0 %v2574
        %4799 = vmatpush1.bf16.msra.mxu0 %v2573
        %4800 = vmatprep.subr.bf16.mxu0 %v2586
        %4801 = vmatpush1.bf16.msra.mxu0 %v2585
        %4802 = vmatprep.subr.bf16.mxu0 %v2598
        %4803 = vmatpush1.bf16.msra.mxu0 %v2597
        %4804 = vmatprep.subr.bf16.mxu0 %v2610
        %4805 = vmatpush1.bf16.msra.mxu0 %v2609
        %4806 = vmatprep.subr.bf16.mxu0 %v2622
        %4807 = vmatpush1.bf16.msra.mxu0 %v2621
        %4808 = vmatprep.subr.bf16.mxu0 %v2634
        %4809 = vmatpush1.bf16.msra.mxu0 %v2633
        %4810 = vmatprep.subr.bf16.mxu0 %v2646
        %4811 = vmatpush1.bf16.msra.mxu0 %v2645
        %4812 = vmatprep.subr.bf16.mxu0 %v2658
        %4813 = vmatpush1.bf16.msra.mxu0 %v2657
        %4814 = vmatprep.mubr.bf16.mxu0 %v1000
        %4815 = vmatmul.mubr.bf16.gmra.mrb[0].mxu0 %v999
        %v4816 = vpop.f32.mrb[0].mxu0
        %v4817 = vadd.f32 %v4624, %v4816
        %v4818 = vpop.f32.mrb[0].mxu0
        %v4819 = vadd.f32 %v4626, %v4818
        %v4820 = vpop.f32.mrb[0].mxu0
        %v4821 = vadd.f32 %v4628, %v4820
        %v4822 = vpop.f32.mrb[0].mxu0
        %v4823 = vadd.f32 %v4630, %v4822
        %4824 = vmatprep.mubr.bf16.mxu0 %v1004
        %4825 = vmatmul.mubr.bf16.gmra.mrb[0].mxu0 %v1003
        %v4826 = vpop.f32.mrb[0].mxu0
        %v4827 = vadd.f32 %v4634, %v4826
        %v4828 = vpop.f32.mrb[0].mxu0
        %v4829 = vadd.f32 %v4636, %v4828
        %v4830 = vpop.f32.mrb[0].mxu0
        %v4831 = vadd.f32 %v4638, %v4830
        %v4832 = vpop.f32.mrb[0].mxu0
        %v4833 = vadd.f32 %v4640, %v4832
        %4834 = vmatprep.mubr.bf16.mxu0 %v1008
        %4835 = vmatmul.mubr.bf16.gmra.mrb[0].mxu0 %v1007
        %v4836 = vpop.f32.mrb[0].mxu0
        %v4837 = vadd.f32 %v4644, %v4836
        %v4838 = vpop.f32.mrb[0].mxu0
        %v4839 = vadd.f32 %v4646, %v4838
        %v4840 = vpop.f32.mrb[0].mxu0
        %v4841 = vadd.f32 %v4648, %v4840
        %v4842 = vpop.f32.mrb[0].mxu0
        %v4843 = vadd.f32 %v4650, %v4842
        %4844 = vmatprep.mubr.bf16.mxu0 %v1012
        %4845 = vmatmul.mubr.bf16.gmra.mrb[0].mxu0 %v1011
        %v4846 = vpop.f32.mrb[0].mxu0
        %v4847 = vadd.f32 %v4654, %v4846
        %v4848 = vpop.f32.mrb[0].mxu0
        %v4849 = vadd.f32 %v4656, %v4848
        %v4850 = vpop.f32.mrb[0].mxu0
        %v4851 = vadd.f32 %v4658, %v4850
        %v4852 = vpop.f32.mrb[0].mxu0
        %v4853 = vadd.f32 %v4660, %v4852
        %4854 = vmatprep.mubr.bf16.mxu0 %v1016
        %4855 = vmatmul.mubr.bf16.gmra.mrb[0].mxu0 %v1015
        %v4856 = vpop.f32.mrb[0].mxu0
        %v4857 = vadd.f32 %v4664, %v4856
        %v4858 = vpop.f32.mrb[0].mxu0
        %v4859 = vadd.f32 %v4666, %v4858
        %v4860 = vpop.f32.mrb[0].mxu0
        %v4861 = vadd.f32 %v4668, %v4860
        %v4862 = vpop.f32.mrb[0].mxu0
        %v4863 = vadd.f32 %v4670, %v4862
        %4864 = vmatprep.mubr.bf16.mxu0 %v1020
        %4865 = vmatmul.mubr.bf16.gmra.mrb[0].mxu0 %v1019
        %v4866 = vpop.f32.mrb[0].mxu0
        %v4867 = vadd.f32 %v4674, %v4866
        %v4868 = vpop.f32.mrb[0].mxu0
        %v4869 = vadd.f32 %v4676, %v4868
        %v4870 = vpop.f32.mrb[0].mxu0
        %v4871 = vadd.f32 %v4678, %v4870
        %v4872 = vpop.f32.mrb[0].mxu0
        %v4873 = vadd.f32 %v4680, %v4872
        %4874 = vmatprep.mubr.bf16.mxu0 %v1024
        %4875 = vmatmul.mubr.bf16.gmra.mrb[0].mxu0 %v1023
        %v4876 = vpop.f32.mrb[0].mxu0
        %v4877 = vadd.f32 %v4684, %v4876
        %v4878 = vpop.f32.mrb[0].mxu0
        %v4879 = vadd.f32 %v4686, %v4878
        %v4880 = vpop.f32.mrb[0].mxu0
        %v4881 = vadd.f32 %v4688, %v4880
        %v4882 = vpop.f32.mrb[0].mxu0
        %v4883 = vadd.f32 %v4690, %v4882
        %4884 = vmatprep.mubr.bf16.mxu0 %v1028
        %4885 = vmatmul.mubr.bf16.gmra.mrb[0].mxu0 %v1027
        %v4886 = vpop.f32.mrb[0].mxu0
        %v4887 = vadd.f32 %v4694, %v4886
        %v4888 = vpop.f32.mrb[0].mxu0
        %v4889 = vadd.f32 %v4696, %v4888
        %v4890 = vpop.f32.mrb[0].mxu0
        %v4891 = vadd.f32 %v4698, %v4890
        %v4892 = vpop.f32.mrb[0].mxu0
        %v4893 = vadd.f32 %v4700, %v4892
        %4894 = vmatprep.mubr.bf16.mxu0 %v1032
        %4895 = vmatmul.mubr.bf16.gmra.mrb[0].mxu0 %v1031
        %v4896 = vpop.f32.mrb[0].mxu0
        %v4897 = vadd.f32 %v4704, %v4896
        %v4898 = vpop.f32.mrb[0].mxu0
        %v4899 = vadd.f32 %v4706, %v4898
        %v4900 = vpop.f32.mrb[0].mxu0
        %v4901 = vadd.f32 %v4708, %v4900
        %v4902 = vpop.f32.mrb[0].mxu0
        %v4903 = vadd.f32 %v4710, %v4902
        %4904 = vmatprep.mubr.bf16.mxu0 %v1036
        %4905 = vmatmul.mubr.bf16.gmra.mrb[0].mxu0 %v1035
        %v4906 = vpop.f32.mrb[0].mxu0
        %v4907 = vadd.f32 %v4714, %v4906
        %v4908 = vpop.f32.mrb[0].mxu0
        %v4909 = vadd.f32 %v4716, %v4908
        %v4910 = vpop.f32.mrb[0].mxu0
        %v4911 = vadd.f32 %v4718, %v4910
        %v4912 = vpop.f32.mrb[0].mxu0
        %v4913 = vadd.f32 %v4720, %v4912
        %4914 = vmatprep.mubr.bf16.mxu0 %v1040
        %4915 = vmatmul.mubr.bf16.gmra.mrb[0].mxu0 %v1039
        %v4916 = vpop.f32.mrb[0].mxu0
        %v4917 = vadd.f32 %v4724, %v4916
        %v4918 = vpop.f32.mrb[0].mxu0
        %v4919 = vadd.f32 %v4726, %v4918
        %v4920 = vpop.f32.mrb[0].mxu0
        %v4921 = vadd.f32 %v4728, %v4920
        %v4922 = vpop.f32.mrb[0].mxu0
        %v4923 = vadd.f32 %v4730, %v4922
        %4924 = vmatprep.mubr.bf16.mxu0 %v1044
        %4925 = vmatmul.mubr.bf16.gmra.mrb[0].mxu0 %v1043
        %v4926 = vpop.f32.mrb[0].mxu0
        %v4927 = vadd.f32 %v4734, %v4926
        %v4928 = vpop.f32.mrb[0].mxu0
        %v4929 = vadd.f32 %v4736, %v4928
        %v4930 = vpop.f32.mrb[0].mxu0
        %v4931 = vadd.f32 %v4738, %v4930
        %v4932 = vpop.f32.mrb[0].mxu0
        %v4933 = vadd.f32 %v4740, %v4932
        %4934 = vmatprep.mubr.bf16.mxu0 %v1048
        %4935 = vmatmul.mubr.bf16.gmra.mrb[0].mxu0 %v1047
        %v4936 = vpop.f32.mrb[0].mxu0
        %v4937 = vadd.f32 %v4744, %v4936
        %v4938 = vpop.f32.mrb[0].mxu0
        %v4939 = vadd.f32 %v4746, %v4938
        %v4940 = vpop.f32.mrb[0].mxu0
        %v4941 = vadd.f32 %v4748, %v4940
        %v4942 = vpop.f32.mrb[0].mxu0
        %v4943 = vadd.f32 %v4750, %v4942
        %4944 = vmatprep.mubr.bf16.mxu0 %v1052
        %4945 = vmatmul.mubr.bf16.gmra.mrb[0].mxu0 %v1051
        %v4946 = vpop.f32.mrb[0].mxu0
        %v4947 = vadd.f32 %v4754, %v4946
        %v4948 = vpop.f32.mrb[0].mxu0
        %v4949 = vadd.f32 %v4756, %v4948
        %v4950 = vpop.f32.mrb[0].mxu0
        %v4951 = vadd.f32 %v4758, %v4950
        %v4952 = vpop.f32.mrb[0].mxu0
        %v4953 = vadd.f32 %v4760, %v4952
        %4954 = vmatprep.mubr.bf16.mxu0 %v1056
        %4955 = vmatmul.mubr.bf16.gmra.mrb[0].mxu0 %v1055
        %v4956 = vpop.f32.mrb[0].mxu0
        %v4957 = vadd.f32 %v4764, %v4956
        %v4958 = vpop.f32.mrb[0].mxu0
        %v4959 = vadd.f32 %v4766, %v4958
        %v4960 = vpop.f32.mrb[0].mxu0
        %v4961 = vadd.f32 %v4768, %v4960
        %v4962 = vpop.f32.mrb[0].mxu0
        %v4963 = vadd.f32 %v4770, %v4962
        %4964 = vmatprep.mubr.bf16.mxu0 %v1060
        %4965 = vmatmul.mubr.bf16.gmra.mrb[0].mxu0 %v1059
        %v4966 = vpop.f32.mrb[0].mxu0
        %v4967 = vadd.f32 %v4774, %v4966
        %v4968 = vpop.f32.mrb[0].mxu0
        %v4969 = vadd.f32 %v4776, %v4968
        %v4970 = vpop.f32.mrb[0].mxu0
        %v4971 = vadd.f32 %v4778, %v4970
        %v4972 = vpop.f32.mrb[0].mxu0
        %v4973 = vadd.f32 %v4780, %v4972
        %4974 = vdwg.mxu0
        %4975 = vmatprep.subr.bf16.mxu0 %v2288
        %4976 = vmatpush1.bf16.msra.mxu0 %v2287
        %4977 = vmatprep.subr.bf16.mxu0 %v2300
        %4978 = vmatpush1.bf16.msra.mxu0 %v2299
        %4979 = vmatprep.subr.bf16.mxu0 %v2312
        %4980 = vmatpush1.bf16.msra.mxu0 %v2311
        %4981 = vmatprep.subr.bf16.mxu0 %v2324
        %4982 = vmatpush1.bf16.msra.mxu0 %v2323
        %4983 = vmatprep.subr.bf16.mxu0 %v2336
        %4984 = vmatpush1.bf16.msra.mxu0 %v2335
        %4985 = vmatprep.subr.bf16.mxu0 %v2348
        %4986 = vmatpush1.bf16.msra.mxu0 %v2347
        %4987 = vmatprep.subr.bf16.mxu0 %v2360
        %4988 = vmatpush1.bf16.msra.mxu0 %v2359
        %4989 = vmatprep.subr.bf16.mxu0 %v2372
        %4990 = vmatpush1.bf16.msra.mxu0 %v2371
        %4991 = vmatprep.subr.bf16.mxu0 %v2384
        %4992 = vmatpush1.bf16.msra.mxu0 %v2383
        %4993 = vmatprep.subr.bf16.mxu0 %v2396
        %4994 = vmatpush1.bf16.msra.mxu0 %v2395
        %4995 = vmatprep.subr.bf16.mxu0 %v2408
        %4996 = vmatpush1.bf16.msra.mxu0 %v2407
        %4997 = vmatprep.subr.bf16.mxu0 %v2420
        %4998 = vmatpush1.bf16.msra.mxu0 %v2419
        %4999 = vmatprep.subr.bf16.mxu0 %v2432
        %5000 = vmatpush1.bf16.msra.mxu0 %v2431
        %5001 = vmatprep.subr.bf16.mxu0 %v2444
        %5002 = vmatpush1.bf16.msra.mxu0 %v2443
        %5003 = vmatprep.subr.bf16.mxu0 %v2456
        %5004 = vmatpush1.bf16.msra.mxu0 %v2455
        %5005 = vmatprep.subr.bf16.mxu0 %v2468
        %5006 = vmatpush1.bf16.msra.mxu0 %v2467
        %5007 = vmatprep.mubr.bf16.mxu0 %v998
        %5008 = vmatmul.mubr.bf16.gmra.mrb[0].mxu0 %v997
        %v5009 = vpop.f32.mrb[0].mxu0
        %v5010 = vadd.f32 %v788, %v5009
        %v5011 = vpop.f32.mrb[0].mxu0
        %v5012 = vadd.f32 %v792, %v5011
        %v5013 = vpop.f32.mrb[0].mxu0
        %v5014 = vadd.f32 %v788, %v5013
        %v5015 = vpop.f32.mrb[0].mxu0
        %v5016 = vadd.f32 %v792, %v5015
        %5017 = vmatprep.mubr.bf16.mxu0 %v1002
        %5018 = vmatmul.mubr.bf16.gmra.mrb[0].mxu0 %v1001
        %v5019 = vpop.f32.mrb[0].mxu0
        %v5020 = vadd.f32 %v788, %v5019
        %v5021 = vpop.f32.mrb[0].mxu0
        %v5022 = vadd.f32 %v792, %v5021
        %v5023 = vpop.f32.mrb[0].mxu0
        %v5024 = vadd.f32 %v788, %v5023
        %v5025 = vpop.f32.mrb[0].mxu0
        %v5026 = vadd.f32 %v792, %v5025
        %5027 = vmatprep.mubr.bf16.mxu0 %v1006
        %5028 = vmatmul.mubr.bf16.gmra.mrb[0].mxu0 %v1005
        %v5029 = vpop.f32.mrb[0].mxu0
        %v5030 = vadd.f32 %v788, %v5029
        %v5031 = vpop.f32.mrb[0].mxu0
        %v5032 = vadd.f32 %v792, %v5031
        %v5033 = vpop.f32.mrb[0].mxu0
        %v5034 = vadd.f32 %v788, %v5033
        %v5035 = vpop.f32.mrb[0].mxu0
        %v5036 = vadd.f32 %v792, %v5035
        %5037 = vmatprep.mubr.bf16.mxu0 %v1010
        %5038 = vmatmul.mubr.bf16.gmra.mrb[0].mxu0 %v1009
        %v5039 = vpop.f32.mrb[0].mxu0
        %v5040 = vadd.f32 %v788, %v5039
        %v5041 = vpop.f32.mrb[0].mxu0
        %v5042 = vadd.f32 %v792, %v5041
        %v5043 = vpop.f32.mrb[0].mxu0
        %v5044 = vadd.f32 %v788, %v5043
        %v5045 = vpop.f32.mrb[0].mxu0
        %v5046 = vadd.f32 %v792, %v5045
        %5047 = vmatprep.mubr.bf16.mxu0 %v1014
        %5048 = vmatmul.mubr.bf16.gmra.mrb[0].mxu0 %v1013
        %v5049 = vpop.f32.mrb[0].mxu0
        %v5050 = vadd.f32 %v788, %v5049
        %v5051 = vpop.f32.mrb[0].mxu0
        %v5052 = vadd.f32 %v792, %v5051
        %v5053 = vpop.f32.mrb[0].mxu0
        %v5054 = vadd.f32 %v788, %v5053
        %v5055 = vpop.f32.mrb[0].mxu0
        %v5056 = vadd.f32 %v792, %v5055
        %5057 = vmatprep.mubr.bf16.mxu0 %v1018
        %5058 = vmatmul.mubr.bf16.gmra.mrb[0].mxu0 %v1017
        %v5059 = vpop.f32.mrb[0].mxu0
        %v5060 = vadd.f32 %v788, %v5059
        %v5061 = vpop.f32.mrb[0].mxu0
        %v5062 = vadd.f32 %v792, %v5061
        %v5063 = vpop.f32.mrb[0].mxu0
        %v5064 = vadd.f32 %v788, %v5063
        %v5065 = vpop.f32.mrb[0].mxu0
        %v5066 = vadd.f32 %v792, %v5065
        %5067 = vmatprep.mubr.bf16.mxu0 %v1022
        %5068 = vmatmul.mubr.bf16.gmra.mrb[0].mxu0 %v1021
        %v5069 = vpop.f32.mrb[0].mxu0
        %v5070 = vadd.f32 %v788, %v5069
        %v5071 = vpop.f32.mrb[0].mxu0
        %v5072 = vadd.f32 %v792, %v5071
        %v5073 = vpop.f32.mrb[0].mxu0
        %v5074 = vadd.f32 %v788, %v5073
        %v5075 = vpop.f32.mrb[0].mxu0
        %v5076 = vadd.f32 %v792, %v5075
        %5077 = vmatprep.mubr.bf16.mxu0 %v1026
        %5078 = vmatmul.mubr.bf16.gmra.mrb[0].mxu0 %v1025
        %v5079 = vpop.f32.mrb[0].mxu0
        %v5080 = vadd.f32 %v788, %v5079
        %v5081 = vpop.f32.mrb[0].mxu0
        %v5082 = vadd.f32 %v792, %v5081
        %v5083 = vpop.f32.mrb[0].mxu0
        %v5084 = vadd.f32 %v788, %v5083
        %v5085 = vpop.f32.mrb[0].mxu0
        %v5086 = vadd.f32 %v792, %v5085
        %5087 = vmatprep.mubr.bf16.mxu0 %v1030
        %5088 = vmatmul.mubr.bf16.gmra.mrb[0].mxu0 %v1029
        %v5089 = vpop.f32.mrb[0].mxu0
        %v5090 = vadd.f32 %v788, %v5089
        %v5091 = vpop.f32.mrb[0].mxu0
        %v5092 = vadd.f32 %v792, %v5091
        %v5093 = vpop.f32.mrb[0].mxu0
        %v5094 = vadd.f32 %v788, %v5093
        %v5095 = vpop.f32.mrb[0].mxu0
        %v5096 = vadd.f32 %v792, %v5095
        %5097 = vmatprep.mubr.bf16.mxu0 %v1034
        %5098 = vmatmul.mubr.bf16.gmra.mrb[0].mxu0 %v1033
        %v5099 = vpop.f32.mrb[0].mxu0
        %v5100 = vadd.f32 %v788, %v5099
        %v5101 = vpop.f32.mrb[0].mxu0
        %v5102 = vadd.f32 %v792, %v5101
        %v5103 = vpop.f32.mrb[0].mxu0
        %v5104 = vadd.f32 %v788, %v5103
        %v5105 = vpop.f32.mrb[0].mxu0
        %v5106 = vadd.f32 %v792, %v5105
        %5107 = vmatprep.mubr.bf16.mxu0 %v1038
        %5108 = vmatmul.mubr.bf16.gmra.mrb[0].mxu0 %v1037
        %v5109 = vpop.f32.mrb[0].mxu0
        %v5110 = vadd.f32 %v788, %v5109
        %v5111 = vpop.f32.mrb[0].mxu0
        %v5112 = vadd.f32 %v792, %v5111
        %v5113 = vpop.f32.mrb[0].mxu0
        %v5114 = vadd.f32 %v788, %v5113
        %v5115 = vpop.f32.mrb[0].mxu0
        %v5116 = vadd.f32 %v792, %v5115
        %5117 = vmatprep.mubr.bf16.mxu0 %v1042
        %5118 = vmatmul.mubr.bf16.gmra.mrb[0].mxu0 %v1041
        %v5119 = vpop.f32.mrb[0].mxu0
        %v5120 = vadd.f32 %v788, %v5119
        %v5121 = vpop.f32.mrb[0].mxu0
        %v5122 = vadd.f32 %v792, %v5121
        %v5123 = vpop.f32.mrb[0].mxu0
        %v5124 = vadd.f32 %v788, %v5123
        %v5125 = vpop.f32.mrb[0].mxu0
        %v5126 = vadd.f32 %v792, %v5125
        %5127 = vmatprep.mubr.bf16.mxu0 %v1046
        %5128 = vmatmul.mubr.bf16.gmra.mrb[0].mxu0 %v1045
        %v5129 = vpop.f32.mrb[0].mxu0
        %v5130 = vadd.f32 %v788, %v5129
        %v5131 = vpop.f32.mrb[0].mxu0
        %v5132 = vadd.f32 %v792, %v5131
        %v5133 = vpop.f32.mrb[0].mxu0
        %v5134 = vadd.f32 %v788, %v5133
        %v5135 = vpop.f32.mrb[0].mxu0
        %v5136 = vadd.f32 %v792, %v5135
        %5137 = vmatprep.mubr.bf16.mxu0 %v1050
        %5138 = vmatmul.mubr.bf16.gmra.mrb[0].mxu0 %v1049
        %v5139 = vpop.f32.mrb[0].mxu0
        %v5140 = vadd.f32 %v788, %v5139
        %v5141 = vpop.f32.mrb[0].mxu0
        %v5142 = vadd.f32 %v792, %v5141
        %v5143 = vpop.f32.mrb[0].mxu0
        %v5144 = vadd.f32 %v788, %v5143
        %v5145 = vpop.f32.mrb[0].mxu0
        %v5146 = vadd.f32 %v792, %v5145
        %5147 = vmatprep.mubr.bf16.mxu0 %v1054
        %5148 = vmatmul.mubr.bf16.gmra.mrb[0].mxu0 %v1053
        %v5149 = vpop.f32.mrb[0].mxu0
        %v5150 = vadd.f32 %v788, %v5149
        %v5151 = vpop.f32.mrb[0].mxu0
        %v5152 = vadd.f32 %v792, %v5151
        %v5153 = vpop.f32.mrb[0].mxu0
        %v5154 = vadd.f32 %v788, %v5153
        %v5155 = vpop.f32.mrb[0].mxu0
        %v5156 = vadd.f32 %v792, %v5155
        %5157 = vmatprep.mubr.bf16.mxu0 %v1058
        %5158 = vmatmul.mubr.bf16.gmra.mrb[0].mxu0 %v1057
        %v5159 = vpop.f32.mrb[0].mxu0
        %v5160 = vadd.f32 %v788, %v5159
        %v5161 = vpop.f32.mrb[0].mxu0
        %v5162 = vadd.f32 %v792, %v5161
        %v5163 = vpop.f32.mrb[0].mxu0
        %v5164 = vadd.f32 %v788, %v5163
        %v5165 = vpop.f32.mrb[0].mxu0
        %v5166 = vadd.f32 %v792, %v5165
        %5167 = vdwg.mxu0
        %5168 = vmatprep.subr.bf16.mxu0 %v2480
        %5169 = vmatpush1.bf16.msra.mxu0 %v2479
        %5170 = vmatprep.subr.bf16.mxu0 %v2492
        %5171 = vmatpush1.bf16.msra.mxu0 %v2491
        %5172 = vmatprep.subr.bf16.mxu0 %v2504
        %5173 = vmatpush1.bf16.msra.mxu0 %v2503
        %5174 = vmatprep.subr.bf16.mxu0 %v2516
        %5175 = vmatpush1.bf16.msra.mxu0 %v2515
        %5176 = vmatprep.subr.bf16.mxu0 %v2528
        %5177 = vmatpush1.bf16.msra.mxu0 %v2527
        %5178 = vmatprep.subr.bf16.mxu0 %v2540
        %5179 = vmatpush1.bf16.msra.mxu0 %v2539
        %5180 = vmatprep.subr.bf16.mxu0 %v2552
        %5181 = vmatpush1.bf16.msra.mxu0 %v2551
        %5182 = vmatprep.subr.bf16.mxu0 %v2564
        %5183 = vmatpush1.bf16.msra.mxu0 %v2563
        %5184 = vmatprep.subr.bf16.mxu0 %v2576
        %5185 = vmatpush1.bf16.msra.mxu0 %v2575
        %5186 = vmatprep.subr.bf16.mxu0 %v2588
        %5187 = vmatpush1.bf16.msra.mxu0 %v2587
        %5188 = vmatprep.subr.bf16.mxu0 %v2600
        %5189 = vmatpush1.bf16.msra.mxu0 %v2599
        %5190 = vmatprep.subr.bf16.mxu0 %v2612
        %5191 = vmatpush1.bf16.msra.mxu0 %v2611
        %5192 = vmatprep.subr.bf16.mxu0 %v2624
        %5193 = vmatpush1.bf16.msra.mxu0 %v2623
        %5194 = vmatprep.subr.bf16.mxu0 %v2636
        %5195 = vmatpush1.bf16.msra.mxu0 %v2635
        %5196 = vmatprep.subr.bf16.mxu0 %v2648
        %5197 = vmatpush1.bf16.msra.mxu0 %v2647
        %5198 = vmatprep.subr.bf16.mxu0 %v2660
        %5199 = vmatpush1.bf16.msra.mxu0 %v2659
        %5200 = vmatprep.mubr.bf16.mxu0 %v1000
        %5201 = vmatmul.mubr.bf16.gmra.mrb[0].mxu0 %v999
        %v5202 = vpop.f32.mrb[0].mxu0
        %v5203 = vadd.f32 %v5010, %v5202
        %v5204 = vpop.f32.mrb[0].mxu0
        %v5205 = vadd.f32 %v5012, %v5204
        %v5206 = vpop.f32.mrb[0].mxu0
        %v5207 = vadd.f32 %v5014, %v5206
        %v5208 = vpop.f32.mrb[0].mxu0
        %v5209 = vadd.f32 %v5016, %v5208
        %5210 = vmatprep.mubr.bf16.mxu0 %v1004
        %5211 = vmatmul.mubr.bf16.gmra.mrb[0].mxu0 %v1003
        %v5212 = vpop.f32.mrb[0].mxu0
        %v5213 = vadd.f32 %v5020, %v5212
        %v5214 = vpop.f32.mrb[0].mxu0
        %v5215 = vadd.f32 %v5022, %v5214
        %v5216 = vpop.f32.mrb[0].mxu0
        %v5217 = vadd.f32 %v5024, %v5216
        %v5218 = vpop.f32.mrb[0].mxu0
        %v5219 = vadd.f32 %v5026, %v5218
        %5220 = vmatprep.mubr.bf16.mxu0 %v1008
        %5221 = vmatmul.mubr.bf16.gmra.mrb[0].mxu0 %v1007
        %v5222 = vpop.f32.mrb[0].mxu0
        %v5223 = vadd.f32 %v5030, %v5222
        %v5224 = vpop.f32.mrb[0].mxu0
        %v5225 = vadd.f32 %v5032, %v5224
        %v5226 = vpop.f32.mrb[0].mxu0
        %v5227 = vadd.f32 %v5034, %v5226
        %v5228 = vpop.f32.mrb[0].mxu0
        %v5229 = vadd.f32 %v5036, %v5228
        %5230 = vmatprep.mubr.bf16.mxu0 %v1012
        %5231 = vmatmul.mubr.bf16.gmra.mrb[0].mxu0 %v1011
        %v5232 = vpop.f32.mrb[0].mxu0
        %v5233 = vadd.f32 %v5040, %v5232
        %v5234 = vpop.f32.mrb[0].mxu0
        %v5235 = vadd.f32 %v5042, %v5234
        %v5236 = vpop.f32.mrb[0].mxu0
        %v5237 = vadd.f32 %v5044, %v5236
        %v5238 = vpop.f32.mrb[0].mxu0
        %v5239 = vadd.f32 %v5046, %v5238
        %5240 = vmatprep.mubr.bf16.mxu0 %v1016
        %5241 = vmatmul.mubr.bf16.gmra.mrb[0].mxu0 %v1015
        %v5242 = vpop.f32.mrb[0].mxu0
        %v5243 = vadd.f32 %v5050, %v5242
        %v5244 = vpop.f32.mrb[0].mxu0
        %v5245 = vadd.f32 %v5052, %v5244
        %v5246 = vpop.f32.mrb[0].mxu0
        %v5247 = vadd.f32 %v5054, %v5246
        %v5248 = vpop.f32.mrb[0].mxu0
        %v5249 = vadd.f32 %v5056, %v5248
        %5250 = vmatprep.mubr.bf16.mxu0 %v1020
        %5251 = vmatmul.mubr.bf16.gmra.mrb[0].mxu0 %v1019
        %v5252 = vpop.f32.mrb[0].mxu0
        %v5253 = vadd.f32 %v5060, %v5252
        %v5254 = vpop.f32.mrb[0].mxu0
        %v5255 = vadd.f32 %v5062, %v5254
        %v5256 = vpop.f32.mrb[0].mxu0
        %v5257 = vadd.f32 %v5064, %v5256
        %v5258 = vpop.f32.mrb[0].mxu0
        %v5259 = vadd.f32 %v5066, %v5258
        %5260 = vmatprep.mubr.bf16.mxu0 %v1024
        %5261 = vmatmul.mubr.bf16.gmra.mrb[0].mxu0 %v1023
        %v5262 = vpop.f32.mrb[0].mxu0
        %v5263 = vadd.f32 %v5070, %v5262
        %v5264 = vpop.f32.mrb[0].mxu0
        %v5265 = vadd.f32 %v5072, %v5264
        %v5266 = vpop.f32.mrb[0].mxu0
        %v5267 = vadd.f32 %v5074, %v5266
        %v5268 = vpop.f32.mrb[0].mxu0
        %v5269 = vadd.f32 %v5076, %v5268
        %5270 = vmatprep.mubr.bf16.mxu0 %v1028
        %5271 = vmatmul.mubr.bf16.gmra.mrb[0].mxu0 %v1027
        %v5272 = vpop.f32.mrb[0].mxu0
        %v5273 = vadd.f32 %v5080, %v5272
        %v5274 = vpop.f32.mrb[0].mxu0
        %v5275 = vadd.f32 %v5082, %v5274
        %v5276 = vpop.f32.mrb[0].mxu0
        %v5277 = vadd.f32 %v5084, %v5276
        %v5278 = vpop.f32.mrb[0].mxu0
        %v5279 = vadd.f32 %v5086, %v5278
        %5280 = vmatprep.mubr.bf16.mxu0 %v1032
        %5281 = vmatmul.mubr.bf16.gmra.mrb[0].mxu0 %v1031
        %v5282 = vpop.f32.mrb[0].mxu0
        %v5283 = vadd.f32 %v5090, %v5282
        %v5284 = vpop.f32.mrb[0].mxu0
        %v5285 = vadd.f32 %v5092, %v5284
        %v5286 = vpop.f32.mrb[0].mxu0
        %v5287 = vadd.f32 %v5094, %v5286
        %v5288 = vpop.f32.mrb[0].mxu0
        %v5289 = vadd.f32 %v5096, %v5288
        %5290 = vmatprep.mubr.bf16.mxu0 %v1036
        %5291 = vmatmul.mubr.bf16.gmra.mrb[0].mxu0 %v1035
        %v5292 = vpop.f32.mrb[0].mxu0
        %v5293 = vadd.f32 %v5100, %v5292
        %v5294 = vpop.f32.mrb[0].mxu0
        %v5295 = vadd.f32 %v5102, %v5294
        %v5296 = vpop.f32.mrb[0].mxu0
        %v5297 = vadd.f32 %v5104, %v5296
        %v5298 = vpop.f32.mrb[0].mxu0
        %v5299 = vadd.f32 %v5106, %v5298
        %5300 = vmatprep.mubr.bf16.mxu0 %v1040
        %5301 = vmatmul.mubr.bf16.gmra.mrb[0].mxu0 %v1039
        %v5302 = vpop.f32.mrb[0].mxu0
        %v5303 = vadd.f32 %v5110, %v5302
        %v5304 = vpop.f32.mrb[0].mxu0
        %v5305 = vadd.f32 %v5112, %v5304
        %v5306 = vpop.f32.mrb[0].mxu0
        %v5307 = vadd.f32 %v5114, %v5306
        %v5308 = vpop.f32.mrb[0].mxu0
        %v5309 = vadd.f32 %v5116, %v5308
        %5310 = vmatprep.mubr.bf16.mxu0 %v1044
        %5311 = vmatmul.mubr.bf16.gmra.mrb[0].mxu0 %v1043
        %v5312 = vpop.f32.mrb[0].mxu0
        %v5313 = vadd.f32 %v5120, %v5312
        %v5314 = vpop.f32.mrb[0].mxu0
        %v5315 = vadd.f32 %v5122, %v5314
        %v5316 = vpop.f32.mrb[0].mxu0
        %v5317 = vadd.f32 %v5124, %v5316
        %v5318 = vpop.f32.mrb[0].mxu0
        %v5319 = vadd.f32 %v5126, %v5318
        %5320 = vmatprep.mubr.bf16.mxu0 %v1048
        %5321 = vmatmul.mubr.bf16.gmra.mrb[0].mxu0 %v1047
        %v5322 = vpop.f32.mrb[0].mxu0
        %v5323 = vadd.f32 %v5130, %v5322
        %v5324 = vpop.f32.mrb[0].mxu0
        %v5325 = vadd.f32 %v5132, %v5324
        %v5326 = vpop.f32.mrb[0].mxu0
        %v5327 = vadd.f32 %v5134, %v5326
        %v5328 = vpop.f32.mrb[0].mxu0
        %v5329 = vadd.f32 %v5136, %v5328
        %5330 = vmatprep.mubr.bf16.mxu0 %v1052
        %5331 = vmatmul.mubr.bf16.gmra.mrb[0].mxu0 %v1051
        %v5332 = vpop.f32.mrb[0].mxu0
        %v5333 = vadd.f32 %v5140, %v5332
        %v5334 = vpop.f32.mrb[0].mxu0
        %v5335 = vadd.f32 %v5142, %v5334
        %v5336 = vpop.f32.mrb[0].mxu0
        %v5337 = vadd.f32 %v5144, %v5336
        %v5338 = vpop.f32.mrb[0].mxu0
        %v5339 = vadd.f32 %v5146, %v5338
        %5340 = vmatprep.mubr.bf16.mxu0 %v1056
        %5341 = vmatmul.mubr.bf16.gmra.mrb[0].mxu0 %v1055
        %v5342 = vpop.f32.mrb[0].mxu0
        %v5343 = vadd.f32 %v5150, %v5342
        %v5344 = vpop.f32.mrb[0].mxu0
        %v5345 = vadd.f32 %v5152, %v5344
        %v5346 = vpop.f32.mrb[0].mxu0
        %v5347 = vadd.f32 %v5154, %v5346
        %v5348 = vpop.f32.mrb[0].mxu0
        %v5349 = vadd.f32 %v5156, %v5348
        %5350 = vmatprep.mubr.bf16.mxu0 %v1060
        %5351 = vmatmul.mubr.bf16.gmra.mrb[0].mxu0 %v1059
        %v5352 = vpop.f32.mrb[0].mxu0
        %v5353 = vadd.f32 %v5160, %v5352
        %v5354 = vpop.f32.mrb[0].mxu0
        %v5355 = vadd.f32 %v5162, %v5354
        %v5356 = vpop.f32.mrb[0].mxu0
        %v5357 = vadd.f32 %v5164, %v5356
        %v5358 = vpop.f32.mrb[0].mxu0
        %v5359 = vadd.f32 %v5166, %v5358
        %5360 = vdwg.mxu0
        %v5361 = vmul.f32 %v3273, 0.088388346
        %v5362 = vmul.f32 %v3275, 0.088388346
        %v5363 = vmul.f32 %v3659, 0.088388346
        %v5364 = vmul.f32 %v3661, 0.088388346
        %v5365 = vmul.f32 %v3277, 0.088388346
        %v5366 = vmul.f32 %v3279, 0.088388346
        %v5367 = vmul.f32 %v3663, 0.088388346
        %v5368 = vmul.f32 %v3665, 0.088388346
        %v5369 = vmul.f32 %v3283, 0.088388346
        %v5370 = vmul.f32 %v3285, 0.088388346
        %v5371 = vmul.f32 %v3669, 0.088388346
        %v5372 = vmul.f32 %v3671, 0.088388346
        %v5373 = vmul.f32 %v3287, 0.088388346
        %v5374 = vmul.f32 %v3289, 0.088388346
        %v5375 = vmul.f32 %v3673, 0.088388346
        %v5376 = vmul.f32 %v3675, 0.088388346
        %v5377 = vmul.f32 %v3293, 0.088388346
        %v5378 = vmul.f32 %v3295, 0.088388346
        %v5379 = vmul.f32 %v3679, 0.088388346
        %v5380 = vmul.f32 %v3681, 0.088388346
        %v5381 = vmul.f32 %v3297, 0.088388346
        %v5382 = vmul.f32 %v3299, 0.088388346
        %v5383 = vmul.f32 %v3683, 0.088388346
        %v5384 = vmul.f32 %v3685, 0.088388346
        %v5385 = vmul.f32 %v3303, 0.088388346
        %v5386 = vmul.f32 %v3305, 0.088388346
        %v5387 = vmul.f32 %v3689, 0.088388346
        %v5388 = vmul.f32 %v3691, 0.088388346
        %v5389 = vmul.f32 %v3307, 0.088388346
        %v5390 = vmul.f32 %v3309, 0.088388346
        %v5391 = vmul.f32 %v3693, 0.088388346
        %v5392 = vmul.f32 %v3695, 0.088388346
        %v5393 = vmul.f32 %v3313, 0.088388346
        %v5394 = vmul.f32 %v3315, 0.088388346
        %v5395 = vmul.f32 %v3699, 0.088388346
        %v5396 = vmul.f32 %v3701, 0.088388346
        %v5397 = vmul.f32 %v3317, 0.088388346
        %v5398 = vmul.f32 %v3319, 0.088388346
        %v5399 = vmul.f32 %v3703, 0.088388346
        %v5400 = vmul.f32 %v3705, 0.088388346
        %v5401 = vmul.f32 %v3323, 0.088388346
        %v5402 = vmul.f32 %v3325, 0.088388346
        %v5403 = vmul.f32 %v3709, 0.088388346
        %v5404 = vmul.f32 %v3711, 0.088388346
        %v5405 = vmul.f32 %v3327, 0.088388346
        %v5406 = vmul.f32 %v3329, 0.088388346
        %v5407 = vmul.f32 %v3713, 0.088388346
        %v5408 = vmul.f32 %v3715, 0.088388346
        %v5409 = vmul.f32 %v3333, 0.088388346
        %v5410 = vmul.f32 %v3335, 0.088388346
        %v5411 = vmul.f32 %v3719, 0.088388346
        %v5412 = vmul.f32 %v3721, 0.088388346
        %v5413 = vmul.f32 %v3337, 0.088388346
        %v5414 = vmul.f32 %v3339, 0.088388346
        %v5415 = vmul.f32 %v3723, 0.088388346
        %v5416 = vmul.f32 %v3725, 0.088388346
        %v5417 = vmul.f32 %v3343, 0.088388346
        %v5418 = vmul.f32 %v3345, 0.088388346
        %v5419 = vmul.f32 %v3729, 0.088388346
        %v5420 = vmul.f32 %v3731, 0.088388346
        %v5421 = vmul.f32 %v3347, 0.088388346
        %v5422 = vmul.f32 %v3349, 0.088388346
        %v5423 = vmul.f32 %v3733, 0.088388346
        %v5424 = vmul.f32 %v3735, 0.088388346
        %v5425 = vmul.f32 %v3353, 0.088388346
        %v5426 = vmul.f32 %v3355, 0.088388346
        %v5427 = vmul.f32 %v3739, 0.088388346
        %v5428 = vmul.f32 %v3741, 0.088388346
        %v5429 = vmul.f32 %v3357, 0.088388346
        %v5430 = vmul.f32 %v3359, 0.088388346
        %v5431 = vmul.f32 %v3743, 0.088388346
        %v5432 = vmul.f32 %v3745, 0.088388346
        %v5433 = vmul.f32 %v3363, 0.088388346
        %v5434 = vmul.f32 %v3365, 0.088388346
        %v5435 = vmul.f32 %v3749, 0.088388346
        %v5436 = vmul.f32 %v3751, 0.088388346
        %v5437 = vmul.f32 %v3367, 0.088388346
        %v5438 = vmul.f32 %v3369, 0.088388346
        %v5439 = vmul.f32 %v3753, 0.088388346
        %v5440 = vmul.f32 %v3755, 0.088388346
        %v5441 = vmul.f32 %v3373, 0.088388346
        %v5442 = vmul.f32 %v3375, 0.088388346
        %v5443 = vmul.f32 %v3759, 0.088388346
        %v5444 = vmul.f32 %v3761, 0.088388346
        %v5445 = vmul.f32 %v3377, 0.088388346
        %v5446 = vmul.f32 %v3379, 0.088388346
        %v5447 = vmul.f32 %v3763, 0.088388346
        %v5448 = vmul.f32 %v3765, 0.088388346
        %v5449 = vmul.f32 %v3383, 0.088388346
        %v5450 = vmul.f32 %v3385, 0.088388346
        %v5451 = vmul.f32 %v3769, 0.088388346
        %v5452 = vmul.f32 %v3771, 0.088388346
        %v5453 = vmul.f32 %v3387, 0.088388346
        %v5454 = vmul.f32 %v3389, 0.088388346
        %v5455 = vmul.f32 %v3773, 0.088388346
        %v5456 = vmul.f32 %v3775, 0.088388346
        %v5457 = vmul.f32 %v3393, 0.088388346
        %v5458 = vmul.f32 %v3395, 0.088388346
        %v5459 = vmul.f32 %v3779, 0.088388346
        %v5460 = vmul.f32 %v3781, 0.088388346
        %v5461 = vmul.f32 %v3397, 0.088388346
        %v5462 = vmul.f32 %v3399, 0.088388346
        %v5463 = vmul.f32 %v3783, 0.088388346
        %v5464 = vmul.f32 %v3785, 0.088388346
        %v5465 = vmul.f32 %v3403, 0.088388346
        %v5466 = vmul.f32 %v3405, 0.088388346
        %v5467 = vmul.f32 %v3789, 0.088388346
        %v5468 = vmul.f32 %v3791, 0.088388346
        %v5469 = vmul.f32 %v3407, 0.088388346
        %v5470 = vmul.f32 %v3409, 0.088388346
        %v5471 = vmul.f32 %v3793, 0.088388346
        %v5472 = vmul.f32 %v3795, 0.088388346
        %v5473 = vmul.f32 %v3413, 0.088388346
        %v5474 = vmul.f32 %v3415, 0.088388346
        %v5475 = vmul.f32 %v3799, 0.088388346
        %v5476 = vmul.f32 %v3801, 0.088388346
        %v5477 = vmul.f32 %v3417, 0.088388346
        %v5478 = vmul.f32 %v3419, 0.088388346
        %v5479 = vmul.f32 %v3803, 0.088388346
        %v5480 = vmul.f32 %v3805, 0.088388346
        %v5481 = vmul.f32 %v3423, 0.088388346
        %v5482 = vmul.f32 %v3425, 0.088388346
        %v5483 = vmul.f32 %v3809, 0.088388346
        %v5484 = vmul.f32 %v3811, 0.088388346
        %v5485 = vmul.f32 %v3427, 0.088388346
        %v5486 = vmul.f32 %v3429, 0.088388346
        %v5487 = vmul.f32 %v3813, 0.088388346
        %v5488 = vmul.f32 %v3815, 0.088388346
        %v5489 = vpack.c.bf16 %v5365, %v5361
        %v5490 = vpack.c.bf16 %v5366, %v5362
        %v5491 = vpack.c.bf16 %v5367, %v5363
        %v5492 = vpack.c.bf16 %v5368, %v5364
        %v5493 = vpack.c.bf16 %v5373, %v5369
        %v5494 = vpack.c.bf16 %v5374, %v5370
        %v5495 = vpack.c.bf16 %v5375, %v5371
        %v5496 = vpack.c.bf16 %v5376, %v5372
        %v5497 = vpack.c.bf16 %v5381, %v5377
        %v5498 = vpack.c.bf16 %v5382, %v5378
        %v5499 = vpack.c.bf16 %v5383, %v5379
        %v5500 = vpack.c.bf16 %v5384, %v5380
        %v5501 = vpack.c.bf16 %v5389, %v5385
        %v5502 = vpack.c.bf16 %v5390, %v5386
        %v5503 = vpack.c.bf16 %v5391, %v5387
        %v5504 = vpack.c.bf16 %v5392, %v5388
        %v5505 = vpack.c.bf16 %v5397, %v5393
        %v5506 = vpack.c.bf16 %v5398, %v5394
        %v5507 = vpack.c.bf16 %v5399, %v5395
        %v5508 = vpack.c.bf16 %v5400, %v5396
        %v5509 = vpack.c.bf16 %v5405, %v5401
        %v5510 = vpack.c.bf16 %v5406, %v5402
        %v5511 = vpack.c.bf16 %v5407, %v5403
        %v5512 = vpack.c.bf16 %v5408, %v5404
        %v5513 = vpack.c.bf16 %v5413, %v5409
        %v5514 = vpack.c.bf16 %v5414, %v5410
        %v5515 = vpack.c.bf16 %v5415, %v5411
        %v5516 = vpack.c.bf16 %v5416, %v5412
        %v5517 = vpack.c.bf16 %v5421, %v5417
        %v5518 = vpack.c.bf16 %v5422, %v5418
        %v5519 = vpack.c.bf16 %v5423, %v5419
        %v5520 = vpack.c.bf16 %v5424, %v5420
        %v5521 = vpack.c.bf16 %v5429, %v5425
        %v5522 = vpack.c.bf16 %v5430, %v5426
        %v5523 = vpack.c.bf16 %v5431, %v5427
        %v5524 = vpack.c.bf16 %v5432, %v5428
        %v5525 = vpack.c.bf16 %v5437, %v5433
        %v5526 = vpack.c.bf16 %v5438, %v5434
        %v5527 = vpack.c.bf16 %v5439, %v5435
        %v5528 = vpack.c.bf16 %v5440, %v5436
        %v5529 = vpack.c.bf16 %v5445, %v5441
        %v5530 = vpack.c.bf16 %v5446, %v5442
        %v5531 = vpack.c.bf16 %v5447, %v5443
        %v5532 = vpack.c.bf16 %v5448, %v5444
        %v5533 = vpack.c.bf16 %v5453, %v5449
        %v5534 = vpack.c.bf16 %v5454, %v5450
        %v5535 = vpack.c.bf16 %v5455, %v5451
        %v5536 = vpack.c.bf16 %v5456, %v5452
        %v5537 = vpack.c.bf16 %v5461, %v5457
        %v5538 = vpack.c.bf16 %v5462, %v5458
        %v5539 = vpack.c.bf16 %v5463, %v5459
        %v5540 = vpack.c.bf16 %v5464, %v5460
        %v5541 = vpack.c.bf16 %v5469, %v5465
        %v5542 = vpack.c.bf16 %v5470, %v5466
        %v5543 = vpack.c.bf16 %v5471, %v5467
        %v5544 = vpack.c.bf16 %v5472, %v5468
        %v5545 = vpack.c.bf16 %v5477, %v5473
        %v5546 = vpack.c.bf16 %v5478, %v5474
        %v5547 = vpack.c.bf16 %v5479, %v5475
        %v5548 = vpack.c.bf16 %v5480, %v5476
        %v5549 = vpack.c.bf16 %v5485, %v5481
        %v5550 = vpack.c.bf16 %v5486, %v5482
        %v5551 = vpack.c.bf16 %v5487, %v5483
        %v5552 = vpack.c.bf16 %v5488, %v5484
        %v5617 = vunpack.c.l.b16 %v5489
        %v5618 = vunpack.c.l.b16 %v5490
        %v5619 = vunpack.c.l.b16 %v5491
        %v5620 = vunpack.c.l.b16 %v5492
        %v5621 = vunpack.c.h.b16 %v5489
        %v5622 = vunpack.c.h.b16 %v5490
        %v5623 = vunpack.c.h.b16 %v5491
        %v5624 = vunpack.c.h.b16 %v5492
        %v5625 = vunpack.c.l.b16 %v5493
        %v5626 = vunpack.c.l.b16 %v5494
        %v5627 = vunpack.c.l.b16 %v5495
        %v5628 = vunpack.c.l.b16 %v5496
        %v5629 = vunpack.c.h.b16 %v5493
        %v5630 = vunpack.c.h.b16 %v5494
        %v5631 = vunpack.c.h.b16 %v5495
        %v5632 = vunpack.c.h.b16 %v5496
        %v5633 = vunpack.c.l.b16 %v5497
        %v5634 = vunpack.c.l.b16 %v5498
        %v5635 = vunpack.c.l.b16 %v5499
        %v5636 = vunpack.c.l.b16 %v5500
        %v5637 = vunpack.c.h.b16 %v5497
        %v5638 = vunpack.c.h.b16 %v5498
        %v5639 = vunpack.c.h.b16 %v5499
        %v5640 = vunpack.c.h.b16 %v5500
        %v5641 = vunpack.c.l.b16 %v5501
        %v5642 = vunpack.c.l.b16 %v5502
        %v5643 = vunpack.c.l.b16 %v5503
        %v5644 = vunpack.c.l.b16 %v5504
        %v5645 = vunpack.c.h.b16 %v5501
        %v5646 = vunpack.c.h.b16 %v5502
        %v5647 = vunpack.c.h.b16 %v5503
        %v5648 = vunpack.c.h.b16 %v5504
        %v5649 = vunpack.c.l.b16 %v5505
        %v5650 = vunpack.c.l.b16 %v5506
        %v5651 = vunpack.c.l.b16 %v5507
        %v5652 = vunpack.c.l.b16 %v5508
        %v5653 = vunpack.c.h.b16 %v5505
        %v5654 = vunpack.c.h.b16 %v5506
        %v5655 = vunpack.c.h.b16 %v5507
        %v5656 = vunpack.c.h.b16 %v5508
        %v5657 = vunpack.c.l.b16 %v5509
        %v5658 = vunpack.c.l.b16 %v5510
        %v5659 = vunpack.c.l.b16 %v5511
        %v5660 = vunpack.c.l.b16 %v5512
        %v5661 = vunpack.c.h.b16 %v5509
        %v5662 = vunpack.c.h.b16 %v5510
        %v5663 = vunpack.c.h.b16 %v5511
        %v5664 = vunpack.c.h.b16 %v5512
        %v5665 = vunpack.c.l.b16 %v5513
        %v5666 = vunpack.c.l.b16 %v5514
        %v5667 = vunpack.c.l.b16 %v5515
        %v5668 = vunpack.c.l.b16 %v5516
        %v5669 = vunpack.c.h.b16 %v5513
        %v5670 = vunpack.c.h.b16 %v5514
        %v5671 = vunpack.c.h.b16 %v5515
        %v5672 = vunpack.c.h.b16 %v5516
        %v5673 = vunpack.c.l.b16 %v5517
        %v5674 = vunpack.c.l.b16 %v5518
        %v5675 = vunpack.c.l.b16 %v5519
        %v5676 = vunpack.c.l.b16 %v5520
        %v5677 = vunpack.c.h.b16 %v5517
        %v5678 = vunpack.c.h.b16 %v5518
        %v5679 = vunpack.c.h.b16 %v5519
        %v5680 = vunpack.c.h.b16 %v5520
        %v5681 = vunpack.c.l.b16 %v5521
        %v5682 = vunpack.c.l.b16 %v5522
        %v5683 = vunpack.c.l.b16 %v5523
        %v5684 = vunpack.c.l.b16 %v5524
        %v5685 = vunpack.c.h.b16 %v5521
        %v5686 = vunpack.c.h.b16 %v5522
        %v5687 = vunpack.c.h.b16 %v5523
        %v5688 = vunpack.c.h.b16 %v5524
        %v5689 = vunpack.c.l.b16 %v5525
        %v5690 = vunpack.c.l.b16 %v5526
        %v5691 = vunpack.c.l.b16 %v5527
        %v5692 = vunpack.c.l.b16 %v5528
        %v5693 = vunpack.c.h.b16 %v5525
        %v5694 = vunpack.c.h.b16 %v5526
        %v5695 = vunpack.c.h.b16 %v5527
        %v5696 = vunpack.c.h.b16 %v5528
        %v5697 = vunpack.c.l.b16 %v5529
        %v5698 = vunpack.c.l.b16 %v5530
        %v5699 = vunpack.c.l.b16 %v5531
        %v5700 = vunpack.c.l.b16 %v5532
        %v5701 = vunpack.c.h.b16 %v5529
        %v5702 = vunpack.c.h.b16 %v5530
        %v5703 = vunpack.c.h.b16 %v5531
        %v5704 = vunpack.c.h.b16 %v5532
        %v5705 = vunpack.c.l.b16 %v5533
        %v5706 = vunpack.c.l.b16 %v5534
        %v5707 = vunpack.c.l.b16 %v5535
        %v5708 = vunpack.c.l.b16 %v5536
        %v5709 = vunpack.c.h.b16 %v5533
        %v5710 = vunpack.c.h.b16 %v5534
        %v5711 = vunpack.c.h.b16 %v5535
        %v5712 = vunpack.c.h.b16 %v5536
        %v5713 = vunpack.c.l.b16 %v5537
        %v5714 = vunpack.c.l.b16 %v5538
        %v5715 = vunpack.c.l.b16 %v5539
        %v5716 = vunpack.c.l.b16 %v5540
        %v5717 = vunpack.c.h.b16 %v5537
        %v5718 = vunpack.c.h.b16 %v5538
        %v5719 = vunpack.c.h.b16 %v5539
        %v5720 = vunpack.c.h.b16 %v5540
        %v5721 = vunpack.c.l.b16 %v5541
        %v5722 = vunpack.c.l.b16 %v5542
        %v5723 = vunpack.c.l.b16 %v5543
        %v5724 = vunpack.c.l.b16 %v5544
        %v5725 = vunpack.c.h.b16 %v5541
        %v5726 = vunpack.c.h.b16 %v5542
        %v5727 = vunpack.c.h.b16 %v5543
        %v5728 = vunpack.c.h.b16 %v5544
        %v5729 = vunpack.c.l.b16 %v5545
        %v5730 = vunpack.c.l.b16 %v5546
        %v5731 = vunpack.c.l.b16 %v5547
        %v5732 = vunpack.c.l.b16 %v5548
        %v5733 = vunpack.c.h.b16 %v5545
        %v5734 = vunpack.c.h.b16 %v5546
        %v5735 = vunpack.c.h.b16 %v5547
        %v5736 = vunpack.c.h.b16 %v5548
        %v5737 = vunpack.c.l.b16 %v5549
        %v5738 = vunpack.c.l.b16 %v5550
        %v5739 = vunpack.c.l.b16 %v5551
        %v5740 = vunpack.c.l.b16 %v5552
        %v5741 = vunpack.c.h.b16 %v5549
        %v5742 = vunpack.c.h.b16 %v5550
        %v5743 = vunpack.c.h.b16 %v5551
        %v5744 = vunpack.c.h.b16 %v5552
        %v5745 = vpack.c.b16 %v5618, %v5617
        %v5746 = vpack.c.b16 %v5620, %v5619
        %v5747 = vpack.c.b16 %v5622, %v5621
        %v5748 = vpack.c.b16 %v5624, %v5623
        %v5749 = vpack.c.b16 %v5626, %v5625
        %v5750 = vpack.c.b16 %v5628, %v5627
        %v5751 = vpack.c.b16 %v5630, %v5629
        %v5752 = vpack.c.b16 %v5632, %v5631
        %v5753 = vpack.c.b16 %v5634, %v5633
        %v5754 = vpack.c.b16 %v5636, %v5635
        %v5755 = vpack.c.b16 %v5638, %v5637
        %v5756 = vpack.c.b16 %v5640, %v5639
        %v5757 = vpack.c.b16 %v5642, %v5641
        %v5758 = vpack.c.b16 %v5644, %v5643
        %v5759 = vpack.c.b16 %v5646, %v5645
        %v5760 = vpack.c.b16 %v5648, %v5647
        %v5761 = vpack.c.b16 %v5650, %v5649
        %v5762 = vpack.c.b16 %v5652, %v5651
        %v5763 = vpack.c.b16 %v5654, %v5653
        %v5764 = vpack.c.b16 %v5656, %v5655
        %v5765 = vpack.c.b16 %v5658, %v5657
        %v5766 = vpack.c.b16 %v5660, %v5659
        %v5767 = vpack.c.b16 %v5662, %v5661
        %v5768 = vpack.c.b16 %v5664, %v5663
        %v5769 = vpack.c.b16 %v5666, %v5665
        %v5770 = vpack.c.b16 %v5668, %v5667
        %v5771 = vpack.c.b16 %v5670, %v5669
        %v5772 = vpack.c.b16 %v5672, %v5671
        %v5773 = vpack.c.b16 %v5674, %v5673
        %v5774 = vpack.c.b16 %v5676, %v5675
        %v5775 = vpack.c.b16 %v5678, %v5677
        %v5776 = vpack.c.b16 %v5680, %v5679
        %v5777 = vpack.c.b16 %v5682, %v5681
        %v5778 = vpack.c.b16 %v5684, %v5683
        %v5779 = vpack.c.b16 %v5686, %v5685
        %v5780 = vpack.c.b16 %v5688, %v5687
        %v5781 = vpack.c.b16 %v5690, %v5689
        %v5782 = vpack.c.b16 %v5692, %v5691
        %v5783 = vpack.c.b16 %v5694, %v5693
        %v5784 = vpack.c.b16 %v5696, %v5695
        %v5785 = vpack.c.b16 %v5698, %v5697
        %v5786 = vpack.c.b16 %v5700, %v5699
        %v5787 = vpack.c.b16 %v5702, %v5701
        %v5788 = vpack.c.b16 %v5704, %v5703
        %v5789 = vpack.c.b16 %v5706, %v5705
        %v5790 = vpack.c.b16 %v5708, %v5707
        %v5791 = vpack.c.b16 %v5710, %v5709
        %v5792 = vpack.c.b16 %v5712, %v5711
        %v5793 = vpack.c.b16 %v5714, %v5713
        %v5794 = vpack.c.b16 %v5716, %v5715
        %v5795 = vpack.c.b16 %v5718, %v5717
        %v5796 = vpack.c.b16 %v5720, %v5719
        %v5797 = vpack.c.b16 %v5722, %v5721
        %v5798 = vpack.c.b16 %v5724, %v5723
        %v5799 = vpack.c.b16 %v5726, %v5725
        %v5800 = vpack.c.b16 %v5728, %v5727
        %v5801 = vpack.c.b16 %v5730, %v5729
        %v5802 = vpack.c.b16 %v5732, %v5731
        %v5803 = vpack.c.b16 %v5734, %v5733
        %v5804 = vpack.c.b16 %v5736, %v5735
        %v5805 = vpack.c.b16 %v5738, %v5737
        %v5806 = vpack.c.b16 %v5740, %v5739
        %v5807 = vpack.c.b16 %v5742, %v5741
        %v5808 = vpack.c.b16 %v5744, %v5743
        %5873 = vst [vmem:[%s274] sm:$0xff] %v5745
        %5874 = vst [vmem:[%s274 + $0x8] sm:$0xff] %v5746
        %5875 = vst [vmem:[%s274 + $0x10] sm:$0xff] %v5747
        %5876 = vst [vmem:[%s274 + $0x18] sm:$0xff] %v5748
        %5877 = vst [vmem:[%s274 + $0x20] sm:$0xff] %v5749
        %5878 = vst [vmem:[%s274 + $0x28] sm:$0xff] %v5750
        %5879 = vst [vmem:[%s274 + $0x30] sm:$0xff] %v5751
        %5880 = vst [vmem:[%s274 + $0x38] sm:$0xff] %v5752
        %5881 = vst [vmem:[%s274 + $0x40] sm:$0xff] %v5753
        %5882 = vst [vmem:[%s274 + $0x48] sm:$0xff] %v5754
        %5883 = vst [vmem:[%s274 + $0x50] sm:$0xff] %v5755
        %5884 = vst [vmem:[%s274 + $0x58] sm:$0xff] %v5756
        %5885 = vst [vmem:[%s274 + $0x60] sm:$0xff] %v5757
        %5886 = vst [vmem:[%s274 + $0x68] sm:$0xff] %v5758
        %5887 = vst [vmem:[%s274 + $0x70] sm:$0xff] %v5759
        %5888 = vst [vmem:[%s274 + $0x78] sm:$0xff] %v5760
        %5889 = vst [vmem:[%s274 + $0x80] sm:$0xff] %v5761
        %5890 = vst [vmem:[%s274 + $0x88] sm:$0xff] %v5762
        %5891 = vst [vmem:[%s274 + $0x90] sm:$0xff] %v5763
        %5892 = vst [vmem:[%s274 + $0x98] sm:$0xff] %v5764
        %5893 = vst [vmem:[%s274 + $0xa0] sm:$0xff] %v5765
        %5894 = vst [vmem:[%s274 + $0xa8] sm:$0xff] %v5766
        %5895 = vst [vmem:[%s274 + $0xb0] sm:$0xff] %v5767
        %5896 = vst [vmem:[%s274 + $0xb8] sm:$0xff] %v5768
        %5897 = vst [vmem:[%s274 + $0xc0] sm:$0xff] %v5769
        %5898 = vst [vmem:[%s274 + $0xc8] sm:$0xff] %v5770
        %5899 = vst [vmem:[%s274 + $0xd0] sm:$0xff] %v5771
        %5900 = vst [vmem:[%s274 + $0xd8] sm:$0xff] %v5772
        %5901 = vst [vmem:[%s274 + $0xe0] sm:$0xff] %v5773
        %5902 = vst [vmem:[%s274 + $0xe8] sm:$0xff] %v5774
        %5903 = vst [vmem:[%s274 + $0xf0] sm:$0xff] %v5775
        %5904 = vst [vmem:[%s274 + $0xf8] sm:$0xff] %v5776
        %5905 = vst [vmem:[%s274 + $0x100] sm:$0xff] %v5777
        %5906 = vst [vmem:[%s274 + $0x108] sm:$0xff] %v5778
        %5907 = vst [vmem:[%s274 + $0x110] sm:$0xff] %v5779
        %5908 = vst [vmem:[%s274 + $0x118] sm:$0xff] %v5780
        %5909 = vst [vmem:[%s274 + $0x120] sm:$0xff] %v5781
        %5910 = vst [vmem:[%s274 + $0x128] sm:$0xff] %v5782
        %5911 = vst [vmem:[%s274 + $0x130] sm:$0xff] %v5783
        %5912 = vst [vmem:[%s274 + $0x138] sm:$0xff] %v5784
        %5913 = vst [vmem:[%s274 + $0x140] sm:$0xff] %v5785
        %5914 = vst [vmem:[%s274 + $0x148] sm:$0xff] %v5786
        %5915 = vst [vmem:[%s274 + $0x150] sm:$0xff] %v5787
        %5916 = vst [vmem:[%s274 + $0x158] sm:$0xff] %v5788
        %5917 = vst [vmem:[%s274 + $0x160] sm:$0xff] %v5789
        %5918 = vst [vmem:[%s274 + $0x168] sm:$0xff] %v5790
        %5919 = vst [vmem:[%s274 + $0x170] sm:$0xff] %v5791
        %5920 = vst [vmem:[%s274 + $0x178] sm:$0xff] %v5792
        %5921 = vst [vmem:[%s274 + $0x180] sm:$0xff] %v5793
        %5922 = vst [vmem:[%s274 + $0x188] sm:$0xff] %v5794
        %5923 = vst [vmem:[%s274 + $0x190] sm:$0xff] %v5795
        %5924 = vst [vmem:[%s274 + $0x198] sm:$0xff] %v5796
        %5925 = vst [vmem:[%s274 + $0x1a0] sm:$0xff] %v5797
        %5926 = vst [vmem:[%s274 + $0x1a8] sm:$0xff] %v5798
        %5927 = vst [vmem:[%s274 + $0x1b0] sm:$0xff] %v5799
        %5928 = vst [vmem:[%s274 + $0x1b8] sm:$0xff] %v5800
        %5929 = vst [vmem:[%s274 + $0x1c0] sm:$0xff] %v5801
        %5930 = vst [vmem:[%s274 + $0x1c8] sm:$0xff] %v5802
        %5931 = vst [vmem:[%s274 + $0x1d0] sm:$0xff] %v5803
        %5932 = vst [vmem:[%s274 + $0x1d8] sm:$0xff] %v5804
        %5933 = vst [vmem:[%s274 + $0x1e0] sm:$0xff] %v5805
        %5934 = vst [vmem:[%s274 + $0x1e8] sm:$0xff] %v5806
        %5935 = vst [vmem:[%s274 + $0x1f0] sm:$0xff] %v5807
        %5936 = vst [vmem:[%s274 + $0x1f8] sm:$0xff] %v5808
        %v5937 = vpack.c.bf16 %v4049, %v4045
        %v5938 = vpack.c.bf16 %v4051, %v4047
        %v5939 = vpack.c.bf16 %v4435, %v4431
        %v5940 = vpack.c.bf16 %v4437, %v4433
        %v5941 = vpack.c.bf16 %v4059, %v4055
        %v5942 = vpack.c.bf16 %v4061, %v4057
        %v5943 = vpack.c.bf16 %v4445, %v4441
        %v5944 = vpack.c.bf16 %v4447, %v4443
        %v5945 = vpack.c.bf16 %v4069, %v4065
        %v5946 = vpack.c.bf16 %v4071, %v4067
        %v5947 = vpack.c.bf16 %v4455, %v4451
        %v5948 = vpack.c.bf16 %v4457, %v4453
        %v5949 = vpack.c.bf16 %v4079, %v4075
        %v5950 = vpack.c.bf16 %v4081, %v4077
        %v5951 = vpack.c.bf16 %v4465, %v4461
        %v5952 = vpack.c.bf16 %v4467, %v4463
        %v5953 = vpack.c.bf16 %v4089, %v4085
        %v5954 = vpack.c.bf16 %v4091, %v4087
        %v5955 = vpack.c.bf16 %v4475, %v4471
        %v5956 = vpack.c.bf16 %v4477, %v4473
        %v5957 = vpack.c.bf16 %v4099, %v4095
        %v5958 = vpack.c.bf16 %v4101, %v4097
        %v5959 = vpack.c.bf16 %v4485, %v4481
        %v5960 = vpack.c.bf16 %v4487, %v4483
        %v5961 = vpack.c.bf16 %v4109, %v4105
        %v5962 = vpack.c.bf16 %v4111, %v4107
        %v5963 = vpack.c.bf16 %v4495, %v4491
        %v5964 = vpack.c.bf16 %v4497, %v4493
        %v5965 = vpack.c.bf16 %v4119, %v4115
        %v5966 = vpack.c.bf16 %v4121, %v4117
        %v5967 = vpack.c.bf16 %v4505, %v4501
        %v5968 = vpack.c.bf16 %v4507, %v4503
        %v5969 = vpack.c.bf16 %v4129, %v4125
        %v5970 = vpack.c.bf16 %v4131, %v4127
        %v5971 = vpack.c.bf16 %v4515, %v4511
        %v5972 = vpack.c.bf16 %v4517, %v4513
        %v5973 = vpack.c.bf16 %v4139, %v4135
        %v5974 = vpack.c.bf16 %v4141, %v4137
        %v5975 = vpack.c.bf16 %v4525, %v4521
        %v5976 = vpack.c.bf16 %v4527, %v4523
        %v5977 = vpack.c.bf16 %v4149, %v4145
        %v5978 = vpack.c.bf16 %v4151, %v4147
        %v5979 = vpack.c.bf16 %v4535, %v4531
        %v5980 = vpack.c.bf16 %v4537, %v4533
        %v5981 = vpack.c.bf16 %v4159, %v4155
        %v5982 = vpack.c.bf16 %v4161, %v4157
        %v5983 = vpack.c.bf16 %v4545, %v4541
        %v5984 = vpack.c.bf16 %v4547, %v4543
        %v5985 = vpack.c.bf16 %v4169, %v4165
        %v5986 = vpack.c.bf16 %v4171, %v4167
        %v5987 = vpack.c.bf16 %v4555, %v4551
        %v5988 = vpack.c.bf16 %v4557, %v4553
        %v5989 = vpack.c.bf16 %v4179, %v4175
        %v5990 = vpack.c.bf16 %v4181, %v4177
        %v5991 = vpack.c.bf16 %v4565, %v4561
        %v5992 = vpack.c.bf16 %v4567, %v4563
        %v5993 = vpack.c.bf16 %v4189, %v4185
        %v5994 = vpack.c.bf16 %v4191, %v4187
        %v5995 = vpack.c.bf16 %v4575, %v4571
        %v5996 = vpack.c.bf16 %v4577, %v4573
        %v5997 = vpack.c.bf16 %v4199, %v4195
        %v5998 = vpack.c.bf16 %v4201, %v4197
        %v5999 = vpack.c.bf16 %v4585, %v4581
        %v6000 = vpack.c.bf16 %v4587, %v4583
        %v6065 = vunpack.c.l.b16 %v5937
        %v6066 = vunpack.c.l.b16 %v5938
        %v6067 = vunpack.c.l.b16 %v5939
        %v6068 = vunpack.c.l.b16 %v5940
        %v6069 = vunpack.c.h.b16 %v5937
        %v6070 = vunpack.c.h.b16 %v5938
        %v6071 = vunpack.c.h.b16 %v5939
        %v6072 = vunpack.c.h.b16 %v5940
        %v6073 = vunpack.c.l.b16 %v5941
        %v6074 = vunpack.c.l.b16 %v5942
        %v6075 = vunpack.c.l.b16 %v5943
        %v6076 = vunpack.c.l.b16 %v5944
        %v6077 = vunpack.c.h.b16 %v5941
        %v6078 = vunpack.c.h.b16 %v5942
        %v6079 = vunpack.c.h.b16 %v5943
        %v6080 = vunpack.c.h.b16 %v5944
        %v6081 = vunpack.c.l.b16 %v5945
        %v6082 = vunpack.c.l.b16 %v5946
        %v6083 = vunpack.c.l.b16 %v5947
        %v6084 = vunpack.c.l.b16 %v5948
        %v6085 = vunpack.c.h.b16 %v5945
        %v6086 = vunpack.c.h.b16 %v5946
        %v6087 = vunpack.c.h.b16 %v5947
        %v6088 = vunpack.c.h.b16 %v5948
        %v6089 = vunpack.c.l.b16 %v5949
        %v6090 = vunpack.c.l.b16 %v5950
        %v6091 = vunpack.c.l.b16 %v5951
        %v6092 = vunpack.c.l.b16 %v5952
        %v6093 = vunpack.c.h.b16 %v5949
        %v6094 = vunpack.c.h.b16 %v5950
        %v6095 = vunpack.c.h.b16 %v5951
        %v6096 = vunpack.c.h.b16 %v5952
        %v6097 = vunpack.c.l.b16 %v5953
        %v6098 = vunpack.c.l.b16 %v5954
        %v6099 = vunpack.c.l.b16 %v5955
        %v6100 = vunpack.c.l.b16 %v5956
        %v6101 = vunpack.c.h.b16 %v5953
        %v6102 = vunpack.c.h.b16 %v5954
        %v6103 = vunpack.c.h.b16 %v5955
        %v6104 = vunpack.c.h.b16 %v5956
        %v6105 = vunpack.c.l.b16 %v5957
        %v6106 = vunpack.c.l.b16 %v5958
        %v6107 = vunpack.c.l.b16 %v5959
        %v6108 = vunpack.c.l.b16 %v5960
        %v6109 = vunpack.c.h.b16 %v5957
        %v6110 = vunpack.c.h.b16 %v5958
        %v6111 = vunpack.c.h.b16 %v5959
        %v6112 = vunpack.c.h.b16 %v5960
        %v6113 = vunpack.c.l.b16 %v5961
        %v6114 = vunpack.c.l.b16 %v5962
        %v6115 = vunpack.c.l.b16 %v5963
        %v6116 = vunpack.c.l.b16 %v5964
        %v6117 = vunpack.c.h.b16 %v5961
        %v6118 = vunpack.c.h.b16 %v5962
        %v6119 = vunpack.c.h.b16 %v5963
        %v6120 = vunpack.c.h.b16 %v5964
        %v6121 = vunpack.c.l.b16 %v5965
        %v6122 = vunpack.c.l.b16 %v5966
        %v6123 = vunpack.c.l.b16 %v5967
        %v6124 = vunpack.c.l.b16 %v5968
        %v6125 = vunpack.c.h.b16 %v5965
        %v6126 = vunpack.c.h.b16 %v5966
        %v6127 = vunpack.c.h.b16 %v5967
        %v6128 = vunpack.c.h.b16 %v5968
        %v6129 = vunpack.c.l.b16 %v5969
        %v6130 = vunpack.c.l.b16 %v5970
        %v6131 = vunpack.c.l.b16 %v5971
        %v6132 = vunpack.c.l.b16 %v5972
        %v6133 = vunpack.c.h.b16 %v5969
        %v6134 = vunpack.c.h.b16 %v5970
        %v6135 = vunpack.c.h.b16 %v5971
        %v6136 = vunpack.c.h.b16 %v5972
        %v6137 = vunpack.c.l.b16 %v5973
        %v6138 = vunpack.c.l.b16 %v5974
        %v6139 = vunpack.c.l.b16 %v5975
        %v6140 = vunpack.c.l.b16 %v5976
        %v6141 = vunpack.c.h.b16 %v5973
        %v6142 = vunpack.c.h.b16 %v5974
        %v6143 = vunpack.c.h.b16 %v5975
        %v6144 = vunpack.c.h.b16 %v5976
        %v6145 = vunpack.c.l.b16 %v5977
        %v6146 = vunpack.c.l.b16 %v5978
        %v6147 = vunpack.c.l.b16 %v5979
        %v6148 = vunpack.c.l.b16 %v5980
        %v6149 = vunpack.c.h.b16 %v5977
        %v6150 = vunpack.c.h.b16 %v5978
        %v6151 = vunpack.c.h.b16 %v5979
        %v6152 = vunpack.c.h.b16 %v5980
        %v6153 = vunpack.c.l.b16 %v5981
        %v6154 = vunpack.c.l.b16 %v5982
        %v6155 = vunpack.c.l.b16 %v5983
        %v6156 = vunpack.c.l.b16 %v5984
        %v6157 = vunpack.c.h.b16 %v5981
        %v6158 = vunpack.c.h.b16 %v5982
        %v6159 = vunpack.c.h.b16 %v5983
        %v6160 = vunpack.c.h.b16 %v5984
        %v6161 = vunpack.c.l.b16 %v5985
        %v6162 = vunpack.c.l.b16 %v5986
        %v6163 = vunpack.c.l.b16 %v5987
        %v6164 = vunpack.c.l.b16 %v5988
        %v6165 = vunpack.c.h.b16 %v5985
        %v6166 = vunpack.c.h.b16 %v5986
        %v6167 = vunpack.c.h.b16 %v5987
        %v6168 = vunpack.c.h.b16 %v5988
        %v6169 = vunpack.c.l.b16 %v5989
        %v6170 = vunpack.c.l.b16 %v5990
        %v6171 = vunpack.c.l.b16 %v5991
        %v6172 = vunpack.c.l.b16 %v5992
        %v6173 = vunpack.c.h.b16 %v5989
        %v6174 = vunpack.c.h.b16 %v5990
        %v6175 = vunpack.c.h.b16 %v5991
        %v6176 = vunpack.c.h.b16 %v5992
        %v6177 = vunpack.c.l.b16 %v5993
        %v6178 = vunpack.c.l.b16 %v5994
        %v6179 = vunpack.c.l.b16 %v5995
        %v6180 = vunpack.c.l.b16 %v5996
        %v6181 = vunpack.c.h.b16 %v5993
        %v6182 = vunpack.c.h.b16 %v5994
        %v6183 = vunpack.c.h.b16 %v5995
        %v6184 = vunpack.c.h.b16 %v5996
        %v6185 = vunpack.c.l.b16 %v5997
        %v6186 = vunpack.c.l.b16 %v5998
        %v6187 = vunpack.c.l.b16 %v5999
        %v6188 = vunpack.c.l.b16 %v6000
        %v6189 = vunpack.c.h.b16 %v5997
        %v6190 = vunpack.c.h.b16 %v5998
        %v6191 = vunpack.c.h.b16 %v5999
        %v6192 = vunpack.c.h.b16 %v6000
        %v6193 = vpack.c.b16 %v6066, %v6065
        %v6194 = vpack.c.b16 %v6068, %v6067
        %v6195 = vpack.c.b16 %v6070, %v6069
        %v6196 = vpack.c.b16 %v6072, %v6071
        %v6197 = vpack.c.b16 %v6074, %v6073
        %v6198 = vpack.c.b16 %v6076, %v6075
        %v6199 = vpack.c.b16 %v6078, %v6077
        %v6200 = vpack.c.b16 %v6080, %v6079
        %v6201 = vpack.c.b16 %v6082, %v6081
        %v6202 = vpack.c.b16 %v6084, %v6083
        %v6203 = vpack.c.b16 %v6086, %v6085
        %v6204 = vpack.c.b16 %v6088, %v6087
        %v6205 = vpack.c.b16 %v6090, %v6089
        %v6206 = vpack.c.b16 %v6092, %v6091
        %v6207 = vpack.c.b16 %v6094, %v6093
        %v6208 = vpack.c.b16 %v6096, %v6095
        %v6209 = vpack.c.b16 %v6098, %v6097
        %v6210 = vpack.c.b16 %v6100, %v6099
        %v6211 = vpack.c.b16 %v6102, %v6101
        %v6212 = vpack.c.b16 %v6104, %v6103
        %v6213 = vpack.c.b16 %v6106, %v6105
        %v6214 = vpack.c.b16 %v6108, %v6107
        %v6215 = vpack.c.b16 %v6110, %v6109
        %v6216 = vpack.c.b16 %v6112, %v6111
        %v6217 = vpack.c.b16 %v6114, %v6113
        %v6218 = vpack.c.b16 %v6116, %v6115
        %v6219 = vpack.c.b16 %v6118, %v6117
        %v6220 = vpack.c.b16 %v6120, %v6119
        %v6221 = vpack.c.b16 %v6122, %v6121
        %v6222 = vpack.c.b16 %v6124, %v6123
        %v6223 = vpack.c.b16 %v6126, %v6125
        %v6224 = vpack.c.b16 %v6128, %v6127
        %v6225 = vpack.c.b16 %v6130, %v6129
        %v6226 = vpack.c.b16 %v6132, %v6131
        %v6227 = vpack.c.b16 %v6134, %v6133
        %v6228 = vpack.c.b16 %v6136, %v6135
        %v6229 = vpack.c.b16 %v6138, %v6137
        %v6230 = vpack.c.b16 %v6140, %v6139
        %v6231 = vpack.c.b16 %v6142, %v6141
        %v6232 = vpack.c.b16 %v6144, %v6143
        %v6233 = vpack.c.b16 %v6146, %v6145
        %v6234 = vpack.c.b16 %v6148, %v6147
        %v6235 = vpack.c.b16 %v6150, %v6149
        %v6236 = vpack.c.b16 %v6152, %v6151
        %v6237 = vpack.c.b16 %v6154, %v6153
        %v6238 = vpack.c.b16 %v6156, %v6155
        %v6239 = vpack.c.b16 %v6158, %v6157
        %v6240 = vpack.c.b16 %v6160, %v6159
        %v6241 = vpack.c.b16 %v6162, %v6161
        %v6242 = vpack.c.b16 %v6164, %v6163
        %v6243 = vpack.c.b16 %v6166, %v6165
        %v6244 = vpack.c.b16 %v6168, %v6167
        %v6245 = vpack.c.b16 %v6170, %v6169
        %v6246 = vpack.c.b16 %v6172, %v6171
        %v6247 = vpack.c.b16 %v6174, %v6173
        %v6248 = vpack.c.b16 %v6176, %v6175
        %v6249 = vpack.c.b16 %v6178, %v6177
        %v6250 = vpack.c.b16 %v6180, %v6179
        %v6251 = vpack.c.b16 %v6182, %v6181
        %v6252 = vpack.c.b16 %v6184, %v6183
        %v6253 = vpack.c.b16 %v6186, %v6185
        %v6254 = vpack.c.b16 %v6188, %v6187
        %v6255 = vpack.c.b16 %v6190, %v6189
        %v6256 = vpack.c.b16 %v6192, %v6191
        %6321 = vst [vmem:[%s281] sm:$0xff] %v6193
        %6322 = vst [vmem:[%s281 + $0x8] sm:$0xff] %v6194
        %6323 = vst [vmem:[%s281 + $0x10] sm:$0xff] %v6195
        %6324 = vst [vmem:[%s281 + $0x18] sm:$0xff] %v6196
        %6325 = vst [vmem:[%s281 + $0x20] sm:$0xff] %v6197
        %6326 = vst [vmem:[%s281 + $0x28] sm:$0xff] %v6198
        %6327 = vst [vmem:[%s281 + $0x30] sm:$0xff] %v6199
        %6328 = vst [vmem:[%s281 + $0x38] sm:$0xff] %v6200
        %6329 = vst [vmem:[%s281 + $0x40] sm:$0xff] %v6201
        %6330 = vst [vmem:[%s281 + $0x48] sm:$0xff] %v6202
        %6331 = vst [vmem:[%s281 + $0x50] sm:$0xff] %v6203
        %6332 = vst [vmem:[%s281 + $0x58] sm:$0xff] %v6204
        %6333 = vst [vmem:[%s281 + $0x60] sm:$0xff] %v6205
        %6334 = vst [vmem:[%s281 + $0x68] sm:$0xff] %v6206
        %6335 = vst [vmem:[%s281 + $0x70] sm:$0xff] %v6207
        %6336 = vst [vmem:[%s281 + $0x78] sm:$0xff] %v6208
        %6337 = vst [vmem:[%s281 + $0x80] sm:$0xff] %v6209
        %6338 = vst [vmem:[%s281 + $0x88] sm:$0xff] %v6210
        %6339 = vst [vmem:[%s281 + $0x90] sm:$0xff] %v6211
        %6340 = vst [vmem:[%s281 + $0x98] sm:$0xff] %v6212
        %6341 = vst [vmem:[%s281 + $0xa0] sm:$0xff] %v6213
        %6342 = vst [vmem:[%s281 + $0xa8] sm:$0xff] %v6214
        %6343 = vst [vmem:[%s281 + $0xb0] sm:$0xff] %v6215
        %6344 = vst [vmem:[%s281 + $0xb8] sm:$0xff] %v6216
        %6345 = vst [vmem:[%s281 + $0xc0] sm:$0xff] %v6217
        %6346 = vst [vmem:[%s281 + $0xc8] sm:$0xff] %v6218
        %6347 = vst [vmem:[%s281 + $0xd0] sm:$0xff] %v6219
        %6348 = vst [vmem:[%s281 + $0xd8] sm:$0xff] %v6220
        %6349 = vst [vmem:[%s281 + $0xe0] sm:$0xff] %v6221
        %6350 = vst [vmem:[%s281 + $0xe8] sm:$0xff] %v6222
        %6351 = vst [vmem:[%s281 + $0xf0] sm:$0xff] %v6223
        %6352 = vst [vmem:[%s281 + $0xf8] sm:$0xff] %v6224
        %6353 = vst [vmem:[%s281 + $0x100] sm:$0xff] %v6225
        %6354 = vst [vmem:[%s281 + $0x108] sm:$0xff] %v6226
        %6355 = vst [vmem:[%s281 + $0x110] sm:$0xff] %v6227
        %6356 = vst [vmem:[%s281 + $0x118] sm:$0xff] %v6228
        %6357 = vst [vmem:[%s281 + $0x120] sm:$0xff] %v6229
        %6358 = vst [vmem:[%s281 + $0x128] sm:$0xff] %v6230
        %6359 = vst [vmem:[%s281 + $0x130] sm:$0xff] %v6231
        %6360 = vst [vmem:[%s281 + $0x138] sm:$0xff] %v6232
        %6361 = vst [vmem:[%s281 + $0x140] sm:$0xff] %v6233
        %6362 = vst [vmem:[%s281 + $0x148] sm:$0xff] %v6234
        %6363 = vst [vmem:[%s281 + $0x150] sm:$0xff] %v6235
        %6364 = vst [vmem:[%s281 + $0x158] sm:$0xff] %v6236
        %6365 = vst [vmem:[%s281 + $0x160] sm:$0xff] %v6237
        %6366 = vst [vmem:[%s281 + $0x168] sm:$0xff] %v6238
        %6367 = vst [vmem:[%s281 + $0x170] sm:$0xff] %v6239
        %6368 = vst [vmem:[%s281 + $0x178] sm:$0xff] %v6240
        %6369 = vst [vmem:[%s281 + $0x180] sm:$0xff] %v6241
        %6370 = vst [vmem:[%s281 + $0x188] sm:$0xff] %v6242
        %6371 = vst [vmem:[%s281 + $0x190] sm:$0xff] %v6243
        %6372 = vst [vmem:[%s281 + $0x198] sm:$0xff] %v6244
        %6373 = vst [vmem:[%s281 + $0x1a0] sm:$0xff] %v6245
        %6374 = vst [vmem:[%s281 + $0x1a8] sm:$0xff] %v6246
        %6375 = vst [vmem:[%s281 + $0x1b0] sm:$0xff] %v6247
        %6376 = vst [vmem:[%s281 + $0x1b8] sm:$0xff] %v6248
        %6377 = vst [vmem:[%s281 + $0x1c0] sm:$0xff] %v6249
        %6378 = vst [vmem:[%s281 + $0x1c8] sm:$0xff] %v6250
        %6379 = vst [vmem:[%s281 + $0x1d0] sm:$0xff] %v6251
        %6380 = vst [vmem:[%s281 + $0x1d8] sm:$0xff] %v6252
        %6381 = vst [vmem:[%s281 + $0x1e0] sm:$0xff] %v6253
        %6382 = vst [vmem:[%s281 + $0x1e8] sm:$0xff] %v6254
        %6383 = vst [vmem:[%s281 + $0x1f0] sm:$0xff] %v6255
        %6384 = vst [vmem:[%s281 + $0x1f8] sm:$0xff] %v6256
        %v6385 = vpack.c.bf16 %v4821, %v4817
        %v6386 = vpack.c.bf16 %v4823, %v4819
        %v6387 = vpack.c.bf16 %v5207, %v5203
        %v6388 = vpack.c.bf16 %v5209, %v5205
        %v6389 = vpack.c.bf16 %v4831, %v4827
        %v6390 = vpack.c.bf16 %v4833, %v4829
        %v6391 = vpack.c.bf16 %v5217, %v5213
        %v6392 = vpack.c.bf16 %v5219, %v5215
        %v6393 = vpack.c.bf16 %v4841, %v4837
        %v6394 = vpack.c.bf16 %v4843, %v4839
        %v6395 = vpack.c.bf16 %v5227, %v5223
        %v6396 = vpack.c.bf16 %v5229, %v5225
        %v6397 = vpack.c.bf16 %v4851, %v4847
        %v6398 = vpack.c.bf16 %v4853, %v4849
        %v6399 = vpack.c.bf16 %v5237, %v5233
        %v6400 = vpack.c.bf16 %v5239, %v5235
        %v6401 = vpack.c.bf16 %v4861, %v4857
        %v6402 = vpack.c.bf16 %v4863, %v4859
        %v6403 = vpack.c.bf16 %v5247, %v5243
        %v6404 = vpack.c.bf16 %v5249, %v5245
        %v6405 = vpack.c.bf16 %v4871, %v4867
        %v6406 = vpack.c.bf16 %v4873, %v4869
        %v6407 = vpack.c.bf16 %v5257, %v5253
        %v6408 = vpack.c.bf16 %v5259, %v5255
        %v6409 = vpack.c.bf16 %v4881, %v4877
        %v6410 = vpack.c.bf16 %v4883, %v4879
        %v6411 = vpack.c.bf16 %v5267, %v5263
        %v6412 = vpack.c.bf16 %v5269, %v5265
        %v6413 = vpack.c.bf16 %v4891, %v4887
        %v6414 = vpack.c.bf16 %v4893, %v4889
        %v6415 = vpack.c.bf16 %v5277, %v5273
        %v6416 = vpack.c.bf16 %v5279, %v5275
        %v6417 = vpack.c.bf16 %v4901, %v4897
        %v6418 = vpack.c.bf16 %v4903, %v4899
        %v6419 = vpack.c.bf16 %v5287, %v5283
        %v6420 = vpack.c.bf16 %v5289, %v5285
        %v6421 = vpack.c.bf16 %v4911, %v4907
        %v6422 = vpack.c.bf16 %v4913, %v4909
        %v6423 = vpack.c.bf16 %v5297, %v5293
        %v6424 = vpack.c.bf16 %v5299, %v5295
        %v6425 = vpack.c.bf16 %v4921, %v4917
        %v6426 = vpack.c.bf16 %v4923, %v4919
        %v6427 = vpack.c.bf16 %v5307, %v5303
        %v6428 = vpack.c.bf16 %v5309, %v5305
        %v6429 = vpack.c.bf16 %v4931, %v4927
        %v6430 = vpack.c.bf16 %v4933, %v4929
        %v6431 = vpack.c.bf16 %v5317, %v5313
        %v6432 = vpack.c.bf16 %v5319, %v5315
        %v6433 = vpack.c.bf16 %v4941, %v4937
        %v6434 = vpack.c.bf16 %v4943, %v4939
        %v6435 = vpack.c.bf16 %v5327, %v5323
        %v6436 = vpack.c.bf16 %v5329, %v5325
        %v6437 = vpack.c.bf16 %v4951, %v4947
        %v6438 = vpack.c.bf16 %v4953, %v4949
        %v6439 = vpack.c.bf16 %v5337, %v5333
        %v6440 = vpack.c.bf16 %v5339, %v5335
        %v6441 = vpack.c.bf16 %v4961, %v4957
        %v6442 = vpack.c.bf16 %v4963, %v4959
        %v6443 = vpack.c.bf16 %v5347, %v5343
        %v6444 = vpack.c.bf16 %v5349, %v5345
        %v6445 = vpack.c.bf16 %v4971, %v4967
        %v6446 = vpack.c.bf16 %v4973, %v4969
        %v6447 = vpack.c.bf16 %v5357, %v5353
        %v6448 = vpack.c.bf16 %v5359, %v5355
        %v6513 = vunpack.c.l.b16 %v6385
        %v6514 = vunpack.c.l.b16 %v6386
        %v6515 = vunpack.c.l.b16 %v6387
        %v6516 = vunpack.c.l.b16 %v6388
        %v6517 = vunpack.c.h.b16 %v6385
        %v6518 = vunpack.c.h.b16 %v6386
        %v6519 = vunpack.c.h.b16 %v6387
        %v6520 = vunpack.c.h.b16 %v6388
        %v6521 = vunpack.c.l.b16 %v6389
        %v6522 = vunpack.c.l.b16 %v6390
        %v6523 = vunpack.c.l.b16 %v6391
        %v6524 = vunpack.c.l.b16 %v6392
        %v6525 = vunpack.c.h.b16 %v6389
        %v6526 = vunpack.c.h.b16 %v6390
        %v6527 = vunpack.c.h.b16 %v6391
        %v6528 = vunpack.c.h.b16 %v6392
        %v6529 = vunpack.c.l.b16 %v6393
        %v6530 = vunpack.c.l.b16 %v6394
        %v6531 = vunpack.c.l.b16 %v6395
        %v6532 = vunpack.c.l.b16 %v6396
        %v6533 = vunpack.c.h.b16 %v6393
        %v6534 = vunpack.c.h.b16 %v6394
        %v6535 = vunpack.c.h.b16 %v6395
        %v6536 = vunpack.c.h.b16 %v6396
        %v6537 = vunpack.c.l.b16 %v6397
        %v6538 = vunpack.c.l.b16 %v6398
        %v6539 = vunpack.c.l.b16 %v6399
        %v6540 = vunpack.c.l.b16 %v6400
        %v6541 = vunpack.c.h.b16 %v6397
        %v6542 = vunpack.c.h.b16 %v6398
        %v6543 = vunpack.c.h.b16 %v6399
        %v6544 = vunpack.c.h.b16 %v6400
        %v6545 = vunpack.c.l.b16 %v6401
        %v6546 = vunpack.c.l.b16 %v6402
        %v6547 = vunpack.c.l.b16 %v6403
        %v6548 = vunpack.c.l.b16 %v6404
        %v6549 = vunpack.c.h.b16 %v6401
        %v6550 = vunpack.c.h.b16 %v6402
        %v6551 = vunpack.c.h.b16 %v6403
        %v6552 = vunpack.c.h.b16 %v6404
        %v6553 = vunpack.c.l.b16 %v6405
        %v6554 = vunpack.c.l.b16 %v6406
        %v6555 = vunpack.c.l.b16 %v6407
        %v6556 = vunpack.c.l.b16 %v6408
        %v6557 = vunpack.c.h.b16 %v6405
        %v6558 = vunpack.c.h.b16 %v6406
        %v6559 = vunpack.c.h.b16 %v6407
        %v6560 = vunpack.c.h.b16 %v6408
        %v6561 = vunpack.c.l.b16 %v6409
        %v6562 = vunpack.c.l.b16 %v6410
        %v6563 = vunpack.c.l.b16 %v6411
        %v6564 = vunpack.c.l.b16 %v6412
        %v6565 = vunpack.c.h.b16 %v6409
        %v6566 = vunpack.c.h.b16 %v6410
        %v6567 = vunpack.c.h.b16 %v6411
        %v6568 = vunpack.c.h.b16 %v6412
        %v6569 = vunpack.c.l.b16 %v6413
        %v6570 = vunpack.c.l.b16 %v6414
        %v6571 = vunpack.c.l.b16 %v6415
        %v6572 = vunpack.c.l.b16 %v6416
        %v6573 = vunpack.c.h.b16 %v6413
        %v6574 = vunpack.c.h.b16 %v6414
        %v6575 = vunpack.c.h.b16 %v6415
        %v6576 = vunpack.c.h.b16 %v6416
        %v6577 = vunpack.c.l.b16 %v6417
        %v6578 = vunpack.c.l.b16 %v6418
        %v6579 = vunpack.c.l.b16 %v6419
        %v6580 = vunpack.c.l.b16 %v6420
        %v6581 = vunpack.c.h.b16 %v6417
        %v6582 = vunpack.c.h.b16 %v6418
        %v6583 = vunpack.c.h.b16 %v6419
        %v6584 = vunpack.c.h.b16 %v6420
        %v6585 = vunpack.c.l.b16 %v6421
        %v6586 = vunpack.c.l.b16 %v6422
        %v6587 = vunpack.c.l.b16 %v6423
        %v6588 = vunpack.c.l.b16 %v6424
        %v6589 = vunpack.c.h.b16 %v6421
        %v6590 = vunpack.c.h.b16 %v6422
        %v6591 = vunpack.c.h.b16 %v6423
        %v6592 = vunpack.c.h.b16 %v6424
        %v6593 = vunpack.c.l.b16 %v6425
        %v6594 = vunpack.c.l.b16 %v6426
        %v6595 = vunpack.c.l.b16 %v6427
        %v6596 = vunpack.c.l.b16 %v6428
        %v6597 = vunpack.c.h.b16 %v6425
        %v6598 = vunpack.c.h.b16 %v6426
        %v6599 = vunpack.c.h.b16 %v6427
        %v6600 = vunpack.c.h.b16 %v6428
        %v6601 = vunpack.c.l.b16 %v6429
        %v6602 = vunpack.c.l.b16 %v6430
        %v6603 = vunpack.c.l.b16 %v6431
        %v6604 = vunpack.c.l.b16 %v6432
        %v6605 = vunpack.c.h.b16 %v6429
        %v6606 = vunpack.c.h.b16 %v6430
        %v6607 = vunpack.c.h.b16 %v6431
        %v6608 = vunpack.c.h.b16 %v6432
        %v6609 = vunpack.c.l.b16 %v6433
        %v6610 = vunpack.c.l.b16 %v6434
        %v6611 = vunpack.c.l.b16 %v6435
        %v6612 = vunpack.c.l.b16 %v6436
        %v6613 = vunpack.c.h.b16 %v6433
        %v6614 = vunpack.c.h.b16 %v6434
        %v6615 = vunpack.c.h.b16 %v6435
        %v6616 = vunpack.c.h.b16 %v6436
        %v6617 = vunpack.c.l.b16 %v6437
        %v6618 = vunpack.c.l.b16 %v6438
        %v6619 = vunpack.c.l.b16 %v6439
        %v6620 = vunpack.c.l.b16 %v6440
        %v6621 = vunpack.c.h.b16 %v6437
        %v6622 = vunpack.c.h.b16 %v6438
        %v6623 = vunpack.c.h.b16 %v6439
        %v6624 = vunpack.c.h.b16 %v6440
        %v6625 = vunpack.c.l.b16 %v6441
        %v6626 = vunpack.c.l.b16 %v6442
        %v6627 = vunpack.c.l.b16 %v6443
        %v6628 = vunpack.c.l.b16 %v6444
        %v6629 = vunpack.c.h.b16 %v6441
        %v6630 = vunpack.c.h.b16 %v6442
        %v6631 = vunpack.c.h.b16 %v6443
        %v6632 = vunpack.c.h.b16 %v6444
        %v6633 = vunpack.c.l.b16 %v6445
        %v6634 = vunpack.c.l.b16 %v6446
        %v6635 = vunpack.c.l.b16 %v6447
        %v6636 = vunpack.c.l.b16 %v6448
        %v6637 = vunpack.c.h.b16 %v6445
        %v6638 = vunpack.c.h.b16 %v6446
        %v6639 = vunpack.c.h.b16 %v6447
        %v6640 = vunpack.c.h.b16 %v6448
        %v6641 = vpack.c.b16 %v6514, %v6513
        %v6642 = vpack.c.b16 %v6516, %v6515
        %v6643 = vpack.c.b16 %v6518, %v6517
        %v6644 = vpack.c.b16 %v6520, %v6519
        %v6645 = vpack.c.b16 %v6522, %v6521
        %v6646 = vpack.c.b16 %v6524, %v6523
        %v6647 = vpack.c.b16 %v6526, %v6525
        %v6648 = vpack.c.b16 %v6528, %v6527
        %v6649 = vpack.c.b16 %v6530, %v6529
        %v6650 = vpack.c.b16 %v6532, %v6531
        %v6651 = vpack.c.b16 %v6534, %v6533
        %v6652 = vpack.c.b16 %v6536, %v6535
        %v6653 = vpack.c.b16 %v6538, %v6537
        %v6654 = vpack.c.b16 %v6540, %v6539
        %v6655 = vpack.c.b16 %v6542, %v6541
        %v6656 = vpack.c.b16 %v6544, %v6543
        %v6657 = vpack.c.b16 %v6546, %v6545
        %v6658 = vpack.c.b16 %v6548, %v6547
        %v6659 = vpack.c.b16 %v6550, %v6549
        %v6660 = vpack.c.b16 %v6552, %v6551
        %v6661 = vpack.c.b16 %v6554, %v6553
        %v6662 = vpack.c.b16 %v6556, %v6555
        %v6663 = vpack.c.b16 %v6558, %v6557
        %v6664 = vpack.c.b16 %v6560, %v6559
        %v6665 = vpack.c.b16 %v6562, %v6561
        %v6666 = vpack.c.b16 %v6564, %v6563
        %v6667 = vpack.c.b16 %v6566, %v6565
        %v6668 = vpack.c.b16 %v6568, %v6567
        %v6669 = vpack.c.b16 %v6570, %v6569
        %v6670 = vpack.c.b16 %v6572, %v6571
        %v6671 = vpack.c.b16 %v6574, %v6573
        %v6672 = vpack.c.b16 %v6576, %v6575
        %v6673 = vpack.c.b16 %v6578, %v6577
        %v6674 = vpack.c.b16 %v6580, %v6579
        %v6675 = vpack.c.b16 %v6582, %v6581
        %v6676 = vpack.c.b16 %v6584, %v6583
        %v6677 = vpack.c.b16 %v6586, %v6585
        %v6678 = vpack.c.b16 %v6588, %v6587
        %v6679 = vpack.c.b16 %v6590, %v6589
        %v6680 = vpack.c.b16 %v6592, %v6591
        %v6681 = vpack.c.b16 %v6594, %v6593
        %v6682 = vpack.c.b16 %v6596, %v6595
        %v6683 = vpack.c.b16 %v6598, %v6597
        %v6684 = vpack.c.b16 %v6600, %v6599
        %v6685 = vpack.c.b16 %v6602, %v6601
        %v6686 = vpack.c.b16 %v6604, %v6603
        %v6687 = vpack.c.b16 %v6606, %v6605
        %v6688 = vpack.c.b16 %v6608, %v6607
        %v6689 = vpack.c.b16 %v6610, %v6609
        %v6690 = vpack.c.b16 %v6612, %v6611
        %v6691 = vpack.c.b16 %v6614, %v6613
        %v6692 = vpack.c.b16 %v6616, %v6615
        %v6693 = vpack.c.b16 %v6618, %v6617
        %v6694 = vpack.c.b16 %v6620, %v6619
        %v6695 = vpack.c.b16 %v6622, %v6621
        %v6696 = vpack.c.b16 %v6624, %v6623
        %v6697 = vpack.c.b16 %v6626, %v6625
        %v6698 = vpack.c.b16 %v6628, %v6627
        %v6699 = vpack.c.b16 %v6630, %v6629
        %v6700 = vpack.c.b16 %v6632, %v6631
        %v6701 = vpack.c.b16 %v6634, %v6633
        %v6702 = vpack.c.b16 %v6636, %v6635
        %v6703 = vpack.c.b16 %v6638, %v6637
        %v6704 = vpack.c.b16 %v6640, %v6639
        %6769 = vst [vmem:[%s288] sm:$0xff] %v6641
        %6770 = vst [vmem:[%s288 + $0x8] sm:$0xff] %v6642
        %6771 = vst [vmem:[%s288 + $0x10] sm:$0xff] %v6643
        %6772 = vst [vmem:[%s288 + $0x18] sm:$0xff] %v6644
        %6773 = vst [vmem:[%s288 + $0x20] sm:$0xff] %v6645
        %6774 = vst [vmem:[%s288 + $0x28] sm:$0xff] %v6646
        %6775 = vst [vmem:[%s288 + $0x30] sm:$0xff] %v6647
        %6776 = vst [vmem:[%s288 + $0x38] sm:$0xff] %v6648
        %6777 = vst [vmem:[%s288 + $0x40] sm:$0xff] %v6649
        %6778 = vst [vmem:[%s288 + $0x48] sm:$0xff] %v6650
        %6779 = vst [vmem:[%s288 + $0x50] sm:$0xff] %v6651
        %6780 = vst [vmem:[%s288 + $0x58] sm:$0xff] %v6652
        %6781 = vst [vmem:[%s288 + $0x60] sm:$0xff] %v6653
        %6782 = vst [vmem:[%s288 + $0x68] sm:$0xff] %v6654
        %6783 = vst [vmem:[%s288 + $0x70] sm:$0xff] %v6655
        %6784 = vst [vmem:[%s288 + $0x78] sm:$0xff] %v6656
        %6785 = vst [vmem:[%s288 + $0x80] sm:$0xff] %v6657
        %6786 = vst [vmem:[%s288 + $0x88] sm:$0xff] %v6658
        %6787 = vst [vmem:[%s288 + $0x90] sm:$0xff] %v6659
        %6788 = vst [vmem:[%s288 + $0x98] sm:$0xff] %v6660
        %6789 = vst [vmem:[%s288 + $0xa0] sm:$0xff] %v6661
        %6790 = vst [vmem:[%s288 + $0xa8] sm:$0xff] %v6662
        %6791 = vst [vmem:[%s288 + $0xb0] sm:$0xff] %v6663
        %6792 = vst [vmem:[%s288 + $0xb8] sm:$0xff] %v6664
        %6793 = vst [vmem:[%s288 + $0xc0] sm:$0xff] %v6665
        %6794 = vst [vmem:[%s288 + $0xc8] sm:$0xff] %v6666
        %6795 = vst [vmem:[%s288 + $0xd0] sm:$0xff] %v6667
        %6796 = vst [vmem:[%s288 + $0xd8] sm:$0xff] %v6668
        %6797 = vst [vmem:[%s288 + $0xe0] sm:$0xff] %v6669
        %6798 = vst [vmem:[%s288 + $0xe8] sm:$0xff] %v6670
        %6799 = vst [vmem:[%s288 + $0xf0] sm:$0xff] %v6671
        %6800 = vst [vmem:[%s288 + $0xf8] sm:$0xff] %v6672
        %6801 = vst [vmem:[%s288 + $0x100] sm:$0xff] %v6673
        %6802 = vst [vmem:[%s288 + $0x108] sm:$0xff] %v6674
        %6803 = vst [vmem:[%s288 + $0x110] sm:$0xff] %v6675
        %6804 = vst [vmem:[%s288 + $0x118] sm:$0xff] %v6676
        %6805 = vst [vmem:[%s288 + $0x120] sm:$0xff] %v6677
        %6806 = vst [vmem:[%s288 + $0x128] sm:$0xff] %v6678
        %6807 = vst [vmem:[%s288 + $0x130] sm:$0xff] %v6679
        %6808 = vst [vmem:[%s288 + $0x138] sm:$0xff] %v6680
        %6809 = vst [vmem:[%s288 + $0x140] sm:$0xff] %v6681
        %6810 = vst [vmem:[%s288 + $0x148] sm:$0xff] %v6682
        %6811 = vst [vmem:[%s288 + $0x150] sm:$0xff] %v6683
        %6812 = vst [vmem:[%s288 + $0x158] sm:$0xff] %v6684
        %6813 = vst [vmem:[%s288 + $0x160] sm:$0xff] %v6685
        %6814 = vst [vmem:[%s288 + $0x168] sm:$0xff] %v6686
        %6815 = vst [vmem:[%s288 + $0x170] sm:$0xff] %v6687
        %6816 = vst [vmem:[%s288 + $0x178] sm:$0xff] %v6688
        %6817 = vst [vmem:[%s288 + $0x180] sm:$0xff] %v6689
        %6818 = vst [vmem:[%s288 + $0x188] sm:$0xff] %v6690
        %6819 = vst [vmem:[%s288 + $0x190] sm:$0xff] %v6691
        %6820 = vst [vmem:[%s288 + $0x198] sm:$0xff] %v6692
        %6821 = vst [vmem:[%s288 + $0x1a0] sm:$0xff] %v6693
        %6822 = vst [vmem:[%s288 + $0x1a8] sm:$0xff] %v6694
        %6823 = vst [vmem:[%s288 + $0x1b0] sm:$0xff] %v6695
        %6824 = vst [vmem:[%s288 + $0x1b8] sm:$0xff] %v6696
        %6825 = vst [vmem:[%s288 + $0x1c0] sm:$0xff] %v6697
        %6826 = vst [vmem:[%s288 + $0x1c8] sm:$0xff] %v6698
        %6827 = vst [vmem:[%s288 + $0x1d0] sm:$0xff] %v6699
        %6828 = vst [vmem:[%s288 + $0x1d8] sm:$0xff] %v6700
        %6829 = vst [vmem:[%s288 + $0x1e0] sm:$0xff] %v6701
        %6830 = vst [vmem:[%s288 + $0x1e8] sm:$0xff] %v6702
        %6831 = vst [vmem:[%s288 + $0x1f0] sm:$0xff] %v6703
        %6832 = vst [vmem:[%s288 + $0x1f8] sm:$0xff] %v6704
        %s6833 = sand.u32 %s103, 1
        %s6834 = scalar_lea.sflag [#allocation4], %s6833
        %s6835 = sand.u32 %s103, 1
        %s6836 = smul.addr %s6835, 512
        %s6837 = scalar_lea.vmem [#allocation8], %s6836
        %s6838 = sand.u32 %s27, 1
        %s6839 = scalar_lea.sflag [#allocation10], %s6838
        %s6840 = sand.u32 %s129, 1
        %s6841 = smul.addr %s6840, 512
        %s6842 = scalar_lea.vmem [#allocation9], %s6841
        %s6843 = sand.u32 %s27, 1
        %s6844 = scalar_lea.sflag [#allocation10], %s6843
        %s6845 = sand.u32 %s155, 1
        %s6846 = smul.addr %s6845, 512
        %s6847 = scalar_lea.vmem [#allocation11], %s6846
        // Predicated region
        $region45: #{tpu_custom_call.1} parent=31 // pred_check
          %p6848 = pneg %p113
        $region46: #{tpu_custom_call.1} parent=31 // pred_check_branch
          %6850 = sbr.rel (%p6848) target = $region48
        $region47: #{tpu_custom_call.1} parent=31 // pred_region
          %s6851 = smul.u32 32, %s27
          %s6853 = ssub.s32 8192, 8192
          %6854 = vsyncadd %s6834, %s6853
          %s6855 = smul.addr %s6851, 4
          %s6856 = smul.addr %s6855, 64
          %s6857 = scalar_lea.hbm %s3, %s6856
          %s6858 = sshll.u32 %s6837, 4
          %s6859 = int_to_ptr.vmem [resolvable:$true] %s6858
          %6864 = dma.vmem_to_hbm [thread:$0]  %s6859, 8192, %s6857, %s6834, 256, 256, 16
        $region48: #{tpu_custom_call.1} parent=31 // pred_fallthru
          _
        // Predicated region
        $region49: #{tpu_custom_call.1} parent=31 // pred_check
          %p6865 = pneg %p139
        $region50: #{tpu_custom_call.1} parent=31 // pred_check_branch
          %6867 = sbr.rel (%p6865) target = $region52
        $region51: #{tpu_custom_call.1} parent=31 // pred_region
          %s6868 = smul.u32 32, %s27
          %s6870 = ssub.s32 8192, 8192
          %6871 = vsyncadd %s6839, %s6870
          %s6872 = smul.addr %s6868, 4
          %s6873 = smul.addr %s6872, 64
          %s6874 = scalar_lea.hbm %s4, %s6873
          %s6875 = sshll.u32 %s6842, 4
          %s6876 = int_to_ptr.vmem [resolvable:$true] %s6875
          %6881 = dma.vmem_to_hbm [thread:$0]  %s6876, 8192, %s6874, %s6839, 256, 256, 16
        $region52: #{tpu_custom_call.1} parent=31 // pred_fallthru
          _
        // Predicated region
        $region53: #{tpu_custom_call.1} parent=31 // pred_check
          %p6882 = pneg %p165
        $region54: #{tpu_custom_call.1} parent=31 // pred_check_branch
          %6884 = sbr.rel (%p6882) target = $region56
        $region55: #{tpu_custom_call.1} parent=31 // pred_region
          %s6885 = smul.u32 32, %s27
          %s6887 = ssub.s32 8192, 8192
          %6888 = vsyncadd %s6844, %s6887
          %s6889 = smul.addr %s6885, 4
          %s6890 = smul.addr %s6889, 64
          %s6891 = scalar_lea.hbm %s5, %s6890
          %s6892 = sshll.u32 %s6847, 4
          %s6893 = int_to_ptr.vmem [resolvable:$true] %s6892
          %6898 = dma.vmem_to_hbm [thread:$0]  %s6893, 8192, %s6891, %s6844, 256, 256, 16
        $region56: #{tpu_custom_call.1} parent=31 // pred_fallthru
          _
      $region32: #{tpu_custom_call.1} parent=5 // pred_fallthru
        _
      %p6899 = scmp.le.s32.totalorder 2, %s22
      // Predicated region
      $region57: #{tpu_custom_call.1} parent=5 // pred_check
        %p6900 = pneg %p6899
      $region58: #{tpu_custom_call.1} parent=5 // pred_check_branch
        %6902 = sbr.rel (%p6900) target = $region60
      $region59: #{tpu_custom_call.1} parent=5 // pred_region
        %s6903 = ssub.s32 %s22, 2
        // Predicated region
        $region61: #{tpu_custom_call.1} parent=59 // pred_check
          %p6904 = pneg %p119
        $region62: #{tpu_custom_call.1} parent=59 // pred_check_branch
          %6906 = sbr.rel (%p6904) target = $region64
        $region63: #{tpu_custom_call.1} parent=59 // pred_region
          %s6907 = sand.u32 %s104, 1
          %s6908 = scalar_lea.sflag [#allocation4], %s6907
          %s6909 = sand.u32 %s104, 1
          %s6910 = smul.addr %s6909, 512
          %s6911 = scalar_lea.vmem [#allocation8], %s6910
          %6912 = dma.done %s6908, 8192
        $region64: #{tpu_custom_call.1} parent=59 // pred_fallthru
          _
        // Predicated region
        $region65: #{tpu_custom_call.1} parent=59 // pred_check
          %p6913 = pneg %p145
        $region66: #{tpu_custom_call.1} parent=59 // pred_check_branch
          %6915 = sbr.rel (%p6913) target = $region68
        $region67: #{tpu_custom_call.1} parent=59 // pred_region
          %s6916 = sand.u32 %s28, 1
          %s6917 = scalar_lea.sflag [#allocation10], %s6916
          %s6918 = sand.u32 %s130, 1
          %s6919 = smul.addr %s6918, 512
          %s6920 = scalar_lea.vmem [#allocation9], %s6919
          %6921 = dma.done %s6917, 8192
        $region68: #{tpu_custom_call.1} parent=59 // pred_fallthru
          _
        // Predicated region
        $region69: #{tpu_custom_call.1} parent=59 // pred_check
          %p6922 = pneg %p171
        $region70: #{tpu_custom_call.1} parent=59 // pred_check_branch
          %6924 = sbr.rel (%p6922) target = $region72
        $region71: #{tpu_custom_call.1} parent=59 // pred_region
          %s6925 = sand.u32 %s28, 1
          %s6926 = scalar_lea.sflag [#allocation10], %s6925
          %s6927 = sand.u32 %s156, 1
          %s6928 = smul.addr %s6927, 512
          %s6929 = scalar_lea.vmem [#allocation11], %s6928
          %6930 = dma.done %s6926, 8192
        $region72: #{tpu_custom_call.1} parent=59 // pred_fallthru
          _
      $region60: #{tpu_custom_call.1} parent=5 // pred_fallthru
        _
    $region6: #{tpu_custom_call.1} parent=1 // loop_footer
      %s26 = sadd.s32 1, %s22
    $region7: #{tpu_custom_call.1} parent=1 // loop_footer_branch
      %21 = sbr.rel target = $region3
    $region8: #{tpu_custom_call.1} parent=1 // loop_exit
      _
    %6931 = vsyncpa [#allocation3], 1
    %s6932 = scalar_lea.sflag [#allocation3], 1
    %6933 = vsyncpa %s6932, 1
    %6934 = vsyncpa [#allocation6], 1
    %6935 = vsyncpa [#allocation4], 1
    %s6936 = scalar_lea.sflag [#allocation4], 1
    %6937 = vsyncpa %s6936, 1
    %6938 = vsyncpa [#allocation10], 1
    %s6939 = scalar_lea.sflag [#allocation10], 1
    %6940 = vsyncpa %s6939, 1

</llo_original>
